<compile_context>
chip_gen: v7x
topology: tpu7x:2x2x1
jax: 0.10.0
libtpu: 0.0.40
codegen_flags: <defaults>
</compile_context>

<pallas_src>
import functools

import jax
import jax.numpy as jnp
from jax.experimental import pallas as pl
from jax.experimental.pallas import tpu as pltpu


def _decoder_kernel(*refs, length, num_nodes, num_layers, hidden_size):
    """Whole greedy decode loop in one kernel invocation (length is small, fully unrolled)."""
    if num_layers > 1:
        (x0_ref, w0x_ref, w0h_ref, wih_ref, whh_ref, b_ref,
         wfc_ref, bfc_ref, h0_ref, c0_ref,
         seq_ref, out_ref, hid_ref, cell_ref) = refs
    else:
        (x0_ref, w0x_ref, w0h_ref,
         wfc_ref, bfc_ref, h0_ref, c0_ref,
         seq_ref, out_ref, hid_ref, cell_ref) = refs
        wih_ref = whh_ref = b_ref = None

    B = x0_ref.shape[0]
    V = out_ref.shape[1]
    H = hidden_size

    # --- LSTM state kept vreg-resident across the unrolled loop (no per-step VMEM RT) ---
    hs = [h0_ref[l] for l in range(num_layers)]
    cs = [c0_ref[l] for l in range(num_layers)]

    # --- hoisted constants / weight loads (loaded once, reused every step) ---
    tok = x0_ref[...]                                               # (B, 1) int32
    vocab_iota = jax.lax.broadcasted_iota(jnp.int32, (B, V), 1)
    w0x = w0x_ref[...]                                              # (V, 4H) emb@wih0 + b0 folded
    w0h = w0h_ref[...]                                              # (H, 4H) whh0
    wfc = wfc_ref[...]                                              # (H, V)  f32 (argmax stability)
    bfc = bfc_ref[...]                                              # (1, V)  f32
    wihs = [wih_ref[l] for l in range(num_layers - 1)] if num_layers > 1 else []
    whhs = [whh_ref[l] for l in range(num_layers - 1)] if num_layers > 1 else []
    bls = [b_ref[l] for l in range(num_layers - 1)] if num_layers > 1 else []
    wdt = w0x.dtype                                                 # dot-operand dtype (bf16/f32)

    # --- step-dependent valid-range masks hoisted out of the loop (static per step) ---
    step_keys = []
    for step in range(length):
        if step % 2:
            step_keys.append(("odd", 0))
        else:
            step_keys.append(("even", step // 2 % 10 // 2 + 3))
    masks = {}
    for key in dict.fromkeys(step_keys):                            # ordered, de-duplicated
        if key[0] == "odd":
            masks[key] = vocab_iota >= num_nodes
        else:
            masks[key] = (vocab_iota >= 1) & (vocab_iota < key[1])

    def lstm_cell(gates, c_prev):
        # PyTorch gate order i, f, g, o along 4H. Two full-(B,4H) EUP passes.
        sig = jax.nn.sigmoid(gates)
        th = jnp.tanh(gates)
        c_new = sig[:, H:2 * H] * c_prev + sig[:, :H] * th[:, 2 * H:3 * H]
        h_new = sig[:, 3 * H:] * jnp.tanh(c_new)
        return h_new, c_new

    # TODO(synk): if `length` ever grows beyond ~32, switch the full Python unroll to
    # lax.fori_loop(..., unroll=k) and write seq_ref per step to bound vreg live ranges.
    tok_cols = []
    logits = None
    for step in range(length):                                      # unrolled (static)
        # --- layer 0: two aligned dots; embedding lookup + layer-0 bias folded into w0x ---
        onehot = (vocab_iota == tok).astype(wdt)                    # (B, V)
        gates = (jnp.dot(onehot, w0x, preferred_element_type=jnp.float32)
                 + jnp.dot(hs[0].astype(wdt), w0h, preferred_element_type=jnp.float32))
        h_new, c_new = lstm_cell(gates, cs[0])
        hs[0], cs[0] = h_new, c_new
        x = h_new                                                   # nn.Dropout eval == identity

        # --- layers >= 1: two aligned dots + broadcast VPU bias add ---
        for l in range(1, num_layers):
            gates = (jnp.dot(x.astype(wdt), wihs[l - 1], preferred_element_type=jnp.float32)
                     + jnp.dot(hs[l].astype(wdt), whhs[l - 1], preferred_element_type=jnp.float32)
                     + bls[l - 1])
            h_new, c_new = lstm_cell(gates, cs[l])
            hs[l], cs[l] = h_new, c_new
            x = h_new

        # --- fc (f32 weights) + VPU bias add ---
        logits = jnp.dot(x, wfc, preferred_element_type=jnp.float32) + bfc   # (B, V)

        # --- greedy decode with step-dependent valid range ---
        # argmax over masked logits == argmax over masked log_softmax (monotone),
        # so log_softmax is hoisted out of the loop.
        masked = jnp.where(masks[step_keys[step]], logits, -jnp.inf)
        idx = jnp.argmax(masked, axis=1).astype(jnp.int32)          # (B,)
        tok = idx[:, None]                                          # (B, 1)
        tok_cols.append(tok)

    # --- single lane-dense writes after the loop ---
    seq_ref[...] = jnp.concatenate(tok_cols, axis=1)                # (B, length) int32
    m = jnp.max(logits, axis=1, keepdims=True)
    lse = m + jnp.log(jnp.sum(jnp.exp(logits - m), axis=1, keepdims=True))
    out_ref[...] = logits - lse                                     # last-step log_softmax
    for l in range(num_layers):
        hid_ref[l] = hs[l]
        cell_ref[l] = cs[l]


def fuse_decoder_params(params, *, num_layers, hidden_size, param_dtype=jnp.bfloat16):
    """Host-side (one-time) weight fusion. Call once and reuse across decode calls.

    * layer 0: embedding lookup + x-matmul + layer-0 bias fused into one (V, 4H) table
      so the in-kernel one-hot row-select does lookup + bias + matmul in a single dot.
    * dot operands cast to `param_dtype` (bf16 by default: MXU-native on v5e/v6e/v7x);
      biases and the fc weight stay f32 (VPU adds / greedy-argmax stability).
    """
    emb = params["emb"]                       # (V, H)
    wih = params["wih_t"]                     # (L, H, 4H)
    whh = params["whh_t"]                     # (L, H, 4H)
    b = params["b"]                           # (L, 1, 4H) combined b_ih + b_hh
    fused = {
        "w0x": (emb @ wih[0] + b[0]).astype(param_dtype),           # (V, 4H)
        "w0h": whh[0].astype(param_dtype),                          # (H, 4H)
        "wfc": params["wfc_t"].astype(jnp.float32),                 # (H, V)
        "bfc": params["bfc"].astype(jnp.float32),                   # (1, V)
    }
    if num_layers > 1:
        fused["wih"] = wih[1:].astype(param_dtype)                  # (L-1, H, 4H)
        fused["whh"] = whh[1:].astype(param_dtype)                  # (L-1, H, 4H)
        fused["b"] = b[1:].astype(jnp.float32)                      # (L-1, 1, 4H)
    return fused


def decoder_forward(x, fused, *, num_layers, num_nodes, hidden_size, vocab_size,
                    length, x_thought=None, batch_tile=8):
    """Wrapper mirroring Decoder.forward. Returns (seq_list, out, hidden, cell).

    `fused` is the output of `fuse_decoder_params` (computed once, reused per call).
    Padded batch <= batch_tile -> single gridless invocation; larger batches use a
    parallel batch grid (rows are independent) so v7x's second TensorCore shares the work.
    """
    B = x.shape[0]
    H = hidden_size
    TB = batch_tile
    Bp = max(TB, ((B + TB - 1) // TB) * TB)     # pad batch onto full sublane groups

    h0 = (x_thought.astype(jnp.float32) if x_thought is not None
          else jnp.zeros((num_layers, B, H), jnp.float32))
    c0 = jnp.zeros((num_layers, B, H), jnp.float32)
    # TODO(synk): PyTorch `_init_states` returns uninitialized `.new()` tensors; zeros used here.

    x_p = x.astype(jnp.int32)
    if Bp != B:
        h0 = jnp.pad(h0, [(0, 0), (0, Bp - B), (0, 0)])
        c0 = jnp.pad(c0, [(0, 0), (0, Bp - B), (0, 0)])
        x_p = jnp.pad(x_p, [(0, Bp - B), (0, 0)])

    kernel = functools.partial(_decoder_kernel, length=length, num_nodes=num_nodes,
                               num_layers=num_layers, hidden_size=H)

    weight_args = [fused["w0x"], fused["w0h"]]
    if num_layers > 1:
        weight_args += [fused["wih"], fused["whh"], fused["b"]]
    weight_args += [fused["wfc"], fused["bfc"]]

    out_shapes = (
        jax.ShapeDtypeStruct((Bp, length), jnp.int32),
        jax.ShapeDtypeStruct((Bp, vocab_size), jnp.float32),
        jax.ShapeDtypeStruct((num_layers, Bp, H), jnp.float32),
        jax.ShapeDtypeStruct((num_layers, Bp, H), jnp.float32),
    )
    vmem = pl.BlockSpec(memory_space=pltpu.MemorySpace.VMEM)

    if Bp <= TB:
        # Single gridless invocation: everything VMEM-resident.
        seq, out, hidden, cell = pl.pallas_call(
            kernel,
            out_shape=out_shapes,
            in_specs=[vmem] * (3 + len(weight_args)),
            out_specs=(vmem, vmem, vmem, vmem),
        )(x_p, *weight_args, h0, c0)
    else:
        # Batch-tiled parallel grid: independent rows -> grid steps shard across
        # TensorCores on v7x via dimension_semantics=("parallel",).
        def _full_block_spec(arr):
            shape = tuple(arr.shape)
            return pl.BlockSpec(shape, lambda b, _z=(0,) * len(shape): _z)

        state_spec = pl.BlockSpec((num_layers, TB, H), lambda b: (0, b, 0))
        in_specs = ([pl.BlockSpec((TB, 1), lambda b: (b, 0))]
                    + [_full_block_spec(w) for w in weight_args]
                    + [state_spec, state_spec])
        out_specs = (
            pl.BlockSpec((TB, length), lambda b: (b, 0)),
            pl.BlockSpec((TB, vocab_size), lambda b: (b, 0)),
            pl.BlockSpec((num_layers, TB, H), lambda b: (0, b, 0)),
            pl.BlockSpec((num_layers, TB, H), lambda b: (0, b, 0)),
        )
        seq, out, hidden, cell = pl.pallas_call(
            kernel,
            out_shape=out_shapes,
            grid=(Bp // TB,),
            in_specs=in_specs,
            out_specs=out_specs,
            compiler_params=pltpu.CompilerParams(dimension_semantics=("parallel",)),
        )(x_p, *weight_args, h0, c0)

    seq_list = [seq[:B, i:i + 1] for i in range(length)]            # list of (B, 1) tokens
    return seq_list, out[:B], hidden[:, :B], cell[:, :B]


def decoder_reference(x, params, *, num_layers, num_nodes, hidden_size, vocab_size, length):
    """Pure-JAX reference matching the PyTorch forward (eval mode), unfused params."""
    B = x.shape[0]
    H = hidden_size
    h = jnp.zeros((num_layers, B, H), jnp.float32)
    c = jnp.zeros_like(h)
    tok = x.astype(jnp.int32)
    seq = []
    logp = None
    for step in range(length):
        xin = params["emb"][tok[:, 0]]
        new_h, new_c = [], []
        for l in range(num_layers):
            gates = xin @ params["wih_t"][l] + h[l] @ params["whh_t"][l] + params["b"][l]
            i_g = jax.nn.sigmoid(gates[:, :H])
            f_g = jax.nn.sigmoid(gates[:, H:2 * H])
            g_g = jnp.tanh(gates[:, 2 * H:3 * H])
            o_g = jax.nn.sigmoid(gates[:, 3 * H:])
            cc = f_g * c[l] + i_g * g_g
            hh = o_g * jnp.tanh(cc)
            new_h.append(hh)
            new_c.append(cc)
            xin = hh
        h, c = jnp.stack(new_h), jnp.stack(new_c)
        logits = xin @ params["wfc_t"] + params["bfc"]
        logp = jax.nn.log_softmax(logits, axis=1)
        if step % 2:
            tok = jnp.argmax(logp[:, num_nodes:], axis=1).astype(jnp.int32)[:, None] + num_nodes
        else:
            node_end = step // 2 % 10 // 2 + 3
            tok = jnp.argmax(logp[:, 1:node_end], axis=1).astype(jnp.int32)[:, None] + 1
        seq.append(tok)
    return seq, logp, h, c


if __name__ == "__main__":
    # Hyperparameters (small, consistent with the module):
    num_layers = 2
    num_nodes = 5
    num_ops = 8
    vocab_size = (num_nodes - 1) + num_ops + 1        # 13
    hidden_size = 32
    length = 8
    SOS_ID = 0

    key = jax.random.PRNGKey(0)
    ks = jax.random.split(key, 6)
    scale = 0.5
    params = {
        "emb":   scale * jax.random.normal(ks[0], (vocab_size, hidden_size), jnp.float32),
        # LSTM weights pre-transposed to (in, out); gate order i,f,g,o along 4H
        "wih_t": scale * jax.random.normal(ks[1], (num_layers, hidden_size, 4 * hidden_size), jnp.float32),
        "whh_t": scale * jax.random.normal(ks[2], (num_layers, hidden_size, 4 * hidden_size), jnp.float32),
        # combined bias b_ih + b_hh, kept 2D per layer for clean broadcasting / fusion
        "b":     scale * jax.random.normal(ks[3], (num_layers, 1, 4 * hidden_size), jnp.float32),
        "wfc_t": scale * jax.random.normal(ks[4], (hidden_size, vocab_size), jnp.float32),
        "bfc":   scale * jax.random.normal(ks[5], (1, vocab_size), jnp.float32),
    }

    cfg = dict(num_layers=num_layers, num_nodes=num_nodes, hidden_size=hidden_size,
               vocab_size=vocab_size, length=length)

    # --- exact-match validation (f32 dot operands), gridless path (batch=2 -> Bp=8) ---
    fused_f32 = fuse_decoder_params(params, num_layers=num_layers, hidden_size=hidden_size,
                                    param_dtype=jnp.float32)
    x = jnp.full((2, 1), SOS_ID, dtype=jnp.int32)
    seq, out, hidden, cell = decoder_forward(x, fused_f32, **cfg)
    jax.block_until_ready(out)

    seq_r, out_r, hid_r, cell_r = decoder_reference(x, params, **cfg)
    for t, tr in zip(seq, seq_r):
        assert jnp.array_equal(t, tr), (t, tr)
    assert jnp.allclose(out, out_r, atol=1e-4, rtol=1e-4)
    assert jnp.allclose(hidden, hid_r, atol=1e-4, rtol=1e-4)
    assert jnp.allclose(cell, cell_r, atol=1e-4, rtol=1e-4)

    # --- batch-tiled parallel-grid path (batch=16 -> grid=(2,)), still f32-exact ---
    xb = jnp.full((16, 1), SOS_ID, dtype=jnp.int32)
    seq_b, out_b, hid_b, cell_b = decoder_forward(xb, fused_f32, **cfg)
    jax.block_until_ready(out_b)

    seq_br, out_br, hid_br, cell_br = decoder_reference(xb, params, **cfg)
    for t, tr in zip(seq_b, seq_br):
        assert jnp.array_equal(t, tr), (t, tr)
    assert jnp.allclose(out_b, out_br, atol=1e-4, rtol=1e-4)
    assert jnp.allclose(hid_b, hid_br, atol=1e-4, rtol=1e-4)
    assert jnp.allclose(cell_b, cell_br, atol=1e-4, rtol=1e-4)

    # --- default bf16 dot-operand path (fast path on all TPU generations) ---
    # bf16 can flip greedy-argmax tokens near exact ties, so only the f32 path is asserted
    # bit-exactly; here we just verify the bf16 kernel compiles, runs and stays finite.
    fused_bf16 = fuse_decoder_params(params, num_layers=num_layers, hidden_size=hidden_size)
    seq_h, out_h, hid_h, cell_h = decoder_forward(x, fused_bf16, **cfg)
    jax.block_until_ready(out_h)
    assert bool(jnp.all(jnp.isfinite(out_h)))
    assert bool(jnp.all((seq_h[0] >= 0) & (seq_h[0] < vocab_size)))

    print("KERNEL_OK")
</pallas_src>

<mosaic_0001>
module attributes {stable_mosaic.version = 11 : i64} {
  func.func @_decoder_kernel(%arg0: memref<8x1xi32, #tpu.memory_space<vmem>>, %arg1: memref<13x128xf32, #tpu.memory_space<vmem>>, %arg2: memref<32x128xf32, #tpu.memory_space<vmem>>, %arg3: memref<1x32x128xf32, #tpu.memory_space<vmem>>, %arg4: memref<1x32x128xf32, #tpu.memory_space<vmem>>, %arg5: memref<1x1x128xf32, #tpu.memory_space<vmem>>, %arg6: memref<32x13xf32, #tpu.memory_space<vmem>>, %arg7: memref<1x13xf32, #tpu.memory_space<vmem>>, %arg8: memref<2x8x32xf32, #tpu.memory_space<vmem>>, %arg9: memref<2x8x32xf32, #tpu.memory_space<vmem>>, %arg10: memref<8x8xi32, #tpu.memory_space<vmem>>, %arg11: memref<8x13xf32, #tpu.memory_space<vmem>>, %arg12: memref<2x8x32xf32, #tpu.memory_space<vmem>>, %arg13: memref<2x8x32xf32, #tpu.memory_space<vmem>>) attributes {dimension_semantics = [], scalar_prefetch = 0 : i64, scratch_operands = 0 : i64, tpu.core_type = #tpu.core_type<tc>} {
    %c0 = arith.constant 0 : index
    %c0_0 = arith.constant 0 : index
    %c0_1 = arith.constant 0 : index
    %0 = vector.load %arg8[%c0, %c0_0, %c0_1] : memref<2x8x32xf32, #tpu.memory_space<vmem>>, vector<1x8x32xf32>
    %1 = vector.shape_cast %0 : vector<1x8x32xf32> to vector<8x32xf32>
    %c1 = arith.constant 1 : index
    %c0_2 = arith.constant 0 : index
    %c0_3 = arith.constant 0 : index
    %2 = vector.load %arg8[%c1, %c0_2, %c0_3] : memref<2x8x32xf32, #tpu.memory_space<vmem>>, vector<1x8x32xf32>
    %3 = vector.shape_cast %2 : vector<1x8x32xf32> to vector<8x32xf32>
    %c0_4 = arith.constant 0 : index
    %c0_5 = arith.constant 0 : index
    %c0_6 = arith.constant 0 : index
    %4 = vector.load %arg9[%c0_4, %c0_5, %c0_6] : memref<2x8x32xf32, #tpu.memory_space<vmem>>, vector<1x8x32xf32>
    %5 = vector.shape_cast %4 : vector<1x8x32xf32> to vector<8x32xf32>
    %c1_7 = arith.constant 1 : index
    %c0_8 = arith.constant 0 : index
    %c0_9 = arith.constant 0 : index
    %6 = vector.load %arg9[%c1_7, %c0_8, %c0_9] : memref<2x8x32xf32, #tpu.memory_space<vmem>>, vector<1x8x32xf32>
    %7 = vector.shape_cast %6 : vector<1x8x32xf32> to vector<8x32xf32>
    %c0_10 = arith.constant 0 : index
    %c0_11 = arith.constant 0 : index
    %8 = vector.load %arg0[%c0_10, %c0_11] : memref<8x1xi32, #tpu.memory_space<vmem>>, vector<8x1xi32>
    %9 = tpu.iota {dimensions = array<i32: 1>} : vector<8x13xi32>
    %c0_12 = arith.constant 0 : index
    %c0_13 = arith.constant 0 : index
    %10 = vector.load %arg1[%c0_12, %c0_13] : memref<13x128xf32, #tpu.memory_space<vmem>>, vector<13x128xf32>
    %c0_14 = arith.constant 0 : index
    %c0_15 = arith.constant 0 : index
    %11 = vector.load %arg2[%c0_14, %c0_15] : memref<32x128xf32, #tpu.memory_space<vmem>>, vector<32x128xf32>
    %c0_16 = arith.constant 0 : index
    %c0_17 = arith.constant 0 : index
    %12 = vector.load %arg6[%c0_16, %c0_17] : memref<32x13xf32, #tpu.memory_space<vmem>>, vector<32x13xf32>
    %c0_18 = arith.constant 0 : index
    %c0_19 = arith.constant 0 : index
    %13 = vector.load %arg7[%c0_18, %c0_19] : memref<1x13xf32, #tpu.memory_space<vmem>>, vector<1x13xf32>
    %c0_20 = arith.constant 0 : index
    %c0_21 = arith.constant 0 : index
    %c0_22 = arith.constant 0 : index
    %14 = vector.load %arg3[%c0_20, %c0_21, %c0_22] : memref<1x32x128xf32, #tpu.memory_space<vmem>>, vector<1x32x128xf32>
    %15 = vector.shape_cast %14 : vector<1x32x128xf32> to vector<32x128xf32>
    %c0_23 = arith.constant 0 : index
    %c0_24 = arith.constant 0 : index
    %c0_25 = arith.constant 0 : index
    %16 = vector.load %arg4[%c0_23, %c0_24, %c0_25] : memref<1x32x128xf32, #tpu.memory_space<vmem>>, vector<1x32x128xf32>
    %17 = vector.shape_cast %16 : vector<1x32x128xf32> to vector<32x128xf32>
    %c0_26 = arith.constant 0 : index
    %c0_27 = arith.constant 0 : index
    %c0_28 = arith.constant 0 : index
    %18 = vector.load %arg5[%c0_26, %c0_27, %c0_28] : memref<1x1x128xf32, #tpu.memory_space<vmem>>, vector<1x1x128xf32>
    %19 = vector.shape_cast %18 : vector<1x1x128xf32> to vector<1x128xf32>
    %c1_i32 = arith.constant 1 : i32
    %20 = vector.broadcast %c1_i32 : i32 to vector<8x13xi32>
    %21 = arith.cmpi sge, %9, %20 : vector<8x13xi32>
    %c3_i32 = arith.constant 3 : i32
    %22 = vector.broadcast %c3_i32 : i32 to vector<8x13xi32>
    %23 = arith.cmpi slt, %9, %22 : vector<8x13xi32>
    %24 = arith.andi %21, %23 : vector<8x13xi1>
    %c5_i32 = arith.constant 5 : i32
    %25 = vector.broadcast %c5_i32 : i32 to vector<8x13xi32>
    %26 = arith.cmpi sge, %9, %25 : vector<8x13xi32>
    %c1_i32_29 = arith.constant 1 : i32
    %27 = vector.broadcast %c1_i32_29 : i32 to vector<8x13xi32>
    %28 = arith.cmpi sge, %9, %27 : vector<8x13xi32>
    %c4_i32 = arith.constant 4 : i32
    %29 = vector.broadcast %c4_i32 : i32 to vector<8x13xi32>
    %30 = arith.cmpi slt, %9, %29 : vector<8x13xi32>
    %31 = arith.andi %28, %30 : vector<8x13xi1>
    %32 = vector.broadcast %8 : vector<8x1xi32> to vector<8x13xi32>
    %33 = arith.cmpi eq, %9, %32 : vector<8x13xi32>
    %34 = arith.extui %33 : vector<8x13xi1> to vector<8x13xi32>
    %35 = arith.sitofp %34 : vector<8x13xi32> to vector<8x13xf32>
    %cst = arith.constant dense<0.000000e+00> : vector<8x128xf32>
    %36 = tpu.matmul %35, %10, %cst {dimension_numbers = #tpu.dot_dimension_numbers<[1], [0], [0], [1], [0, 0, 1, 1], [], []>} : vector<8x13xf32>, vector<13x128xf32>, vector<8x128xf32> -> vector<8x128xf32>
    %cst_30 = arith.constant dense<0.000000e+00> : vector<8x128xf32>
    %37 = tpu.matmul %1, %11, %cst_30 {dimension_numbers = #tpu.dot_dimension_numbers<[1], [0], [0], [1], [0, 0, 1, 1], [], []>} : vector<8x32xf32>, vector<32x128xf32>, vector<8x128xf32> -> vector<8x128xf32>
    %38 = arith.addf %36, %37 : vector<8x128xf32>
    %39 = arith.negf %38 : vector<8x128xf32>
    %40 = math.exp %39 : vector<8x128xf32>
    %cst_31 = arith.constant 1.000000e+00 : f32
    %41 = vector.broadcast %cst_31 : f32 to vector<8x128xf32>
    %42 = arith.addf %41, %40 : vector<8x128xf32>
    %43 = arith.divf %41, %42 : vector<8x128xf32>
    %44 = math.tanh %38 : vector<8x128xf32>
    %45 = vector.extract_strided_slice %43 {offsets = [0, 32], sizes = [8, 32], strides = [1, 1]} : vector<8x128xf32> to vector<8x32xf32>
    %46 = arith.mulf %45, %5 : vector<8x32xf32>
    %47 = vector.extract_strided_slice %43 {offsets = [0, 0], sizes = [8, 32], strides = [1, 1]} : vector<8x128xf32> to vector<8x32xf32>
    %48 = vector.extract_strided_slice %44 {offsets = [0, 64], sizes = [8, 32], strides = [1, 1]} : vector<8x128xf32> to vector<8x32xf32>
    %49 = arith.mulf %47, %48 : vector<8x32xf32>
    %50 = arith.addf %46, %49 : vector<8x32xf32>
    %51 = vector.extract_strided_slice %43 {offsets = [0, 96], sizes = [8, 32], strides = [1, 1]} : vector<8x128xf32> to vector<8x32xf32>
    %52 = math.tanh %50 : vector<8x32xf32>
    %53 = arith.mulf %51, %52 : vector<8x32xf32>
    %cst_32 = arith.constant dense<0.000000e+00> : vector<8x128xf32>
    %54 = tpu.matmul %53, %15, %cst_32 {dimension_numbers = #tpu.dot_dimension_numbers<[1], [0], [0], [1], [0, 0, 1, 1], [], []>} : vector<8x32xf32>, vector<32x128xf32>, vector<8x128xf32> -> vector<8x128xf32>
    %cst_33 = arith.constant dense<0.000000e+00> : vector<8x128xf32>
    %55 = tpu.matmul %3, %17, %cst_33 {dimension_numbers = #tpu.dot_dimension_numbers<[1], [0], [0], [1], [0, 0, 1, 1], [], []>} : vector<8x32xf32>, vector<32x128xf32>, vector<8x128xf32> -> vector<8x128xf32>
    %56 = arith.addf %54, %55 : vector<8x128xf32>
    %57 = vector.broadcast %19 : vector<1x128xf32> to vector<8x128xf32>
    %58 = arith.addf %56, %57 : vector<8x128xf32>
    %59 = arith.negf %58 : vector<8x128xf32>
    %60 = math.exp %59 : vector<8x128xf32>
    %cst_34 = arith.constant 1.000000e+00 : f32
    %61 = vector.broadcast %cst_34 : f32 to vector<8x128xf32>
    %62 = arith.addf %61, %60 : vector<8x128xf32>
    %63 = arith.divf %61, %62 : vector<8x128xf32>
    %64 = math.tanh %58 : vector<8x128xf32>
    %65 = vector.extract_strided_slice %63 {offsets = [0, 32], sizes = [8, 32], strides = [1, 1]} : vector<8x128xf32> to vector<8x32xf32>
    %66 = arith.mulf %65, %7 : vector<8x32xf32>
    %67 = vector.extract_strided_slice %63 {offsets = [0, 0], sizes = [8, 32], strides = [1, 1]} : vector<8x128xf32> to vector<8x32xf32>
    %68 = vector.extract_strided_slice %64 {offsets = [0, 64], sizes = [8, 32], strides = [1, 1]} : vector<8x128xf32> to vector<8x32xf32>
    %69 = arith.mulf %67, %68 : vector<8x32xf32>
    %70 = arith.addf %66, %69 : vector<8x32xf32>
    %71 = vector.extract_strided_slice %63 {offsets = [0, 96], sizes = [8, 32], strides = [1, 1]} : vector<8x128xf32> to vector<8x32xf32>
    %72 = math.tanh %70 : vector<8x32xf32>
    %73 = arith.mulf %71, %72 : vector<8x32xf32>
    %cst_35 = arith.constant dense<0.000000e+00> : vector<8x13xf32>
    %74 = tpu.matmul %73, %12, %cst_35 {dimension_numbers = #tpu.dot_dimension_numbers<[1], [0], [0], [1], [0, 0, 1, 1], [], []>} : vector<8x32xf32>, vector<32x13xf32>, vector<8x13xf32> -> vector<8x13xf32>
    %75 = vector.broadcast %13 : vector<1x13xf32> to vector<8x13xf32>
    %76 = arith.addf %74, %75 : vector<8x13xf32>
    %cst_36 = arith.constant 0xFF800000 : f32
    %77 = vector.broadcast %cst_36 : f32 to vector<8x13xf32>
    %78 = arith.select %24, %76, %77 : vector<8x13xi1>, vector<8x13xf32>
    %79 = tpu.reduce_index %78 {axis = 1 : i32, kind = #tpu.reduction_kind<arg_max>} : vector<8x13xf32> -> vector<8xi32>
    %80 = vector.shape_cast %79 : vector<8xi32> to vector<8x1xi32>
    %81 = vector.broadcast %80 : vector<8x1xi32> to vector<8x13xi32>
    %82 = arith.cmpi eq, %9, %81 : vector<8x13xi32>
    %83 = arith.extui %82 : vector<8x13xi1> to vector<8x13xi32>
    %84 = arith.sitofp %83 : vector<8x13xi32> to vector<8x13xf32>
    %cst_37 = arith.constant dense<0.000000e+00> : vector<8x128xf32>
    %85 = tpu.matmul %84, %10, %cst_37 {dimension_numbers = #tpu.dot_dimension_numbers<[1], [0], [0], [1], [0, 0, 1, 1], [], []>} : vector<8x13xf32>, vector<13x128xf32>, vector<8x128xf32> -> vector<8x128xf32>
    %cst_38 = arith.constant dense<0.000000e+00> : vector<8x128xf32>
    %86 = tpu.matmul %53, %11, %cst_38 {dimension_numbers = #tpu.dot_dimension_numbers<[1], [0], [0], [1], [0, 0, 1, 1], [], []>} : vector<8x32xf32>, vector<32x128xf32>, vector<8x128xf32> -> vector<8x128xf32>
    %87 = arith.addf %85, %86 : vector<8x128xf32>
    %88 = arith.negf %87 : vector<8x128xf32>
    %89 = math.exp %88 : vector<8x128xf32>
    %cst_39 = arith.constant 1.000000e+00 : f32
    %90 = vector.broadcast %cst_39 : f32 to vector<8x128xf32>
    %91 = arith.addf %90, %89 : vector<8x128xf32>
    %92 = arith.divf %90, %91 : vector<8x128xf32>
    %93 = math.tanh %87 : vector<8x128xf32>
    %94 = vector.extract_strided_slice %92 {offsets = [0, 32], sizes = [8, 32], strides = [1, 1]} : vector<8x128xf32> to vector<8x32xf32>
    %95 = arith.mulf %94, %50 : vector<8x32xf32>
    %96 = vector.extract_strided_slice %92 {offsets = [0, 0], sizes = [8, 32], strides = [1, 1]} : vector<8x128xf32> to vector<8x32xf32>
    %97 = vector.extract_strided_slice %93 {offsets = [0, 64], sizes = [8, 32], strides = [1, 1]} : vector<8x128xf32> to vector<8x32xf32>
    %98 = arith.mulf %96, %97 : vector<8x32xf32>
    %99 = arith.addf %95, %98 : vector<8x32xf32>
    %100 = vector.extract_strided_slice %92 {offsets = [0, 96], sizes = [8, 32], strides = [1, 1]} : vector<8x128xf32> to vector<8x32xf32>
    %101 = math.tanh %99 : vector<8x32xf32>
    %102 = arith.mulf %100, %101 : vector<8x32xf32>
    %cst_40 = arith.constant dense<0.000000e+00> : vector<8x128xf32>
    %103 = tpu.matmul %102, %15, %cst_40 {dimension_numbers = #tpu.dot_dimension_numbers<[1], [0], [0], [1], [0, 0, 1, 1], [], []>} : vector<8x32xf32>, vector<32x128xf32>, vector<8x128xf32> -> vector<8x128xf32>
    %cst_41 = arith.constant dense<0.000000e+00> : vector<8x128xf32>
    %104 = tpu.matmul %73, %17, %cst_41 {dimension_numbers = #tpu.dot_dimension_numbers<[1], [0], [0], [1], [0, 0, 1, 1], [], []>} : vector<8x32xf32>, vector<32x128xf32>, vector<8x128xf32> -> vector<8x128xf32>
    %105 = arith.addf %103, %104 : vector<8x128xf32>
    %106 = vector.broadcast %19 : vector<1x128xf32> to vector<8x128xf32>
    %107 = arith.addf %105, %106 : vector<8x128xf32>
    %108 = arith.negf %107 : vector<8x128xf32>
    %109 = math.exp %108 : vector<8x128xf32>
    %cst_42 = arith.constant 1.000000e+00 : f32
    %110 = vector.broadcast %cst_42 : f32 to vector<8x128xf32>
    %111 = arith.addf %110, %109 : vector<8x128xf32>
    %112 = arith.divf %110, %111 : vector<8x128xf32>
    %113 = math.tanh %107 : vector<8x128xf32>
    %114 = vector.extract_strided_slice %112 {offsets = [0, 32], sizes = [8, 32], strides = [1, 1]} : vector<8x128xf32> to vector<8x32xf32>
    %115 = arith.mulf %114, %70 : vector<8x32xf32>
    %116 = vector.extract_strided_slice %112 {offsets = [0, 0], sizes = [8, 32], strides = [1, 1]} : vector<8x128xf32> to vector<8x32xf32>
    %117 = vector.extract_strided_slice %113 {offsets = [0, 64], sizes = [8, 32], strides = [1, 1]} : vector<8x128xf32> to vector<8x32xf32>
    %118 = arith.mulf %116, %117 : vector<8x32xf32>
    %119 = arith.addf %115, %118 : vector<8x32xf32>
    %120 = vector.extract_strided_slice %112 {offsets = [0, 96], sizes = [8, 32], strides = [1, 1]} : vector<8x128xf32> to vector<8x32xf32>
    %121 = math.tanh %119 : vector<8x32xf32>
    %122 = arith.mulf %120, %121 : vector<8x32xf32>
    %cst_43 = arith.constant dense<0.000000e+00> : vector<8x13xf32>
    %123 = tpu.matmul %122, %12, %cst_43 {dimension_numbers = #tpu.dot_dimension_numbers<[1], [0], [0], [1], [0, 0, 1, 1], [], []>} : vector<8x32xf32>, vector<32x13xf32>, vector<8x13xf32> -> vector<8x13xf32>
    %124 = vector.broadcast %13 : vector<1x13xf32> to vector<8x13xf32>
    %125 = arith.addf %123, %124 : vector<8x13xf32>
    %cst_44 = arith.constant 0xFF800000 : f32
    %126 = vector.broadcast %cst_44 : f32 to vector<8x13xf32>
    %127 = arith.select %26, %125, %126 : vector<8x13xi1>, vector<8x13xf32>
    %128 = tpu.reduce_index %127 {axis = 1 : i32, kind = #tpu.reduction_kind<arg_max>} : vector<8x13xf32> -> vector<8xi32>
    %129 = vector.shape_cast %128 : vector<8xi32> to vector<8x1xi32>
    %130 = vector.broadcast %129 : vector<8x1xi32> to vector<8x13xi32>
    %131 = arith.cmpi eq, %9, %130 : vector<8x13xi32>
    %132 = arith.extui %131 : vector<8x13xi1> to vector<8x13xi32>
    %133 = arith.sitofp %132 : vector<8x13xi32> to vector<8x13xf32>
    %cst_45 = arith.constant dense<0.000000e+00> : vector<8x128xf32>
    %134 = tpu.matmul %133, %10, %cst_45 {dimension_numbers = #tpu.dot_dimension_numbers<[1], [0], [0], [1], [0, 0, 1, 1], [], []>} : vector<8x13xf32>, vector<13x128xf32>, vector<8x128xf32> -> vector<8x128xf32>
    %cst_46 = arith.constant dense<0.000000e+00> : vector<8x128xf32>
    %135 = tpu.matmul %102, %11, %cst_46 {dimension_numbers = #tpu.dot_dimension_numbers<[1], [0], [0], [1], [0, 0, 1, 1], [], []>} : vector<8x32xf32>, vector<32x128xf32>, vector<8x128xf32> -> vector<8x128xf32>
    %136 = arith.addf %134, %135 : vector<8x128xf32>
    %137 = arith.negf %136 : vector<8x128xf32>
    %138 = math.exp %137 : vector<8x128xf32>
    %cst_47 = arith.constant 1.000000e+00 : f32
    %139 = vector.broadcast %cst_47 : f32 to vector<8x128xf32>
    %140 = arith.addf %139, %138 : vector<8x128xf32>
    %141 = arith.divf %139, %140 : vector<8x128xf32>
    %142 = math.tanh %136 : vector<8x128xf32>
    %143 = vector.extract_strided_slice %141 {offsets = [0, 32], sizes = [8, 32], strides = [1, 1]} : vector<8x128xf32> to vector<8x32xf32>
    %144 = arith.mulf %143, %99 : vector<8x32xf32>
    %145 = vector.extract_strided_slice %141 {offsets = [0, 0], sizes = [8, 32], strides = [1, 1]} : vector<8x128xf32> to vector<8x32xf32>
    %146 = vector.extract_strided_slice %142 {offsets = [0, 64], sizes = [8, 32], strides = [1, 1]} : vector<8x128xf32> to vector<8x32xf32>
    %147 = arith.mulf %145, %146 : vector<8x32xf32>
    %148 = arith.addf %144, %147 : vector<8x32xf32>
    %149 = vector.extract_strided_slice %141 {offsets = [0, 96], sizes = [8, 32], strides = [1, 1]} : vector<8x128xf32> to vector<8x32xf32>
    %150 = math.tanh %148 : vector<8x32xf32>
    %151 = arith.mulf %149, %150 : vector<8x32xf32>
    %cst_48 = arith.constant dense<0.000000e+00> : vector<8x128xf32>
    %152 = tpu.matmul %151, %15, %cst_48 {dimension_numbers = #tpu.dot_dimension_numbers<[1], [0], [0], [1], [0, 0, 1, 1], [], []>} : vector<8x32xf32>, vector<32x128xf32>, vector<8x128xf32> -> vector<8x128xf32>
    %cst_49 = arith.constant dense<0.000000e+00> : vector<8x128xf32>
    %153 = tpu.matmul %122, %17, %cst_49 {dimension_numbers = #tpu.dot_dimension_numbers<[1], [0], [0], [1], [0, 0, 1, 1], [], []>} : vector<8x32xf32>, vector<32x128xf32>, vector<8x128xf32> -> vector<8x128xf32>
    %154 = arith.addf %152, %153 : vector<8x128xf32>
    %155 = vector.broadcast %19 : vector<1x128xf32> to vector<8x128xf32>
    %156 = arith.addf %154, %155 : vector<8x128xf32>
    %157 = arith.negf %156 : vector<8x128xf32>
    %158 = math.exp %157 : vector<8x128xf32>
    %cst_50 = arith.constant 1.000000e+00 : f32
    %159 = vector.broadcast %cst_50 : f32 to vector<8x128xf32>
    %160 = arith.addf %159, %158 : vector<8x128xf32>
    %161 = arith.divf %159, %160 : vector<8x128xf32>
    %162 = math.tanh %156 : vector<8x128xf32>
    %163 = vector.extract_strided_slice %161 {offsets = [0, 32], sizes = [8, 32], strides = [1, 1]} : vector<8x128xf32> to vector<8x32xf32>
    %164 = arith.mulf %163, %119 : vector<8x32xf32>
    %165 = vector.extract_strided_slice %161 {offsets = [0, 0], sizes = [8, 32], strides = [1, 1]} : vector<8x128xf32> to vector<8x32xf32>
    %166 = vector.extract_strided_slice %162 {offsets = [0, 64], sizes = [8, 32], strides = [1, 1]} : vector<8x128xf32> to vector<8x32xf32>
    %167 = arith.mulf %165, %166 : vector<8x32xf32>
    %168 = arith.addf %164, %167 : vector<8x32xf32>
    %169 = vector.extract_strided_slice %161 {offsets = [0, 96], sizes = [8, 32], strides = [1, 1]} : vector<8x128xf32> to vector<8x32xf32>
    %170 = math.tanh %168 : vector<8x32xf32>
    %171 = arith.mulf %169, %170 : vector<8x32xf32>
    %cst_51 = arith.constant dense<0.000000e+00> : vector<8x13xf32>
    %172 = tpu.matmul %171, %12, %cst_51 {dimension_numbers = #tpu.dot_dimension_numbers<[1], [0], [0], [1], [0, 0, 1, 1], [], []>} : vector<8x32xf32>, vector<32x13xf32>, vector<8x13xf32> -> vector<8x13xf32>
    %173 = vector.broadcast %13 : vector<1x13xf32> to vector<8x13xf32>
    %174 = arith.addf %172, %173 : vector<8x13xf32>
    %cst_52 = arith.constant 0xFF800000 : f32
    %175 = vector.broadcast %cst_52 : f32 to vector<8x13xf32>
    %176 = arith.select %24, %174, %175 : vector<8x13xi1>, vector<8x13xf32>
    %177 = tpu.reduce_index %176 {axis = 1 : i32, kind = #tpu.reduction_kind<arg_max>} : vector<8x13xf32> -> vector<8xi32>
    %178 = vector.shape_cast %177 : vector<8xi32> to vector<8x1xi32>
    %179 = vector.broadcast %178 : vector<8x1xi32> to vector<8x13xi32>
    %180 = arith.cmpi eq, %9, %179 : vector<8x13xi32>
    %181 = arith.extui %180 : vector<8x13xi1> to vector<8x13xi32>
    %182 = arith.sitofp %181 : vector<8x13xi32> to vector<8x13xf32>
    %cst_53 = arith.constant dense<0.000000e+00> : vector<8x128xf32>
    %183 = tpu.matmul %182, %10, %cst_53 {dimension_numbers = #tpu.dot_dimension_numbers<[1], [0], [0], [1], [0, 0, 1, 1], [], []>} : vector<8x13xf32>, vector<13x128xf32>, vector<8x128xf32> -> vector<8x128xf32>
    %cst_54 = arith.constant dense<0.000000e+00> : vector<8x128xf32>
    %184 = tpu.matmul %151, %11, %cst_54 {dimension_numbers = #tpu.dot_dimension_numbers<[1], [0], [0], [1], [0, 0, 1, 1], [], []>} : vector<8x32xf32>, vector<32x128xf32>, vector<8x128xf32> -> vector<8x128xf32>
    %185 = arith.addf %183, %184 : vector<8x128xf32>
    %186 = arith.negf %185 : vector<8x128xf32>
    %187 = math.exp %186 : vector<8x128xf32>
    %cst_55 = arith.constant 1.000000e+00 : f32
    %188 = vector.broadcast %cst_55 : f32 to vector<8x128xf32>
    %189 = arith.addf %188, %187 : vector<8x128xf32>
    %190 = arith.divf %188, %189 : vector<8x128xf32>
    %191 = math.tanh %185 : vector<8x128xf32>
    %192 = vector.extract_strided_slice %190 {offsets = [0, 32], sizes = [8, 32], strides = [1, 1]} : vector<8x128xf32> to vector<8x32xf32>
    %193 = arith.mulf %192, %148 : vector<8x32xf32>
    %194 = vector.extract_strided_slice %190 {offsets = [0, 0], sizes = [8, 32], strides = [1, 1]} : vector<8x128xf32> to vector<8x32xf32>
    %195 = vector.extract_strided_slice %191 {offsets = [0, 64], sizes = [8, 32], strides = [1, 1]} : vector<8x128xf32> to vector<8x32xf32>
    %196 = arith.mulf %194, %195 : vector<8x32xf32>
    %197 = arith.addf %193, %196 : vector<8x32xf32>
    %198 = vector.extract_strided_slice %190 {offsets = [0, 96], sizes = [8, 32], strides = [1, 1]} : vector<8x128xf32> to vector<8x32xf32>
    %199 = math.tanh %197 : vector<8x32xf32>
    %200 = arith.mulf %198, %199 : vector<8x32xf32>
    %cst_56 = arith.constant dense<0.000000e+00> : vector<8x128xf32>
    %201 = tpu.matmul %200, %15, %cst_56 {dimension_numbers = #tpu.dot_dimension_numbers<[1], [0], [0], [1], [0, 0, 1, 1], [], []>} : vector<8x32xf32>, vector<32x128xf32>, vector<8x128xf32> -> vector<8x128xf32>
    %cst_57 = arith.constant dense<0.000000e+00> : vector<8x128xf32>
    %202 = tpu.matmul %171, %17, %cst_57 {dimension_numbers = #tpu.dot_dimension_numbers<[1], [0], [0], [1], [0, 0, 1, 1], [], []>} : vector<8x32xf32>, vector<32x128xf32>, vector<8x128xf32> -> vector<8x128xf32>
    %203 = arith.addf %201, %202 : vector<8x128xf32>
    %204 = vector.broadcast %19 : vector<1x128xf32> to vector<8x128xf32>
    %205 = arith.addf %203, %204 : vector<8x128xf32>
    %206 = arith.negf %205 : vector<8x128xf32>
    %207 = math.exp %206 : vector<8x128xf32>
    %cst_58 = arith.constant 1.000000e+00 : f32
    %208 = vector.broadcast %cst_58 : f32 to vector<8x128xf32>
    %209 = arith.addf %208, %207 : vector<8x128xf32>
    %210 = arith.divf %208, %209 : vector<8x128xf32>
    %211 = math.tanh %205 : vector<8x128xf32>
    %212 = vector.extract_strided_slice %210 {offsets = [0, 32], sizes = [8, 32], strides = [1, 1]} : vector<8x128xf32> to vector<8x32xf32>
    %213 = arith.mulf %212, %168 : vector<8x32xf32>
    %214 = vector.extract_strided_slice %210 {offsets = [0, 0], sizes = [8, 32], strides = [1, 1]} : vector<8x128xf32> to vector<8x32xf32>
    %215 = vector.extract_strided_slice %211 {offsets = [0, 64], sizes = [8, 32], strides = [1, 1]} : vector<8x128xf32> to vector<8x32xf32>
    %216 = arith.mulf %214, %215 : vector<8x32xf32>
    %217 = arith.addf %213, %216 : vector<8x32xf32>
    %218 = vector.extract_strided_slice %210 {offsets = [0, 96], sizes = [8, 32], strides = [1, 1]} : vector<8x128xf32> to vector<8x32xf32>
    %219 = math.tanh %217 : vector<8x32xf32>
    %220 = arith.mulf %218, %219 : vector<8x32xf32>
    %cst_59 = arith.constant dense<0.000000e+00> : vector<8x13xf32>
    %221 = tpu.matmul %220, %12, %cst_59 {dimension_numbers = #tpu.dot_dimension_numbers<[1], [0], [0], [1], [0, 0, 1, 1], [], []>} : vector<8x32xf32>, vector<32x13xf32>, vector<8x13xf32> -> vector<8x13xf32>
    %222 = vector.broadcast %13 : vector<1x13xf32> to vector<8x13xf32>
    %223 = arith.addf %221, %222 : vector<8x13xf32>
    %cst_60 = arith.constant 0xFF800000 : f32
    %224 = vector.broadcast %cst_60 : f32 to vector<8x13xf32>
    %225 = arith.select %26, %223, %224 : vector<8x13xi1>, vector<8x13xf32>
    %226 = tpu.reduce_index %225 {axis = 1 : i32, kind = #tpu.reduction_kind<arg_max>} : vector<8x13xf32> -> vector<8xi32>
    %227 = vector.shape_cast %226 : vector<8xi32> to vector<8x1xi32>
    %228 = vector.broadcast %227 : vector<8x1xi32> to vector<8x13xi32>
    %229 = arith.cmpi eq, %9, %228 : vector<8x13xi32>
    %230 = arith.extui %229 : vector<8x13xi1> to vector<8x13xi32>
    %231 = arith.sitofp %230 : vector<8x13xi32> to vector<8x13xf32>
    %cst_61 = arith.constant dense<0.000000e+00> : vector<8x128xf32>
    %232 = tpu.matmul %231, %10, %cst_61 {dimension_numbers = #tpu.dot_dimension_numbers<[1], [0], [0], [1], [0, 0, 1, 1], [], []>} : vector<8x13xf32>, vector<13x128xf32>, vector<8x128xf32> -> vector<8x128xf32>
    %cst_62 = arith.constant dense<0.000000e+00> : vector<8x128xf32>
    %233 = tpu.matmul %200, %11, %cst_62 {dimension_numbers = #tpu.dot_dimension_numbers<[1], [0], [0], [1], [0, 0, 1, 1], [], []>} : vector<8x32xf32>, vector<32x128xf32>, vector<8x128xf32> -> vector<8x128xf32>
    %234 = arith.addf %232, %233 : vector<8x128xf32>
    %235 = arith.negf %234 : vector<8x128xf32>
    %236 = math.exp %235 : vector<8x128xf32>
    %cst_63 = arith.constant 1.000000e+00 : f32
    %237 = vector.broadcast %cst_63 : f32 to vector<8x128xf32>
    %238 = arith.addf %237, %236 : vector<8x128xf32>
    %239 = arith.divf %237, %238 : vector<8x128xf32>
    %240 = math.tanh %234 : vector<8x128xf32>
    %241 = vector.extract_strided_slice %239 {offsets = [0, 32], sizes = [8, 32], strides = [1, 1]} : vector<8x128xf32> to vector<8x32xf32>
    %242 = arith.mulf %241, %197 : vector<8x32xf32>
    %243 = vector.extract_strided_slice %239 {offsets = [0, 0], sizes = [8, 32], strides = [1, 1]} : vector<8x128xf32> to vector<8x32xf32>
    %244 = vector.extract_strided_slice %240 {offsets = [0, 64], sizes = [8, 32], strides = [1, 1]} : vector<8x128xf32> to vector<8x32xf32>
    %245 = arith.mulf %243, %244 : vector<8x32xf32>
    %246 = arith.addf %242, %245 : vector<8x32xf32>
    %247 = vector.extract_strided_slice %239 {offsets = [0, 96], sizes = [8, 32], strides = [1, 1]} : vector<8x128xf32> to vector<8x32xf32>
    %248 = math.tanh %246 : vector<8x32xf32>
    %249 = arith.mulf %247, %248 : vector<8x32xf32>
    %cst_64 = arith.constant dense<0.000000e+00> : vector<8x128xf32>
    %250 = tpu.matmul %249, %15, %cst_64 {dimension_numbers = #tpu.dot_dimension_numbers<[1], [0], [0], [1], [0, 0, 1, 1], [], []>} : vector<8x32xf32>, vector<32x128xf32>, vector<8x128xf32> -> vector<8x128xf32>
    %cst_65 = arith.constant dense<0.000000e+00> : vector<8x128xf32>
    %251 = tpu.matmul %220, %17, %cst_65 {dimension_numbers = #tpu.dot_dimension_numbers<[1], [0], [0], [1], [0, 0, 1, 1], [], []>} : vector<8x32xf32>, vector<32x128xf32>, vector<8x128xf32> -> vector<8x128xf32>
    %252 = arith.addf %250, %251 : vector<8x128xf32>
    %253 = vector.broadcast %19 : vector<1x128xf32> to vector<8x128xf32>
    %254 = arith.addf %252, %253 : vector<8x128xf32>
    %255 = arith.negf %254 : vector<8x128xf32>
    %256 = math.exp %255 : vector<8x128xf32>
    %cst_66 = arith.constant 1.000000e+00 : f32
    %257 = vector.broadcast %cst_66 : f32 to vector<8x128xf32>
    %258 = arith.addf %257, %256 : vector<8x128xf32>
    %259 = arith.divf %257, %258 : vector<8x128xf32>
    %260 = math.tanh %254 : vector<8x128xf32>
    %261 = vector.extract_strided_slice %259 {offsets = [0, 32], sizes = [8, 32], strides = [1, 1]} : vector<8x128xf32> to vector<8x32xf32>
    %262 = arith.mulf %261, %217 : vector<8x32xf32>
    %263 = vector.extract_strided_slice %259 {offsets = [0, 0], sizes = [8, 32], strides = [1, 1]} : vector<8x128xf32> to vector<8x32xf32>
    %264 = vector.extract_strided_slice %260 {offsets = [0, 64], sizes = [8, 32], strides = [1, 1]} : vector<8x128xf32> to vector<8x32xf32>
    %265 = arith.mulf %263, %264 : vector<8x32xf32>
    %266 = arith.addf %262, %265 : vector<8x32xf32>
    %267 = vector.extract_strided_slice %259 {offsets = [0, 96], sizes = [8, 32], strides = [1, 1]} : vector<8x128xf32> to vector<8x32xf32>
    %268 = math.tanh %266 : vector<8x32xf32>
    %269 = arith.mulf %267, %268 : vector<8x32xf32>
    %cst_67 = arith.constant dense<0.000000e+00> : vector<8x13xf32>
    %270 = tpu.matmul %269, %12, %cst_67 {dimension_numbers = #tpu.dot_dimension_numbers<[1], [0], [0], [1], [0, 0, 1, 1], [], []>} : vector<8x32xf32>, vector<32x13xf32>, vector<8x13xf32> -> vector<8x13xf32>
    %271 = vector.broadcast %13 : vector<1x13xf32> to vector<8x13xf32>
    %272 = arith.addf %270, %271 : vector<8x13xf32>
    %cst_68 = arith.constant 0xFF800000 : f32
    %273 = vector.broadcast %cst_68 : f32 to vector<8x13xf32>
    %274 = arith.select %31, %272, %273 : vector<8x13xi1>, vector<8x13xf32>
    %275 = tpu.reduce_index %274 {axis = 1 : i32, kind = #tpu.reduction_kind<arg_max>} : vector<8x13xf32> -> vector<8xi32>
    %276 = vector.shape_cast %275 : vector<8xi32> to vector<8x1xi32>
    %277 = vector.broadcast %276 : vector<8x1xi32> to vector<8x13xi32>
    %278 = arith.cmpi eq, %9, %277 : vector<8x13xi32>
    %279 = arith.extui %278 : vector<8x13xi1> to vector<8x13xi32>
    %280 = arith.sitofp %279 : vector<8x13xi32> to vector<8x13xf32>
    %cst_69 = arith.constant dense<0.000000e+00> : vector<8x128xf32>
    %281 = tpu.matmul %280, %10, %cst_69 {dimension_numbers = #tpu.dot_dimension_numbers<[1], [0], [0], [1], [0, 0, 1, 1], [], []>} : vector<8x13xf32>, vector<13x128xf32>, vector<8x128xf32> -> vector<8x128xf32>
    %cst_70 = arith.constant dense<0.000000e+00> : vector<8x128xf32>
    %282 = tpu.matmul %249, %11, %cst_70 {dimension_numbers = #tpu.dot_dimension_numbers<[1], [0], [0], [1], [0, 0, 1, 1], [], []>} : vector<8x32xf32>, vector<32x128xf32>, vector<8x128xf32> -> vector<8x128xf32>
    %283 = arith.addf %281, %282 : vector<8x128xf32>
    %284 = arith.negf %283 : vector<8x128xf32>
    %285 = math.exp %284 : vector<8x128xf32>
    %cst_71 = arith.constant 1.000000e+00 : f32
    %286 = vector.broadcast %cst_71 : f32 to vector<8x128xf32>
    %287 = arith.addf %286, %285 : vector<8x128xf32>
    %288 = arith.divf %286, %287 : vector<8x128xf32>
    %289 = math.tanh %283 : vector<8x128xf32>
    %290 = vector.extract_strided_slice %288 {offsets = [0, 32], sizes = [8, 32], strides = [1, 1]} : vector<8x128xf32> to vector<8x32xf32>
    %291 = arith.mulf %290, %246 : vector<8x32xf32>
    %292 = vector.extract_strided_slice %288 {offsets = [0, 0], sizes = [8, 32], strides = [1, 1]} : vector<8x128xf32> to vector<8x32xf32>
    %293 = vector.extract_strided_slice %289 {offsets = [0, 64], sizes = [8, 32], strides = [1, 1]} : vector<8x128xf32> to vector<8x32xf32>
    %294 = arith.mulf %292, %293 : vector<8x32xf32>
    %295 = arith.addf %291, %294 : vector<8x32xf32>
    %296 = vector.extract_strided_slice %288 {offsets = [0, 96], sizes = [8, 32], strides = [1, 1]} : vector<8x128xf32> to vector<8x32xf32>
    %297 = math.tanh %295 : vector<8x32xf32>
    %298 = arith.mulf %296, %297 : vector<8x32xf32>
    %cst_72 = arith.constant dense<0.000000e+00> : vector<8x128xf32>
    %299 = tpu.matmul %298, %15, %cst_72 {dimension_numbers = #tpu.dot_dimension_numbers<[1], [0], [0], [1], [0, 0, 1, 1], [], []>} : vector<8x32xf32>, vector<32x128xf32>, vector<8x128xf32> -> vector<8x128xf32>
    %cst_73 = arith.constant dense<0.000000e+00> : vector<8x128xf32>
    %300 = tpu.matmul %269, %17, %cst_73 {dimension_numbers = #tpu.dot_dimension_numbers<[1], [0], [0], [1], [0, 0, 1, 1], [], []>} : vector<8x32xf32>, vector<32x128xf32>, vector<8x128xf32> -> vector<8x128xf32>
    %301 = arith.addf %299, %300 : vector<8x128xf32>
    %302 = vector.broadcast %19 : vector<1x128xf32> to vector<8x128xf32>
    %303 = arith.addf %301, %302 : vector<8x128xf32>
    %304 = arith.negf %303 : vector<8x128xf32>
    %305 = math.exp %304 : vector<8x128xf32>
    %cst_74 = arith.constant 1.000000e+00 : f32
    %306 = vector.broadcast %cst_74 : f32 to vector<8x128xf32>
    %307 = arith.addf %306, %305 : vector<8x128xf32>
    %308 = arith.divf %306, %307 : vector<8x128xf32>
    %309 = math.tanh %303 : vector<8x128xf32>
    %310 = vector.extract_strided_slice %308 {offsets = [0, 32], sizes = [8, 32], strides = [1, 1]} : vector<8x128xf32> to vector<8x32xf32>
    %311 = arith.mulf %310, %266 : vector<8x32xf32>
    %312 = vector.extract_strided_slice %308 {offsets = [0, 0], sizes = [8, 32], strides = [1, 1]} : vector<8x128xf32> to vector<8x32xf32>
    %313 = vector.extract_strided_slice %309 {offsets = [0, 64], sizes = [8, 32], strides = [1, 1]} : vector<8x128xf32> to vector<8x32xf32>
    %314 = arith.mulf %312, %313 : vector<8x32xf32>
    %315 = arith.addf %311, %314 : vector<8x32xf32>
    %316 = vector.extract_strided_slice %308 {offsets = [0, 96], sizes = [8, 32], strides = [1, 1]} : vector<8x128xf32> to vector<8x32xf32>
    %317 = math.tanh %315 : vector<8x32xf32>
    %318 = arith.mulf %316, %317 : vector<8x32xf32>
    %cst_75 = arith.constant dense<0.000000e+00> : vector<8x13xf32>
    %319 = tpu.matmul %318, %12, %cst_75 {dimension_numbers = #tpu.dot_dimension_numbers<[1], [0], [0], [1], [0, 0, 1, 1], [], []>} : vector<8x32xf32>, vector<32x13xf32>, vector<8x13xf32> -> vector<8x13xf32>
    %320 = vector.broadcast %13 : vector<1x13xf32> to vector<8x13xf32>
    %321 = arith.addf %319, %320 : vector<8x13xf32>
    %cst_76 = arith.constant 0xFF800000 : f32
    %322 = vector.broadcast %cst_76 : f32 to vector<8x13xf32>
    %323 = arith.select %26, %321, %322 : vector<8x13xi1>, vector<8x13xf32>
    %324 = tpu.reduce_index %323 {axis = 1 : i32, kind = #tpu.reduction_kind<arg_max>} : vector<8x13xf32> -> vector<8xi32>
    %325 = vector.shape_cast %324 : vector<8xi32> to vector<8x1xi32>
    %326 = vector.broadcast %325 : vector<8x1xi32> to vector<8x13xi32>
    %327 = arith.cmpi eq, %9, %326 : vector<8x13xi32>
    %328 = arith.extui %327 : vector<8x13xi1> to vector<8x13xi32>
    %329 = arith.sitofp %328 : vector<8x13xi32> to vector<8x13xf32>
    %cst_77 = arith.constant dense<0.000000e+00> : vector<8x128xf32>
    %330 = tpu.matmul %329, %10, %cst_77 {dimension_numbers = #tpu.dot_dimension_numbers<[1], [0], [0], [1], [0, 0, 1, 1], [], []>} : vector<8x13xf32>, vector<13x128xf32>, vector<8x128xf32> -> vector<8x128xf32>
    %cst_78 = arith.constant dense<0.000000e+00> : vector<8x128xf32>
    %331 = tpu.matmul %298, %11, %cst_78 {dimension_numbers = #tpu.dot_dimension_numbers<[1], [0], [0], [1], [0, 0, 1, 1], [], []>} : vector<8x32xf32>, vector<32x128xf32>, vector<8x128xf32> -> vector<8x128xf32>
    %332 = arith.addf %330, %331 : vector<8x128xf32>
    %333 = arith.negf %332 : vector<8x128xf32>
    %334 = math.exp %333 : vector<8x128xf32>
    %cst_79 = arith.constant 1.000000e+00 : f32
    %335 = vector.broadcast %cst_79 : f32 to vector<8x128xf32>
    %336 = arith.addf %335, %334 : vector<8x128xf32>
    %337 = arith.divf %335, %336 : vector<8x128xf32>
    %338 = math.tanh %332 : vector<8x128xf32>
    %339 = vector.extract_strided_slice %337 {offsets = [0, 32], sizes = [8, 32], strides = [1, 1]} : vector<8x128xf32> to vector<8x32xf32>
    %340 = arith.mulf %339, %295 : vector<8x32xf32>
    %341 = vector.extract_strided_slice %337 {offsets = [0, 0], sizes = [8, 32], strides = [1, 1]} : vector<8x128xf32> to vector<8x32xf32>
    %342 = vector.extract_strided_slice %338 {offsets = [0, 64], sizes = [8, 32], strides = [1, 1]} : vector<8x128xf32> to vector<8x32xf32>
    %343 = arith.mulf %341, %342 : vector<8x32xf32>
    %344 = arith.addf %340, %343 : vector<8x32xf32>
    %345 = vector.extract_strided_slice %337 {offsets = [0, 96], sizes = [8, 32], strides = [1, 1]} : vector<8x128xf32> to vector<8x32xf32>
    %346 = math.tanh %344 : vector<8x32xf32>
    %347 = arith.mulf %345, %346 : vector<8x32xf32>
    %cst_80 = arith.constant dense<0.000000e+00> : vector<8x128xf32>
    %348 = tpu.matmul %347, %15, %cst_80 {dimension_numbers = #tpu.dot_dimension_numbers<[1], [0], [0], [1], [0, 0, 1, 1], [], []>} : vector<8x32xf32>, vector<32x128xf32>, vector<8x128xf32> -> vector<8x128xf32>
    %cst_81 = arith.constant dense<0.000000e+00> : vector<8x128xf32>
    %349 = tpu.matmul %318, %17, %cst_81 {dimension_numbers = #tpu.dot_dimension_numbers<[1], [0], [0], [1], [0, 0, 1, 1], [], []>} : vector<8x32xf32>, vector<32x128xf32>, vector<8x128xf32> -> vector<8x128xf32>
    %350 = arith.addf %348, %349 : vector<8x128xf32>
    %351 = vector.broadcast %19 : vector<1x128xf32> to vector<8x128xf32>
    %352 = arith.addf %350, %351 : vector<8x128xf32>
    %353 = arith.negf %352 : vector<8x128xf32>
    %354 = math.exp %353 : vector<8x128xf32>
    %cst_82 = arith.constant 1.000000e+00 : f32
    %355 = vector.broadcast %cst_82 : f32 to vector<8x128xf32>
    %356 = arith.addf %355, %354 : vector<8x128xf32>
    %357 = arith.divf %355, %356 : vector<8x128xf32>
    %358 = math.tanh %352 : vector<8x128xf32>
    %359 = vector.extract_strided_slice %357 {offsets = [0, 32], sizes = [8, 32], strides = [1, 1]} : vector<8x128xf32> to vector<8x32xf32>
    %360 = arith.mulf %359, %315 : vector<8x32xf32>
    %361 = vector.extract_strided_slice %357 {offsets = [0, 0], sizes = [8, 32], strides = [1, 1]} : vector<8x128xf32> to vector<8x32xf32>
    %362 = vector.extract_strided_slice %358 {offsets = [0, 64], sizes = [8, 32], strides = [1, 1]} : vector<8x128xf32> to vector<8x32xf32>
    %363 = arith.mulf %361, %362 : vector<8x32xf32>
    %364 = arith.addf %360, %363 : vector<8x32xf32>
    %365 = vector.extract_strided_slice %357 {offsets = [0, 96], sizes = [8, 32], strides = [1, 1]} : vector<8x128xf32> to vector<8x32xf32>
    %366 = math.tanh %364 : vector<8x32xf32>
    %367 = arith.mulf %365, %366 : vector<8x32xf32>
    %cst_83 = arith.constant dense<0.000000e+00> : vector<8x13xf32>
    %368 = tpu.matmul %367, %12, %cst_83 {dimension_numbers = #tpu.dot_dimension_numbers<[1], [0], [0], [1], [0, 0, 1, 1], [], []>} : vector<8x32xf32>, vector<32x13xf32>, vector<8x13xf32> -> vector<8x13xf32>
    %369 = vector.broadcast %13 : vector<1x13xf32> to vector<8x13xf32>
    %370 = arith.addf %368, %369 : vector<8x13xf32>
    %cst_84 = arith.constant 0xFF800000 : f32
    %371 = vector.broadcast %cst_84 : f32 to vector<8x13xf32>
    %372 = arith.select %31, %370, %371 : vector<8x13xi1>, vector<8x13xf32>
    %373 = tpu.reduce_index %372 {axis = 1 : i32, kind = #tpu.reduction_kind<arg_max>} : vector<8x13xf32> -> vector<8xi32>
    %374 = vector.shape_cast %373 : vector<8xi32> to vector<8x1xi32>
    %375 = vector.broadcast %374 : vector<8x1xi32> to vector<8x13xi32>
    %376 = arith.cmpi eq, %9, %375 : vector<8x13xi32>
    %377 = arith.extui %376 : vector<8x13xi1> to vector<8x13xi32>
    %378 = arith.sitofp %377 : vector<8x13xi32> to vector<8x13xf32>
    %cst_85 = arith.constant dense<0.000000e+00> : vector<8x128xf32>
    %379 = tpu.matmul %378, %10, %cst_85 {dimension_numbers = #tpu.dot_dimension_numbers<[1], [0], [0], [1], [0, 0, 1, 1], [], []>} : vector<8x13xf32>, vector<13x128xf32>, vector<8x128xf32> -> vector<8x128xf32>
    %cst_86 = arith.constant dense<0.000000e+00> : vector<8x128xf32>
    %380 = tpu.matmul %347, %11, %cst_86 {dimension_numbers = #tpu.dot_dimension_numbers<[1], [0], [0], [1], [0, 0, 1, 1], [], []>} : vector<8x32xf32>, vector<32x128xf32>, vector<8x128xf32> -> vector<8x128xf32>
    %381 = arith.addf %379, %380 : vector<8x128xf32>
    %382 = arith.negf %381 : vector<8x128xf32>
    %383 = math.exp %382 : vector<8x128xf32>
    %cst_87 = arith.constant 1.000000e+00 : f32
    %384 = vector.broadcast %cst_87 : f32 to vector<8x128xf32>
    %385 = arith.addf %384, %383 : vector<8x128xf32>
    %386 = arith.divf %384, %385 : vector<8x128xf32>
    %387 = math.tanh %381 : vector<8x128xf32>
    %388 = vector.extract_strided_slice %386 {offsets = [0, 32], sizes = [8, 32], strides = [1, 1]} : vector<8x128xf32> to vector<8x32xf32>
    %389 = arith.mulf %388, %344 : vector<8x32xf32>
    %390 = vector.extract_strided_slice %386 {offsets = [0, 0], sizes = [8, 32], strides = [1, 1]} : vector<8x128xf32> to vector<8x32xf32>
    %391 = vector.extract_strided_slice %387 {offsets = [0, 64], sizes = [8, 32], strides = [1, 1]} : vector<8x128xf32> to vector<8x32xf32>
    %392 = arith.mulf %390, %391 : vector<8x32xf32>
    %393 = arith.addf %389, %392 : vector<8x32xf32>
    %394 = vector.extract_strided_slice %386 {offsets = [0, 96], sizes = [8, 32], strides = [1, 1]} : vector<8x128xf32> to vector<8x32xf32>
    %395 = math.tanh %393 : vector<8x32xf32>
    %396 = arith.mulf %394, %395 : vector<8x32xf32>
    %cst_88 = arith.constant dense<0.000000e+00> : vector<8x128xf32>
    %397 = tpu.matmul %396, %15, %cst_88 {dimension_numbers = #tpu.dot_dimension_numbers<[1], [0], [0], [1], [0, 0, 1, 1], [], []>} : vector<8x32xf32>, vector<32x128xf32>, vector<8x128xf32> -> vector<8x128xf32>
    %cst_89 = arith.constant dense<0.000000e+00> : vector<8x128xf32>
    %398 = tpu.matmul %367, %17, %cst_89 {dimension_numbers = #tpu.dot_dimension_numbers<[1], [0], [0], [1], [0, 0, 1, 1], [], []>} : vector<8x32xf32>, vector<32x128xf32>, vector<8x128xf32> -> vector<8x128xf32>
    %399 = arith.addf %397, %398 : vector<8x128xf32>
    %400 = vector.broadcast %19 : vector<1x128xf32> to vector<8x128xf32>
    %401 = arith.addf %399, %400 : vector<8x128xf32>
    %402 = arith.negf %401 : vector<8x128xf32>
    %403 = math.exp %402 : vector<8x128xf32>
    %cst_90 = arith.constant 1.000000e+00 : f32
    %404 = vector.broadcast %cst_90 : f32 to vector<8x128xf32>
    %405 = arith.addf %404, %403 : vector<8x128xf32>
    %406 = arith.divf %404, %405 : vector<8x128xf32>
    %407 = math.tanh %401 : vector<8x128xf32>
    %408 = vector.extract_strided_slice %406 {offsets = [0, 32], sizes = [8, 32], strides = [1, 1]} : vector<8x128xf32> to vector<8x32xf32>
    %409 = arith.mulf %408, %364 : vector<8x32xf32>
    %410 = vector.extract_strided_slice %406 {offsets = [0, 0], sizes = [8, 32], strides = [1, 1]} : vector<8x128xf32> to vector<8x32xf32>
    %411 = vector.extract_strided_slice %407 {offsets = [0, 64], sizes = [8, 32], strides = [1, 1]} : vector<8x128xf32> to vector<8x32xf32>
    %412 = arith.mulf %410, %411 : vector<8x32xf32>
    %413 = arith.addf %409, %412 : vector<8x32xf32>
    %414 = vector.extract_strided_slice %406 {offsets = [0, 96], sizes = [8, 32], strides = [1, 1]} : vector<8x128xf32> to vector<8x32xf32>
    %415 = math.tanh %413 : vector<8x32xf32>
    %416 = arith.mulf %414, %415 : vector<8x32xf32>
    %cst_91 = arith.constant dense<0.000000e+00> : vector<8x13xf32>
    %417 = tpu.matmul %416, %12, %cst_91 {dimension_numbers = #tpu.dot_dimension_numbers<[1], [0], [0], [1], [0, 0, 1, 1], [], []>} : vector<8x32xf32>, vector<32x13xf32>, vector<8x13xf32> -> vector<8x13xf32>
    %418 = vector.broadcast %13 : vector<1x13xf32> to vector<8x13xf32>
    %419 = arith.addf %417, %418 : vector<8x13xf32>
    %cst_92 = arith.constant 0xFF800000 : f32
    %420 = vector.broadcast %cst_92 : f32 to vector<8x13xf32>
    %421 = arith.select %26, %419, %420 : vector<8x13xi1>, vector<8x13xf32>
    %422 = tpu.reduce_index %421 {axis = 1 : i32, kind = #tpu.reduction_kind<arg_max>} : vector<8x13xf32> -> vector<8xi32>
    %423 = vector.shape_cast %422 : vector<8xi32> to vector<8x1xi32>
    %424 = tpu.concatenate %80, %129, %178, %227, %276, %325, %374, %423 in 1 : vector<8x1xi32>, vector<8x1xi32>, vector<8x1xi32>, vector<8x1xi32>, vector<8x1xi32>, vector<8x1xi32>, vector<8x1xi32>, vector<8x1xi32> -> vector<8x8xi32>
    %c0_93 = arith.constant 0 : index
    %c0_94 = arith.constant 0 : index
    %425 = vector.load %arg10[%c0_93, %c0_94] : memref<8x8xi32, #tpu.memory_space<vmem>>, vector<8x8xi32>
    tpu.vector_store %arg10[%c0_93, %c0_94], %424 {strides = array<i32>} : memref<8x8xi32, #tpu.memory_space<vmem>>, vector<8x8xi32>,
    %cst_95 = arith.constant dense<0xFF800000> : vector<8xf32>
    %426 = vector.multi_reduction <maximumf>, %419, %cst_95 [1] : vector<8x13xf32> to vector<8xf32>
    %427 = vector.shape_cast %426 : vector<8xf32> to vector<8x1xf32>
    %428 = vector.broadcast %427 : vector<8x1xf32> to vector<8x13xf32>
    %429 = arith.subf %419, %428 : vector<8x13xf32>
    %430 = math.exp %429 : vector<8x13xf32>
    %cst_96 = arith.constant dense<0.000000e+00> : vector<8xf32>
    %431 = vector.multi_reduction <add>, %430, %cst_96 [1] : vector<8x13xf32> to vector<8xf32>
    %432 = vector.shape_cast %431 : vector<8xf32> to vector<8x1xf32>
    %433 = math.log %432 : vector<8x1xf32>
    %434 = arith.addf %427, %433 : vector<8x1xf32>
    %435 = vector.broadcast %434 : vector<8x1xf32> to vector<8x13xf32>
    %436 = arith.subf %419, %435 : vector<8x13xf32>
    %c0_97 = arith.constant 0 : index
    %c0_98 = arith.constant 0 : index
    %437 = vector.load %arg11[%c0_97, %c0_98] : memref<8x13xf32, #tpu.memory_space<vmem>>, vector<8x13xf32>
    tpu.vector_store %arg11[%c0_97, %c0_98], %436 {strides = array<i32>} : memref<8x13xf32, #tpu.memory_space<vmem>>, vector<8x13xf32>,
    %c0_99 = arith.constant 0 : index
    %c0_100 = arith.constant 0 : index
    %c0_101 = arith.constant 0 : index
    %438 = vector.load %arg12[%c0_99, %c0_100, %c0_101] : memref<2x8x32xf32, #tpu.memory_space<vmem>>, vector<1x8x32xf32>
    %439 = vector.shape_cast %438 : vector<1x8x32xf32> to vector<8x32xf32>
    %440 = vector.shape_cast %396 : vector<8x32xf32> to vector<1x8x32xf32>
    tpu.vector_store %arg12[%c0_99, %c0_100, %c0_101], %440 {strides = array<i32>} : memref<2x8x32xf32, #tpu.memory_space<vmem>>, vector<1x8x32xf32>,
    %c0_102 = arith.constant 0 : index
    %c0_103 = arith.constant 0 : index
    %c0_104 = arith.constant 0 : index
    %441 = vector.load %arg13[%c0_102, %c0_103, %c0_104] : memref<2x8x32xf32, #tpu.memory_space<vmem>>, vector<1x8x32xf32>
    %442 = vector.shape_cast %441 : vector<1x8x32xf32> to vector<8x32xf32>
    %443 = vector.shape_cast %393 : vector<8x32xf32> to vector<1x8x32xf32>
    tpu.vector_store %arg13[%c0_102, %c0_103, %c0_104], %443 {strides = array<i32>} : memref<2x8x32xf32, #tpu.memory_space<vmem>>, vector<1x8x32xf32>,
    %c1_105 = arith.constant 1 : index
    %c0_106 = arith.constant 0 : index
    %c0_107 = arith.constant 0 : index
    %444 = vector.load %arg12[%c1_105, %c0_106, %c0_107] : memref<2x8x32xf32, #tpu.memory_space<vmem>>, vector<1x8x32xf32>
    %445 = vector.shape_cast %444 : vector<1x8x32xf32> to vector<8x32xf32>
    %446 = vector.shape_cast %416 : vector<8x32xf32> to vector<1x8x32xf32>
    tpu.vector_store %arg12[%c1_105, %c0_106, %c0_107], %446 {strides = array<i32>} : memref<2x8x32xf32, #tpu.memory_space<vmem>>, vector<1x8x32xf32>,
    %c1_108 = arith.constant 1 : index
    %c0_109 = arith.constant 0 : index
    %c0_110 = arith.constant 0 : index
    %447 = vector.load %arg13[%c1_108, %c0_109, %c0_110] : memref<2x8x32xf32, #tpu.memory_space<vmem>>, vector<1x8x32xf32>
    %448 = vector.shape_cast %447 : vector<1x8x32xf32> to vector<8x32xf32>
    %449 = vector.shape_cast %413 : vector<8x32xf32> to vector<1x8x32xf32>
    tpu.vector_store %arg13[%c1_108, %c0_109, %c0_110], %449 {strides = array<i32>} : memref<2x8x32xf32, #tpu.memory_space<vmem>>, vector<1x8x32xf32>,
    return
  }
}

</mosaic_0001>

<llo_original>
// kernel: tpu_custom_call.1
$region0: #{tpu_custom_call.1}
  #allocation0 [shape = 'u32[]', space=smem, size = 0x4, offset = 0x4, fixed_abs, tag = 'smem constant byte address 0x4 - core index']
  #allocation1 [shape = 'u32[144,128]{1,0:T(1,128)}', space=vmem, size = 0x12000, scoped, tag = 'internal scratch']
  %s0 = inlined_call_operand.vmem [shape: s32[8,1], index: 0, kind: input, shape index: {}]
  %s1 = inlined_call_operand.hbm [shape: f32[13,128], index: 1, kind: input, shape index: {}]
  %s2 = inlined_call_operand.vmem [shape: f32[32,128], index: 2, kind: input, shape index: {}]
  %s3 = inlined_call_operand.vmem [shape: f32[1,32,128], index: 3, kind: input, shape index: {}]
  %s4 = inlined_call_operand.hbm [shape: f32[1,32,128], index: 4, kind: input, shape index: {}]
  %s5 = inlined_call_operand.vmem [shape: f32[1,1,128], index: 5, kind: input, shape index: {}]
  %s6 = inlined_call_operand.vmem [shape: f32[32,13], index: 6, kind: input, shape index: {}]
  %s7 = inlined_call_operand.vmem [shape: f32[1,13], index: 7, kind: input, shape index: {}]
  %s8 = inlined_call_operand.vmem [shape: f32[2,8,32], index: 8, kind: input, shape index: {}]
  %s9 = inlined_call_operand.hbm [shape: f32[2,8,32], index: 9, kind: input, shape index: {}]
  %s10 = inlined_call_operand.hbm [shape: s32[8,8], index: 10, kind: output, shape index: {0}]
  %s11 = inlined_call_operand.hbm [shape: f32[8,13], index: 11, kind: output, shape index: {1}]
  %s12 = inlined_call_operand.hbm [shape: f32[2,8,32], index: 12, kind: output, shape index: {2}]
  %s13 = inlined_call_operand.hbm [shape: f32[2,8,32], index: 13, kind: output, shape index: {3}]
  %14 = xla_tuple %s10, %s11, %s12, %s13
  %s15 = sld [smem:[#allocation0]]
  $region86: #{tpu_custom_call.1} parent=0
    _
  %s17 = ssub.s32 1, %s15
  %s18 = scalar_select 0, %s17, %s15
  $region1: #{tpu_custom_call.1} parent=0
    #allocation2 [shape = 'u8[8192]{0}', space=vmem, size = 0x2000, scoped, tag = 'input window, operand 1, single buffered']
    #allocation3 [shape = 's32[1]{0}', space=sflag, size = 0x4, scoped, tag = 'scoped memory for tpu_custom_call.1']
    #allocation4 [shape = 's32[1]{0}', space=sflag, size = 0x4, scoped, tag = 'scoped memory for tpu_custom_call.1']
    #allocation5 [shape = 'u8[16384]{0}', space=vmem, size = 0x4000, scoped, tag = 'input window, operand 4, single buffered']
    #allocation6 [shape = 's32[1]{0}', space=sflag, size = 0x4, scoped, tag = 'scoped memory for tpu_custom_call.1']
    #allocation7 [shape = 'u8[8192]{0}', space=vmem, size = 0x2000, scoped, tag = 'input window, operand 9, single buffered']
    #allocation8 [shape = 'u8[4096]{0}', space=vmem, size = 0x1000, scoped, tag = 'output window, operand 0, single buffered']
    #allocation9 [shape = 'u8[4096]{0}', space=vmem, size = 0x1000, scoped, tag = 'output window, operand 1, single buffered']
    #allocation10 [shape = 's32[1]{0}', space=sflag, size = 0x4, scoped, tag = 'scoped memory for tpu_custom_call.1']
    #allocation11 [shape = 'u8[8192]{0}', space=vmem, size = 0x2000, scoped, tag = 'output window, operand 2, single buffered']
    #allocation12 [shape = 'u8[8192]{0}', space=vmem, size = 0x2000, scoped, tag = 'output window, operand 3, single buffered']
    #allocation13 [shape = 's32[1]{0}', space=sflag, size = 0x4, scoped, tag = 'scoped memory for tpu_custom_call.1']
    %19 = vsyncpa [#allocation3], 0
    %20 = vsyncpa [#allocation6], 0
    %21 = vsyncpa [#allocation4], 0
    %22 = vsyncpa [#allocation10], 0
    %23 = vsyncpa [#allocation13], 0
    // Predicated region
    $region2: #{tpu_custom_call.1} parent=1 // pred_check
      _
    $region3: #{tpu_custom_call.1} parent=1 // pred_check_branch
      %25 = sbr.rel (0) target = $region5
    $region4: #{tpu_custom_call.1} parent=1 // pred_region
      _
    $region5: #{tpu_custom_call.1} parent=1 // pred_fallthru
      _
    // Predicated region
    $region6: #{tpu_custom_call.1} parent=1 // pred_check
      _
    $region7: #{tpu_custom_call.1} parent=1 // pred_check_branch
      %27 = sbr.rel (0) target = $region9
    $region8: #{tpu_custom_call.1} parent=1 // pred_region
      %s29 = ssub.s32 256, 256
      %30 = vsyncadd [#allocation3], %s29
      %s31 = sshll.u32 [#allocation2], 4
      %s32 = int_to_ptr.vmem [resolvable:$true] %s31
      %37 = dma.hbm_to_vmem [thread:$0]  %s1, 256, %s32, [#allocation3], 128, 128, 8
    $region9: #{tpu_custom_call.1} parent=1 // pred_fallthru
      _
    // Predicated region
    $region10: #{tpu_custom_call.1} parent=1 // pred_check
      _
    $region11: #{tpu_custom_call.1} parent=1 // pred_check_branch
      %39 = sbr.rel (0) target = $region13
    $region12: #{tpu_custom_call.1} parent=1 // pred_region
      _
    $region13: #{tpu_custom_call.1} parent=1 // pred_fallthru
      _
    // Predicated region
    $region14: #{tpu_custom_call.1} parent=1 // pred_check
      _
    $region15: #{tpu_custom_call.1} parent=1 // pred_check_branch
      %41 = sbr.rel (0) target = $region17
    $region16: #{tpu_custom_call.1} parent=1 // pred_region
      _
    $region17: #{tpu_custom_call.1} parent=1 // pred_fallthru
      _
    // Predicated region
    $region18: #{tpu_custom_call.1} parent=1 // pred_check
      _
    $region19: #{tpu_custom_call.1} parent=1 // pred_check_branch
      %43 = sbr.rel (0) target = $region21
    $region20: #{tpu_custom_call.1} parent=1 // pred_region
      %s45 = ssub.s32 512, 512
      %46 = vsyncadd [#allocation6], %s45
      %s47 = sshll.u32 [#allocation5], 4
      %s48 = int_to_ptr.vmem [resolvable:$true] %s47
      %53 = dma.hbm_to_vmem [thread:$0]  %s4, 512, %s48, [#allocation6], 128, 128, 8
    $region21: #{tpu_custom_call.1} parent=1 // pred_fallthru
      _
    // Predicated region
    $region22: #{tpu_custom_call.1} parent=1 // pred_check
      _
    $region23: #{tpu_custom_call.1} parent=1 // pred_check_branch
      %55 = sbr.rel (0) target = $region25
    $region24: #{tpu_custom_call.1} parent=1 // pred_region
      _
    $region25: #{tpu_custom_call.1} parent=1 // pred_fallthru
      _
    // Predicated region
    $region26: #{tpu_custom_call.1} parent=1 // pred_check
      _
    $region27: #{tpu_custom_call.1} parent=1 // pred_check_branch
      %57 = sbr.rel (0) target = $region29
    $region28: #{tpu_custom_call.1} parent=1 // pred_region
      _
    $region29: #{tpu_custom_call.1} parent=1 // pred_fallthru
      _
    // Predicated region
    $region30: #{tpu_custom_call.1} parent=1 // pred_check
      _
    $region31: #{tpu_custom_call.1} parent=1 // pred_check_branch
      %59 = sbr.rel (0) target = $region33
    $region32: #{tpu_custom_call.1} parent=1 // pred_region
      _
    $region33: #{tpu_custom_call.1} parent=1 // pred_fallthru
      _
    // Predicated region
    $region34: #{tpu_custom_call.1} parent=1 // pred_check
      _
    $region35: #{tpu_custom_call.1} parent=1 // pred_check_branch
      %61 = sbr.rel (0) target = $region37
    $region36: #{tpu_custom_call.1} parent=1 // pred_region
      _
    $region37: #{tpu_custom_call.1} parent=1 // pred_fallthru
      _
    // Predicated region
    $region38: #{tpu_custom_call.1} parent=1 // pred_check
      _
    $region39: #{tpu_custom_call.1} parent=1 // pred_check_branch
      %63 = sbr.rel (0) target = $region41
    $region40: #{tpu_custom_call.1} parent=1 // pred_region
      %s65 = ssub.s32 256, 256
      %66 = vsyncadd [#allocation6], %s65
      %s67 = sshll.u32 [#allocation7], 4
      %s68 = int_to_ptr.vmem [resolvable:$true] %s67
      %73 = dma.hbm_to_vmem [thread:$0]  %s9, 256, %s68, [#allocation6], 128, 128, 8
    $region41: #{tpu_custom_call.1} parent=1 // pred_fallthru
      _
    // Predicated region
    $region42: #{tpu_custom_call.1} parent=1 // pred_check
      _
    $region43: #{tpu_custom_call.1} parent=1 // pred_check_branch
      %75 = sbr.rel (0) target = $region45
    $region44: #{tpu_custom_call.1} parent=1 // pred_region
      %76 = dma.done [#allocation3], 256
    $region45: #{tpu_custom_call.1} parent=1 // pred_fallthru
      _
    // Predicated region
    $region46: #{tpu_custom_call.1} parent=1 // pred_check
      _
    $region47: #{tpu_custom_call.1} parent=1 // pred_check_branch
      %78 = sbr.rel (0) target = $region49
    $region48: #{tpu_custom_call.1} parent=1 // pred_region
      %79 = dma.done [#allocation6], 512
    $region49: #{tpu_custom_call.1} parent=1 // pred_fallthru
      _
    // Predicated region
    $region50: #{tpu_custom_call.1} parent=1 // pred_check
      _
    $region51: #{tpu_custom_call.1} parent=1 // pred_check_branch
      %81 = sbr.rel (0) target = $region53
    $region52: #{tpu_custom_call.1} parent=1 // pred_region
      %82 = dma.done [#allocation6], 256
    $region53: #{tpu_custom_call.1} parent=1 // pred_fallthru
      _
    %v83 = vld [vmem:[%s8] sm:$0xff]
    %s84 = scalar_lea.vmem %s8, 8
    %v85 = vld [vmem:[%s84] sm:$0xff]
    %v86 = vld [vmem:[#allocation7] sm:$0xff]
    %s87 = scalar_lea.vmem [#allocation7], 8
    %v88 = vld [vmem:[%s87] sm:$0xff]
    %v89 = vld [vmem:[%s0] sm:$0xff]
    %v90 = vlaneseq
    %v91 = vand.u32 %v90, 127
    %v92 = vld [vmem:[#allocation2] sm:$0xff]
    %v93 = vld [vmem:[#allocation2 + $0x8] sm:$0x1f]
    %v94 = vld [vmem:[%s2] sm:$0xff]
    %v95 = vld [vmem:[%s2 + $0x8] sm:$0xff]
    %v96 = vld [vmem:[%s2 + $0x10] sm:$0xff]
    %v97 = vld [vmem:[%s2 + $0x18] sm:$0xff]
    %v98 = vld [vmem:[%s6] sm:$0xff]
    %v99 = vld [vmem:[%s6 + $0x8] sm:$0xff]
    %v100 = vld [vmem:[%s6 + $0x10] sm:$0xff]
    %v101 = vld [vmem:[%s6 + $0x18] sm:$0xff]
    %v102 = vld [vmem:[%s7] sm:$0x1]
    %v103 = vld [vmem:[%s3] sm:$0xff]
    %v104 = vld [vmem:[%s3 + $0x8] sm:$0xff]
    %v105 = vld [vmem:[%s3 + $0x10] sm:$0xff]
    %v106 = vld [vmem:[%s3 + $0x18] sm:$0xff]
    %v107 = vld [vmem:[#allocation5] sm:$0xff]
    %v108 = vld [vmem:[#allocation5 + $0x8] sm:$0xff]
    %v109 = vld [vmem:[#allocation5 + $0x10] sm:$0xff]
    %v110 = vld [vmem:[#allocation5 + $0x18] sm:$0xff]
    %v111 = vld [vmem:[%s5] sm:$0x1]
    %vm112 = vcmp.ge.s32.totalorder %v91, 1
    %vm113 = vcmp.lt.s32.totalorder %v91, 3
    %vm114 = vmand %vm112, %vm113
    %vm115 = vcmp.ge.s32.totalorder %v91, 5
    %vm116 = vcmp.lt.s32.totalorder %v91, 4
    %vm117 = vmand %vm112, %vm116
    %118 = vset.pattern.permute.xlu0 0
    %119 = vperm.xlu0 %118, %v89
    %v120 = vpop.permute.xlu0 %119
    %vm121 = vcmp.eq.s32.totalorder %v91, %v120
    %v122 = vsel %vm121, 1, 0
    %v123 = vcvt.s32.f32 %v122
    %vm124 = vcmask 261120
    %v126 = vsel %vm124, %v83, 0
    %128 = vmatprep.subr.mxu0 0.0
    %129 = vmatpush1.msra.mxu0 %v94
    %130 = vmatprep.subr.mxu0 0.0
    %131 = vmatpush1.msra.mxu0 %v95
    %132 = vmatprep.subr.mxu0 0.0
    %133 = vmatpush1.msra.mxu0 %v96
    %134 = vmatprep.subr.mxu0 0.0
    %135 = vmatpush1.msra.mxu0 %v97
    %136 = vmatprep.subr.mxu0 0.0
    %137 = vmatpush1.msra.mxu0 0.0
    %138 = vmatprep.subr.mxu0 0.0
    %139 = vmatpush1.msra.mxu0 0.0
    %140 = vmatprep.subr.mxu0 0.0
    %141 = vmatpush1.msra.mxu0 0.0
    %142 = vmatprep.subr.mxu0 0.0
    %143 = vmatpush1.msra.mxu0 0.0
    %144 = vmatprep.subr.mxu0 0.0
    %145 = vmatpush1.msra.mxu0 0.0
    %146 = vmatprep.subr.mxu0 0.0
    %147 = vmatpush1.msra.mxu0 0.0
    %148 = vmatprep.subr.mxu0 0.0
    %149 = vmatpush1.msra.mxu0 0.0
    %150 = vmatprep.subr.mxu0 0.0
    %151 = vmatpush1.msra.mxu0 0.0
    %152 = vmatprep.subr.mxu0 0.0
    %153 = vmatpush1.msra.mxu0 0.0
    %154 = vmatprep.subr.mxu0 0.0
    %155 = vmatpush1.msra.mxu0 0.0
    %156 = vmatprep.subr.mxu0 0.0
    %157 = vmatpush1.msra.mxu0 0.0
    %158 = vmatprep.subr.mxu0 0.0
    %159 = vmatpush1.msra.mxu0 0.0
    %160 = vmatprep.subr.mxu0 0.0
    %161 = vmatpush1.msra.mxu0 0.0
    %162 = vmatprep.subr.mxu0 0.0
    %163 = vmatpush1.msra.mxu0 0.0
    %164 = vmatprep.subr.mxu0 0.0
    %165 = vmatpush1.msra.mxu0 0.0
    %166 = vmatprep.subr.mxu0 0.0
    %167 = vmatpush1.msra.mxu0 0.0
    %168 = vmatprep.subr.mxu0 0.0
    %169 = vmatpush1.msra.mxu0 0.0
    %170 = vmatprep.subr.mxu0 0.0
    %171 = vmatpush1.msra.mxu0 0.0
    %172 = vmatprep.subr.mxu0 0.0
    %173 = vmatpush1.msra.mxu0 0.0
    %174 = vmatprep.subr.mxu0 0.0
    %175 = vmatpush1.msra.mxu0 0.0
    %176 = vmatprep.subr.mxu0 0.0
    %177 = vmatpush1.msra.mxu0 0.0
    %178 = vmatprep.subr.mxu0 0.0
    %179 = vmatpush1.msra.mxu0 0.0
    %180 = vmatprep.subr.mxu0 0.0
    %181 = vmatpush1.msra.mxu0 0.0
    %182 = vmatprep.subr.mxu0 0.0
    %183 = vmatpush1.msra.mxu0 0.0
    %184 = vmatprep.subr.mxu0 0.0
    %185 = vmatpush1.msra.mxu0 0.0
    %186 = vmatprep.subr.mxu0 0.0
    %187 = vmatpush1.msra.mxu0 0.0
    %188 = vmatprep.subr.mxu0 0.0
    %189 = vmatpush1.msra.mxu0 0.0
    %190 = vmatprep.subr.mxu0 0.0
    %191 = vmatpush1.msra.mxu0 0.0
    %192 = vmatprep.mubr.f32.mxu0 0.0
    %193 = vmatmul.mubr.f32.gmra.mrb[0].mxu0 %v126
    %v194 = vpop.f32.mrb[0].mxu0
    %v195 = vadd.f32 0.0, %v194
    %v196 = vpop.f32.mrb[0].mxu0
    %197 = vdwg.mxu0
    %vm198 = vcmask 105472
    %v200 = vsel %vm198, %v123, 0
    %vm202 = vcmask 1044480
    %v204 = vsel %vm202, %v93, 0
    %206 = vmatprep.subr.mxu0 0.0
    %207 = vmatpush1.msra.mxu0 %v92
    %208 = vmatprep.subr.mxu0 0.0
    %209 = vmatpush1.msra.mxu0 %v204
    %210 = vmatprep.subr.mxu0 0.0
    %211 = vmatpush1.msra.mxu0 0.0
    %212 = vmatprep.subr.mxu0 0.0
    %213 = vmatpush1.msra.mxu0 0.0
    %214 = vmatprep.subr.mxu0 0.0
    %215 = vmatpush1.msra.mxu0 0.0
    %216 = vmatprep.subr.mxu0 0.0
    %217 = vmatpush1.msra.mxu0 0.0
    %218 = vmatprep.subr.mxu0 0.0
    %219 = vmatpush1.msra.mxu0 0.0
    %220 = vmatprep.subr.mxu0 0.0
    %221 = vmatpush1.msra.mxu0 0.0
    %222 = vmatprep.subr.mxu0 0.0
    %223 = vmatpush1.msra.mxu0 0.0
    %224 = vmatprep.subr.mxu0 0.0
    %225 = vmatpush1.msra.mxu0 0.0
    %226 = vmatprep.subr.mxu0 0.0
    %227 = vmatpush1.msra.mxu0 0.0
    %228 = vmatprep.subr.mxu0 0.0
    %229 = vmatpush1.msra.mxu0 0.0
    %230 = vmatprep.subr.mxu0 0.0
    %231 = vmatpush1.msra.mxu0 0.0
    %232 = vmatprep.subr.mxu0 0.0
    %233 = vmatpush1.msra.mxu0 0.0
    %234 = vmatprep.subr.mxu0 0.0
    %235 = vmatpush1.msra.mxu0 0.0
    %236 = vmatprep.subr.mxu0 0.0
    %237 = vmatpush1.msra.mxu0 0.0
    %238 = vmatprep.subr.mxu0 0.0
    %239 = vmatpush1.msra.mxu0 0.0
    %240 = vmatprep.subr.mxu0 0.0
    %241 = vmatpush1.msra.mxu0 0.0
    %242 = vmatprep.subr.mxu0 0.0
    %243 = vmatpush1.msra.mxu0 0.0
    %244 = vmatprep.subr.mxu0 0.0
    %245 = vmatpush1.msra.mxu0 0.0
    %246 = vmatprep.subr.mxu0 0.0
    %247 = vmatpush1.msra.mxu0 0.0
    %248 = vmatprep.subr.mxu0 0.0
    %249 = vmatpush1.msra.mxu0 0.0
    %250 = vmatprep.subr.mxu0 0.0
    %251 = vmatpush1.msra.mxu0 0.0
    %252 = vmatprep.subr.mxu0 0.0
    %253 = vmatpush1.msra.mxu0 0.0
    %254 = vmatprep.subr.mxu0 0.0
    %255 = vmatpush1.msra.mxu0 0.0
    %256 = vmatprep.subr.mxu0 0.0
    %257 = vmatpush1.msra.mxu0 0.0
    %258 = vmatprep.subr.mxu0 0.0
    %259 = vmatpush1.msra.mxu0 0.0
    %260 = vmatprep.subr.mxu0 0.0
    %261 = vmatpush1.msra.mxu0 0.0
    %262 = vmatprep.subr.mxu0 0.0
    %263 = vmatpush1.msra.mxu0 0.0
    %264 = vmatprep.subr.mxu0 0.0
    %265 = vmatpush1.msra.mxu0 0.0
    %266 = vmatprep.subr.mxu0 0.0
    %267 = vmatpush1.msra.mxu0 0.0
    %268 = vmatprep.subr.mxu0 0.0
    %269 = vmatpush1.msra.mxu0 0.0
    %270 = vmatprep.mubr.f32.mxu0 0.0
    %271 = vmatmul.mubr.f32.gmra.mrb[0].mxu0 %v200
    %v272 = vpop.f32.mrb[0].mxu0
    %v273 = vadd.f32 %v195, %v272
    %v274 = vpop.f32.mrb[0].mxu0
    %275 = vdwg.mxu0
    %v276 = vxor.u32 %v273, 2147483648
    %v277 = vmul.f32 %v276, 1.442695
    %v278 = vpow.pop %v277
    %v279 = vadd.f32 %v278, 1.0
    %v280 = vrcp.pop %v279
    %v281 = vmul.f32 1.0, %v280
    %v282 = vtanh.pop %v273
    %284 = vrot.lane.b32.xlu0 %v86, 32
    %v285 = vpop.permute.xlu0 %284
    %v287 = vmul.f32 %v281, %v285
    %289 = vrot.lane.b32.xlu0 %v282, 64
    %v290 = vpop.permute.xlu0 %289
    %v292 = vmul.f32 %v281, %v290
    %294 = vrot.lane.b32.xlu0 %v292, 32
    %v295 = vpop.permute.xlu0 %294
    %v297 = vadd.f32 %v287, %v295
    %v298 = vtanh.pop %v297
    %300 = vrot.lane.b32.xlu0 %v298, 64
    %v301 = vpop.permute.xlu0 %300
    %v303 = vmul.f32 %v281, %v301
    %v305 = vsel %vm124, %v85, 0
    %307 = vmatprep.subr.mxu0 0.0
    %308 = vmatpush1.msra.mxu0 %v107
    %309 = vmatprep.subr.mxu0 0.0
    %310 = vmatpush1.msra.mxu0 %v108
    %311 = vmatprep.subr.mxu0 0.0
    %312 = vmatpush1.msra.mxu0 %v109
    %313 = vmatprep.subr.mxu0 0.0
    %314 = vmatpush1.msra.mxu0 %v110
    %315 = vmatprep.subr.mxu0 0.0
    %316 = vmatpush1.msra.mxu0 0.0
    %317 = vmatprep.subr.mxu0 0.0
    %318 = vmatpush1.msra.mxu0 0.0
    %319 = vmatprep.subr.mxu0 0.0
    %320 = vmatpush1.msra.mxu0 0.0
    %321 = vmatprep.subr.mxu0 0.0
    %322 = vmatpush1.msra.mxu0 0.0
    %323 = vmatprep.subr.mxu0 0.0
    %324 = vmatpush1.msra.mxu0 0.0
    %325 = vmatprep.subr.mxu0 0.0
    %326 = vmatpush1.msra.mxu0 0.0
    %327 = vmatprep.subr.mxu0 0.0
    %328 = vmatpush1.msra.mxu0 0.0
    %329 = vmatprep.subr.mxu0 0.0
    %330 = vmatpush1.msra.mxu0 0.0
    %331 = vmatprep.subr.mxu0 0.0
    %332 = vmatpush1.msra.mxu0 0.0
    %333 = vmatprep.subr.mxu0 0.0
    %334 = vmatpush1.msra.mxu0 0.0
    %335 = vmatprep.subr.mxu0 0.0
    %336 = vmatpush1.msra.mxu0 0.0
    %337 = vmatprep.subr.mxu0 0.0
    %338 = vmatpush1.msra.mxu0 0.0
    %339 = vmatprep.subr.mxu0 0.0
    %340 = vmatpush1.msra.mxu0 0.0
    %341 = vmatprep.subr.mxu0 0.0
    %342 = vmatpush1.msra.mxu0 0.0
    %343 = vmatprep.subr.mxu0 0.0
    %344 = vmatpush1.msra.mxu0 0.0
    %345 = vmatprep.subr.mxu0 0.0
    %346 = vmatpush1.msra.mxu0 0.0
    %347 = vmatprep.subr.mxu0 0.0
    %348 = vmatpush1.msra.mxu0 0.0
    %349 = vmatprep.subr.mxu0 0.0
    %350 = vmatpush1.msra.mxu0 0.0
    %351 = vmatprep.subr.mxu0 0.0
    %352 = vmatpush1.msra.mxu0 0.0
    %353 = vmatprep.subr.mxu0 0.0
    %354 = vmatpush1.msra.mxu0 0.0
    %355 = vmatprep.subr.mxu0 0.0
    %356 = vmatpush1.msra.mxu0 0.0
    %357 = vmatprep.subr.mxu0 0.0
    %358 = vmatpush1.msra.mxu0 0.0
    %359 = vmatprep.subr.mxu0 0.0
    %360 = vmatpush1.msra.mxu0 0.0
    %361 = vmatprep.subr.mxu0 0.0
    %362 = vmatpush1.msra.mxu0 0.0
    %363 = vmatprep.subr.mxu0 0.0
    %364 = vmatpush1.msra.mxu0 0.0
    %365 = vmatprep.subr.mxu0 0.0
    %366 = vmatpush1.msra.mxu0 0.0
    %367 = vmatprep.subr.mxu0 0.0
    %368 = vmatpush1.msra.mxu0 0.0
    %369 = vmatprep.subr.mxu0 0.0
    %370 = vmatpush1.msra.mxu0 0.0
    %371 = vmatprep.mubr.f32.mxu0 0.0
    %372 = vmatmul.mubr.f32.gmra.mrb[0].mxu0 %v305
    %v373 = vpop.f32.mrb[0].mxu0
    %v374 = vadd.f32 0.0, %v373
    %v375 = vpop.f32.mrb[0].mxu0
    %376 = vdwg.mxu0
    %378 = vrot.lane.b32.xlu0 %v303, 32
    %v379 = vpop.permute.xlu0 %378
    %v380 = vsel %vm124, %v379, 0
    %382 = vmatprep.subr.mxu0 0.0
    %383 = vmatpush1.msra.mxu0 %v103
    %384 = vmatprep.subr.mxu0 0.0
    %385 = vmatpush1.msra.mxu0 %v104
    %386 = vmatprep.subr.mxu0 0.0
    %387 = vmatpush1.msra.mxu0 %v105
    %388 = vmatprep.subr.mxu0 0.0
    %389 = vmatpush1.msra.mxu0 %v106
    %390 = vmatprep.subr.mxu0 0.0
    %391 = vmatpush1.msra.mxu0 0.0
    %392 = vmatprep.subr.mxu0 0.0
    %393 = vmatpush1.msra.mxu0 0.0
    %394 = vmatprep.subr.mxu0 0.0
    %395 = vmatpush1.msra.mxu0 0.0
    %396 = vmatprep.subr.mxu0 0.0
    %397 = vmatpush1.msra.mxu0 0.0
    %398 = vmatprep.subr.mxu0 0.0
    %399 = vmatpush1.msra.mxu0 0.0
    %400 = vmatprep.subr.mxu0 0.0
    %401 = vmatpush1.msra.mxu0 0.0
    %402 = vmatprep.subr.mxu0 0.0
    %403 = vmatpush1.msra.mxu0 0.0
    %404 = vmatprep.subr.mxu0 0.0
    %405 = vmatpush1.msra.mxu0 0.0
    %406 = vmatprep.subr.mxu0 0.0
    %407 = vmatpush1.msra.mxu0 0.0
    %408 = vmatprep.subr.mxu0 0.0
    %409 = vmatpush1.msra.mxu0 0.0
    %410 = vmatprep.subr.mxu0 0.0
    %411 = vmatpush1.msra.mxu0 0.0
    %412 = vmatprep.subr.mxu0 0.0
    %413 = vmatpush1.msra.mxu0 0.0
    %414 = vmatprep.subr.mxu0 0.0
    %415 = vmatpush1.msra.mxu0 0.0
    %416 = vmatprep.subr.mxu0 0.0
    %417 = vmatpush1.msra.mxu0 0.0
    %418 = vmatprep.subr.mxu0 0.0
    %419 = vmatpush1.msra.mxu0 0.0
    %420 = vmatprep.subr.mxu0 0.0
    %421 = vmatpush1.msra.mxu0 0.0
    %422 = vmatprep.subr.mxu0 0.0
    %423 = vmatpush1.msra.mxu0 0.0
    %424 = vmatprep.subr.mxu0 0.0
    %425 = vmatpush1.msra.mxu0 0.0
    %426 = vmatprep.subr.mxu0 0.0
    %427 = vmatpush1.msra.mxu0 0.0
    %428 = vmatprep.subr.mxu0 0.0
    %429 = vmatpush1.msra.mxu0 0.0
    %430 = vmatprep.subr.mxu0 0.0
    %431 = vmatpush1.msra.mxu0 0.0
    %432 = vmatprep.subr.mxu0 0.0
    %433 = vmatpush1.msra.mxu0 0.0
    %434 = vmatprep.subr.mxu0 0.0
    %435 = vmatpush1.msra.mxu0 0.0
    %436 = vmatprep.subr.mxu0 0.0
    %437 = vmatpush1.msra.mxu0 0.0
    %438 = vmatprep.subr.mxu0 0.0
    %439 = vmatpush1.msra.mxu0 0.0
    %440 = vmatprep.subr.mxu0 0.0
    %441 = vmatpush1.msra.mxu0 0.0
    %442 = vmatprep.subr.mxu0 0.0
    %443 = vmatpush1.msra.mxu0 0.0
    %444 = vmatprep.subr.mxu0 0.0
    %445 = vmatpush1.msra.mxu0 0.0
    %446 = vmatprep.mubr.f32.mxu0 0.0
    %447 = vmatmul.mubr.f32.gmra.mrb[0].mxu0 %v380
    %v448 = vpop.f32.mrb[0].mxu0
    %v449 = vadd.f32 %v374, %v448
    %v450 = vpop.f32.mrb[0].mxu0
    %451 = vdwg.mxu0
    %v453 = vlaneseq
    %v454 = vshrl.u32 %v453, 7
    %v455 = vsub.s32 0, %v454
    %v456 = vrot.slane %v111, %v455
    %v458 = vadd.f32 %v449, %v456
    %v459 = vxor.u32 %v458, 2147483648
    %v460 = vmul.f32 %v459, 1.442695
    %v461 = vpow.pop %v460
    %v462 = vadd.f32 %v461, 1.0
    %v463 = vrcp.pop %v462
    %v464 = vmul.f32 1.0, %v463
    %v465 = vtanh.pop %v458
    %467 = vrot.lane.b32.xlu0 %v88, 32
    %v468 = vpop.permute.xlu0 %467
    %v470 = vmul.f32 %v464, %v468
    %472 = vrot.lane.b32.xlu0 %v465, 64
    %v473 = vpop.permute.xlu0 %472
    %v475 = vmul.f32 %v464, %v473
    %477 = vrot.lane.b32.xlu0 %v475, 32
    %v478 = vpop.permute.xlu0 %477
    %v480 = vadd.f32 %v470, %v478
    %v481 = vtanh.pop %v480
    %483 = vrot.lane.b32.xlu0 %v481, 64
    %v484 = vpop.permute.xlu0 %483
    %v486 = vmul.f32 %v464, %v484
    %v488 = vlaneseq
    %v489 = vshrl.u32 %v488, 7
    %v490 = vsub.s32 0, %v489
    %v491 = vrot.slane %v102, %v490
    %494 = vrot.lane.b32.xlu0 %v486, 32
    %v495 = vpop.permute.xlu0 %494
    %v496 = vsel %vm124, %v495, 0
    %498 = vmatprep.subr.mxu0 0.0
    %499 = vmatpush1.msra.mxu0 %v98
    %500 = vmatprep.subr.mxu0 0.0
    %501 = vmatpush1.msra.mxu0 %v99
    %502 = vmatprep.subr.mxu0 0.0
    %503 = vmatpush1.msra.mxu0 %v100
    %504 = vmatprep.subr.mxu0 0.0
    %505 = vmatpush1.msra.mxu0 %v101
    %506 = vmatprep.subr.mxu0 0.0
    %507 = vmatpush1.msra.mxu0 0.0
    %508 = vmatprep.subr.mxu0 0.0
    %509 = vmatpush1.msra.mxu0 0.0
    %510 = vmatprep.subr.mxu0 0.0
    %511 = vmatpush1.msra.mxu0 0.0
    %512 = vmatprep.subr.mxu0 0.0
    %513 = vmatpush1.msra.mxu0 0.0
    %514 = vmatprep.subr.mxu0 0.0
    %515 = vmatpush1.msra.mxu0 0.0
    %516 = vmatprep.subr.mxu0 0.0
    %517 = vmatpush1.msra.mxu0 0.0
    %518 = vmatprep.subr.mxu0 0.0
    %519 = vmatpush1.msra.mxu0 0.0
    %520 = vmatprep.subr.mxu0 0.0
    %521 = vmatpush1.msra.mxu0 0.0
    %522 = vmatprep.subr.mxu0 0.0
    %523 = vmatpush1.msra.mxu0 0.0
    %524 = vmatprep.subr.mxu0 0.0
    %525 = vmatpush1.msra.mxu0 0.0
    %526 = vmatprep.subr.mxu0 0.0
    %527 = vmatpush1.msra.mxu0 0.0
    %528 = vmatprep.subr.mxu0 0.0
    %529 = vmatpush1.msra.mxu0 0.0
    %530 = vmatprep.subr.mxu0 0.0
    %531 = vmatpush1.msra.mxu0 0.0
    %532 = vmatprep.subr.mxu0 0.0
    %533 = vmatpush1.msra.mxu0 0.0
    %534 = vmatprep.subr.mxu0 0.0
    %535 = vmatpush1.msra.mxu0 0.0
    %536 = vmatprep.subr.mxu0 0.0
    %537 = vmatpush1.msra.mxu0 0.0
    %538 = vmatprep.subr.mxu0 0.0
    %539 = vmatpush1.msra.mxu0 0.0
    %540 = vmatprep.subr.mxu0 0.0
    %541 = vmatpush1.msra.mxu0 0.0
    %542 = vmatprep.subr.mxu0 0.0
    %543 = vmatpush1.msra.mxu0 0.0
    %544 = vmatprep.subr.mxu0 0.0
    %545 = vmatpush1.msra.mxu0 0.0
    %546 = vmatprep.subr.mxu0 0.0
    %547 = vmatpush1.msra.mxu0 0.0
    %548 = vmatprep.subr.mxu0 0.0
    %549 = vmatpush1.msra.mxu0 0.0
    %550 = vmatprep.subr.mxu0 0.0
    %551 = vmatpush1.msra.mxu0 0.0
    %552 = vmatprep.subr.mxu0 0.0
    %553 = vmatpush1.msra.mxu0 0.0
    %554 = vmatprep.subr.mxu0 0.0
    %555 = vmatpush1.msra.mxu0 0.0
    %556 = vmatprep.subr.mxu0 0.0
    %557 = vmatpush1.msra.mxu0 0.0
    %558 = vmatprep.subr.mxu0 0.0
    %559 = vmatpush1.msra.mxu0 0.0
    %560 = vmatprep.subr.mxu0 0.0
    %561 = vmatpush1.msra.mxu0 0.0
    %562 = vmatprep.mubr.f32.mxu0 0.0
    %563 = vmatmul.mubr.f32.gmra.mrb[0].mxu0 %v496
    %v564 = vpop.f32.mrb[0].mxu0
    %v565 = vadd.f32 %v491, %v564
    %v566 = vpop.f32.mrb[0].mxu0
    %567 = vdwg.mxu0
    %v568 = vsel %vm114, %v565, -inf
    %v569 = vsel %vm198, %v568, -inf
    %570 = vmax.index.xlane.f32.xlu0 %v569
    %v571 = vpop.xlane.xlu0 %570
    %vm572 = vcmp.eq.s32.totalorder %v91, %v571
    %v573 = vsel %vm572, 1, 0
    %v574 = vcvt.s32.f32 %v573
    %575 = vmatprep.subr.mxu0 0.0
    %576 = vmatpush1.msra.mxu0 %v94
    %577 = vmatprep.subr.mxu0 0.0
    %578 = vmatpush1.msra.mxu0 %v95
    %579 = vmatprep.subr.mxu0 0.0
    %580 = vmatpush1.msra.mxu0 %v96
    %581 = vmatprep.subr.mxu0 0.0
    %582 = vmatpush1.msra.mxu0 %v97
    %583 = vmatprep.subr.mxu0 0.0
    %584 = vmatpush1.msra.mxu0 0.0
    %585 = vmatprep.subr.mxu0 0.0
    %586 = vmatpush1.msra.mxu0 0.0
    %587 = vmatprep.subr.mxu0 0.0
    %588 = vmatpush1.msra.mxu0 0.0
    %589 = vmatprep.subr.mxu0 0.0
    %590 = vmatpush1.msra.mxu0 0.0
    %591 = vmatprep.subr.mxu0 0.0
    %592 = vmatpush1.msra.mxu0 0.0
    %593 = vmatprep.subr.mxu0 0.0
    %594 = vmatpush1.msra.mxu0 0.0
    %595 = vmatprep.subr.mxu0 0.0
    %596 = vmatpush1.msra.mxu0 0.0
    %597 = vmatprep.subr.mxu0 0.0
    %598 = vmatpush1.msra.mxu0 0.0
    %599 = vmatprep.subr.mxu0 0.0
    %600 = vmatpush1.msra.mxu0 0.0
    %601 = vmatprep.subr.mxu0 0.0
    %602 = vmatpush1.msra.mxu0 0.0
    %603 = vmatprep.subr.mxu0 0.0
    %604 = vmatpush1.msra.mxu0 0.0
    %605 = vmatprep.subr.mxu0 0.0
    %606 = vmatpush1.msra.mxu0 0.0
    %607 = vmatprep.subr.mxu0 0.0
    %608 = vmatpush1.msra.mxu0 0.0
    %609 = vmatprep.subr.mxu0 0.0
    %610 = vmatpush1.msra.mxu0 0.0
    %611 = vmatprep.subr.mxu0 0.0
    %612 = vmatpush1.msra.mxu0 0.0
    %613 = vmatprep.subr.mxu0 0.0
    %614 = vmatpush1.msra.mxu0 0.0
    %615 = vmatprep.subr.mxu0 0.0
    %616 = vmatpush1.msra.mxu0 0.0
    %617 = vmatprep.subr.mxu0 0.0
    %618 = vmatpush1.msra.mxu0 0.0
    %619 = vmatprep.subr.mxu0 0.0
    %620 = vmatpush1.msra.mxu0 0.0
    %621 = vmatprep.subr.mxu0 0.0
    %622 = vmatpush1.msra.mxu0 0.0
    %623 = vmatprep.subr.mxu0 0.0
    %624 = vmatpush1.msra.mxu0 0.0
    %625 = vmatprep.subr.mxu0 0.0
    %626 = vmatpush1.msra.mxu0 0.0
    %627 = vmatprep.subr.mxu0 0.0
    %628 = vmatpush1.msra.mxu0 0.0
    %629 = vmatprep.subr.mxu0 0.0
    %630 = vmatpush1.msra.mxu0 0.0
    %631 = vmatprep.subr.mxu0 0.0
    %632 = vmatpush1.msra.mxu0 0.0
    %633 = vmatprep.subr.mxu0 0.0
    %634 = vmatpush1.msra.mxu0 0.0
    %635 = vmatprep.subr.mxu0 0.0
    %636 = vmatpush1.msra.mxu0 0.0
    %637 = vmatprep.subr.mxu0 0.0
    %638 = vmatpush1.msra.mxu0 0.0
    %639 = vmatprep.mubr.f32.mxu0 0.0
    %640 = vmatmul.mubr.f32.gmra.mrb[0].mxu0 %v380
    %v641 = vpop.f32.mrb[0].mxu0
    %v642 = vadd.f32 0.0, %v641
    %v643 = vpop.f32.mrb[0].mxu0
    %644 = vdwg.mxu0
    %v646 = vsel %vm198, %v574, 0
    %648 = vmatprep.subr.mxu0 0.0
    %649 = vmatpush1.msra.mxu0 %v92
    %650 = vmatprep.subr.mxu0 0.0
    %651 = vmatpush1.msra.mxu0 %v204
    %652 = vmatprep.subr.mxu0 0.0
    %653 = vmatpush1.msra.mxu0 0.0
    %654 = vmatprep.subr.mxu0 0.0
    %655 = vmatpush1.msra.mxu0 0.0
    %656 = vmatprep.subr.mxu0 0.0
    %657 = vmatpush1.msra.mxu0 0.0
    %658 = vmatprep.subr.mxu0 0.0
    %659 = vmatpush1.msra.mxu0 0.0
    %660 = vmatprep.subr.mxu0 0.0
    %661 = vmatpush1.msra.mxu0 0.0
    %662 = vmatprep.subr.mxu0 0.0
    %663 = vmatpush1.msra.mxu0 0.0
    %664 = vmatprep.subr.mxu0 0.0
    %665 = vmatpush1.msra.mxu0 0.0
    %666 = vmatprep.subr.mxu0 0.0
    %667 = vmatpush1.msra.mxu0 0.0
    %668 = vmatprep.subr.mxu0 0.0
    %669 = vmatpush1.msra.mxu0 0.0
    %670 = vmatprep.subr.mxu0 0.0
    %671 = vmatpush1.msra.mxu0 0.0
    %672 = vmatprep.subr.mxu0 0.0
    %673 = vmatpush1.msra.mxu0 0.0
    %674 = vmatprep.subr.mxu0 0.0
    %675 = vmatpush1.msra.mxu0 0.0
    %676 = vmatprep.subr.mxu0 0.0
    %677 = vmatpush1.msra.mxu0 0.0
    %678 = vmatprep.subr.mxu0 0.0
    %679 = vmatpush1.msra.mxu0 0.0
    %680 = vmatprep.subr.mxu0 0.0
    %681 = vmatpush1.msra.mxu0 0.0
    %682 = vmatprep.subr.mxu0 0.0
    %683 = vmatpush1.msra.mxu0 0.0
    %684 = vmatprep.subr.mxu0 0.0
    %685 = vmatpush1.msra.mxu0 0.0
    %686 = vmatprep.subr.mxu0 0.0
    %687 = vmatpush1.msra.mxu0 0.0
    %688 = vmatprep.subr.mxu0 0.0
    %689 = vmatpush1.msra.mxu0 0.0
    %690 = vmatprep.subr.mxu0 0.0
    %691 = vmatpush1.msra.mxu0 0.0
    %692 = vmatprep.subr.mxu0 0.0
    %693 = vmatpush1.msra.mxu0 0.0
    %694 = vmatprep.subr.mxu0 0.0
    %695 = vmatpush1.msra.mxu0 0.0
    %696 = vmatprep.subr.mxu0 0.0
    %697 = vmatpush1.msra.mxu0 0.0
    %698 = vmatprep.subr.mxu0 0.0
    %699 = vmatpush1.msra.mxu0 0.0
    %700 = vmatprep.subr.mxu0 0.0
    %701 = vmatpush1.msra.mxu0 0.0
    %702 = vmatprep.subr.mxu0 0.0
    %703 = vmatpush1.msra.mxu0 0.0
    %704 = vmatprep.subr.mxu0 0.0
    %705 = vmatpush1.msra.mxu0 0.0
    %706 = vmatprep.subr.mxu0 0.0
    %707 = vmatpush1.msra.mxu0 0.0
    %708 = vmatprep.subr.mxu0 0.0
    %709 = vmatpush1.msra.mxu0 0.0
    %710 = vmatprep.subr.mxu0 0.0
    %711 = vmatpush1.msra.mxu0 0.0
    %712 = vmatprep.mubr.f32.mxu0 0.0
    %713 = vmatmul.mubr.f32.gmra.mrb[0].mxu0 %v646
    %v714 = vpop.f32.mrb[0].mxu0
    %v715 = vadd.f32 %v642, %v714
    %v716 = vpop.f32.mrb[0].mxu0
    %717 = vdwg.mxu0
    %v718 = vxor.u32 %v715, 2147483648
    %v719 = vmul.f32 %v718, 1.442695
    %v720 = vpow.pop %v719
    %v721 = vadd.f32 %v720, 1.0
    %v722 = vrcp.pop %v721
    %v723 = vmul.f32 1.0, %v722
    %v724 = vtanh.pop %v715
    %v725 = vmul.f32 %v723, %v297
    %727 = vrot.lane.b32.xlu0 %v724, 64
    %v728 = vpop.permute.xlu0 %727
    %v730 = vmul.f32 %v723, %v728
    %732 = vrot.lane.b32.xlu0 %v730, 32
    %v733 = vpop.permute.xlu0 %732
    %v735 = vadd.f32 %v725, %v733
    %v736 = vtanh.pop %v735
    %738 = vrot.lane.b32.xlu0 %v736, 64
    %v739 = vpop.permute.xlu0 %738
    %v741 = vmul.f32 %v723, %v739
    %742 = vmatprep.subr.mxu0 0.0
    %743 = vmatpush1.msra.mxu0 %v107
    %744 = vmatprep.subr.mxu0 0.0
    %745 = vmatpush1.msra.mxu0 %v108
    %746 = vmatprep.subr.mxu0 0.0
    %747 = vmatpush1.msra.mxu0 %v109
    %748 = vmatprep.subr.mxu0 0.0
    %749 = vmatpush1.msra.mxu0 %v110
    %750 = vmatprep.subr.mxu0 0.0
    %751 = vmatpush1.msra.mxu0 0.0
    %752 = vmatprep.subr.mxu0 0.0
    %753 = vmatpush1.msra.mxu0 0.0
    %754 = vmatprep.subr.mxu0 0.0
    %755 = vmatpush1.msra.mxu0 0.0
    %756 = vmatprep.subr.mxu0 0.0
    %757 = vmatpush1.msra.mxu0 0.0
    %758 = vmatprep.subr.mxu0 0.0
    %759 = vmatpush1.msra.mxu0 0.0
    %760 = vmatprep.subr.mxu0 0.0
    %761 = vmatpush1.msra.mxu0 0.0
    %762 = vmatprep.subr.mxu0 0.0
    %763 = vmatpush1.msra.mxu0 0.0
    %764 = vmatprep.subr.mxu0 0.0
    %765 = vmatpush1.msra.mxu0 0.0
    %766 = vmatprep.subr.mxu0 0.0
    %767 = vmatpush1.msra.mxu0 0.0
    %768 = vmatprep.subr.mxu0 0.0
    %769 = vmatpush1.msra.mxu0 0.0
    %770 = vmatprep.subr.mxu0 0.0
    %771 = vmatpush1.msra.mxu0 0.0
    %772 = vmatprep.subr.mxu0 0.0
    %773 = vmatpush1.msra.mxu0 0.0
    %774 = vmatprep.subr.mxu0 0.0
    %775 = vmatpush1.msra.mxu0 0.0
    %776 = vmatprep.subr.mxu0 0.0
    %777 = vmatpush1.msra.mxu0 0.0
    %778 = vmatprep.subr.mxu0 0.0
    %779 = vmatpush1.msra.mxu0 0.0
    %780 = vmatprep.subr.mxu0 0.0
    %781 = vmatpush1.msra.mxu0 0.0
    %782 = vmatprep.subr.mxu0 0.0
    %783 = vmatpush1.msra.mxu0 0.0
    %784 = vmatprep.subr.mxu0 0.0
    %785 = vmatpush1.msra.mxu0 0.0
    %786 = vmatprep.subr.mxu0 0.0
    %787 = vmatpush1.msra.mxu0 0.0
    %788 = vmatprep.subr.mxu0 0.0
    %789 = vmatpush1.msra.mxu0 0.0
    %790 = vmatprep.subr.mxu0 0.0
    %791 = vmatpush1.msra.mxu0 0.0
    %792 = vmatprep.subr.mxu0 0.0
    %793 = vmatpush1.msra.mxu0 0.0
    %794 = vmatprep.subr.mxu0 0.0
    %795 = vmatpush1.msra.mxu0 0.0
    %796 = vmatprep.subr.mxu0 0.0
    %797 = vmatpush1.msra.mxu0 0.0
    %798 = vmatprep.subr.mxu0 0.0
    %799 = vmatpush1.msra.mxu0 0.0
    %800 = vmatprep.subr.mxu0 0.0
    %801 = vmatpush1.msra.mxu0 0.0
    %802 = vmatprep.subr.mxu0 0.0
    %803 = vmatpush1.msra.mxu0 0.0
    %804 = vmatprep.subr.mxu0 0.0
    %805 = vmatpush1.msra.mxu0 0.0
    %806 = vmatprep.mubr.f32.mxu0 0.0
    %807 = vmatmul.mubr.f32.gmra.mrb[0].mxu0 %v496
    %v808 = vpop.f32.mrb[0].mxu0
    %v809 = vadd.f32 0.0, %v808
    %v810 = vpop.f32.mrb[0].mxu0
    %811 = vdwg.mxu0
    %813 = vrot.lane.b32.xlu0 %v741, 32
    %v814 = vpop.permute.xlu0 %813
    %v815 = vsel %vm124, %v814, 0
    %817 = vmatprep.subr.mxu0 0.0
    %818 = vmatpush1.msra.mxu0 %v103
    %819 = vmatprep.subr.mxu0 0.0
    %820 = vmatpush1.msra.mxu0 %v104
    %821 = vmatprep.subr.mxu0 0.0
    %822 = vmatpush1.msra.mxu0 %v105
    %823 = vmatprep.subr.mxu0 0.0
    %824 = vmatpush1.msra.mxu0 %v106
    %825 = vmatprep.subr.mxu0 0.0
    %826 = vmatpush1.msra.mxu0 0.0
    %827 = vmatprep.subr.mxu0 0.0
    %828 = vmatpush1.msra.mxu0 0.0
    %829 = vmatprep.subr.mxu0 0.0
    %830 = vmatpush1.msra.mxu0 0.0
    %831 = vmatprep.subr.mxu0 0.0
    %832 = vmatpush1.msra.mxu0 0.0
    %833 = vmatprep.subr.mxu0 0.0
    %834 = vmatpush1.msra.mxu0 0.0
    %835 = vmatprep.subr.mxu0 0.0
    %836 = vmatpush1.msra.mxu0 0.0
    %837 = vmatprep.subr.mxu0 0.0
    %838 = vmatpush1.msra.mxu0 0.0
    %839 = vmatprep.subr.mxu0 0.0
    %840 = vmatpush1.msra.mxu0 0.0
    %841 = vmatprep.subr.mxu0 0.0
    %842 = vmatpush1.msra.mxu0 0.0
    %843 = vmatprep.subr.mxu0 0.0
    %844 = vmatpush1.msra.mxu0 0.0
    %845 = vmatprep.subr.mxu0 0.0
    %846 = vmatpush1.msra.mxu0 0.0
    %847 = vmatprep.subr.mxu0 0.0
    %848 = vmatpush1.msra.mxu0 0.0
    %849 = vmatprep.subr.mxu0 0.0
    %850 = vmatpush1.msra.mxu0 0.0
    %851 = vmatprep.subr.mxu0 0.0
    %852 = vmatpush1.msra.mxu0 0.0
    %853 = vmatprep.subr.mxu0 0.0
    %854 = vmatpush1.msra.mxu0 0.0
    %855 = vmatprep.subr.mxu0 0.0
    %856 = vmatpush1.msra.mxu0 0.0
    %857 = vmatprep.subr.mxu0 0.0
    %858 = vmatpush1.msra.mxu0 0.0
    %859 = vmatprep.subr.mxu0 0.0
    %860 = vmatpush1.msra.mxu0 0.0
    %861 = vmatprep.subr.mxu0 0.0
    %862 = vmatpush1.msra.mxu0 0.0
    %863 = vmatprep.subr.mxu0 0.0
    %864 = vmatpush1.msra.mxu0 0.0
    %865 = vmatprep.subr.mxu0 0.0
    %866 = vmatpush1.msra.mxu0 0.0
    %867 = vmatprep.subr.mxu0 0.0
    %868 = vmatpush1.msra.mxu0 0.0
    %869 = vmatprep.subr.mxu0 0.0
    %870 = vmatpush1.msra.mxu0 0.0
    %871 = vmatprep.subr.mxu0 0.0
    %872 = vmatpush1.msra.mxu0 0.0
    %873 = vmatprep.subr.mxu0 0.0
    %874 = vmatpush1.msra.mxu0 0.0
    %875 = vmatprep.subr.mxu0 0.0
    %876 = vmatpush1.msra.mxu0 0.0
    %877 = vmatprep.subr.mxu0 0.0
    %878 = vmatpush1.msra.mxu0 0.0
    %879 = vmatprep.subr.mxu0 0.0
    %880 = vmatpush1.msra.mxu0 0.0
    %881 = vmatprep.mubr.f32.mxu0 0.0
    %882 = vmatmul.mubr.f32.gmra.mrb[0].mxu0 %v815
    %v883 = vpop.f32.mrb[0].mxu0
    %v884 = vadd.f32 %v809, %v883
    %v885 = vpop.f32.mrb[0].mxu0
    %886 = vdwg.mxu0
    %v887 = vadd.f32 %v884, %v456
    %v888 = vxor.u32 %v887, 2147483648
    %v889 = vmul.f32 %v888, 1.442695
    %v890 = vpow.pop %v889
    %v891 = vadd.f32 %v890, 1.0
    %v892 = vrcp.pop %v891
    %v893 = vmul.f32 1.0, %v892
    %v894 = vtanh.pop %v887
    %v895 = vmul.f32 %v893, %v480
    %897 = vrot.lane.b32.xlu0 %v894, 64
    %v898 = vpop.permute.xlu0 %897
    %v900 = vmul.f32 %v893, %v898
    %902 = vrot.lane.b32.xlu0 %v900, 32
    %v903 = vpop.permute.xlu0 %902
    %v905 = vadd.f32 %v895, %v903
    %v906 = vtanh.pop %v905
    %908 = vrot.lane.b32.xlu0 %v906, 64
    %v909 = vpop.permute.xlu0 %908
    %v911 = vmul.f32 %v893, %v909
    %913 = vrot.lane.b32.xlu0 %v911, 32
    %v914 = vpop.permute.xlu0 %913
    %v915 = vsel %vm124, %v914, 0
    %917 = vmatprep.subr.mxu0 0.0
    %918 = vmatpush1.msra.mxu0 %v98
    %919 = vmatprep.subr.mxu0 0.0
    %920 = vmatpush1.msra.mxu0 %v99
    %921 = vmatprep.subr.mxu0 0.0
    %922 = vmatpush1.msra.mxu0 %v100
    %923 = vmatprep.subr.mxu0 0.0
    %924 = vmatpush1.msra.mxu0 %v101
    %925 = vmatprep.subr.mxu0 0.0
    %926 = vmatpush1.msra.mxu0 0.0
    %927 = vmatprep.subr.mxu0 0.0
    %928 = vmatpush1.msra.mxu0 0.0
    %929 = vmatprep.subr.mxu0 0.0
    %930 = vmatpush1.msra.mxu0 0.0
    %931 = vmatprep.subr.mxu0 0.0
    %932 = vmatpush1.msra.mxu0 0.0
    %933 = vmatprep.subr.mxu0 0.0
    %934 = vmatpush1.msra.mxu0 0.0
    %935 = vmatprep.subr.mxu0 0.0
    %936 = vmatpush1.msra.mxu0 0.0
    %937 = vmatprep.subr.mxu0 0.0
    %938 = vmatpush1.msra.mxu0 0.0
    %939 = vmatprep.subr.mxu0 0.0
    %940 = vmatpush1.msra.mxu0 0.0
    %941 = vmatprep.subr.mxu0 0.0
    %942 = vmatpush1.msra.mxu0 0.0
    %943 = vmatprep.subr.mxu0 0.0
    %944 = vmatpush1.msra.mxu0 0.0
    %945 = vmatprep.subr.mxu0 0.0
    %946 = vmatpush1.msra.mxu0 0.0
    %947 = vmatprep.subr.mxu0 0.0
    %948 = vmatpush1.msra.mxu0 0.0
    %949 = vmatprep.subr.mxu0 0.0
    %950 = vmatpush1.msra.mxu0 0.0
    %951 = vmatprep.subr.mxu0 0.0
    %952 = vmatpush1.msra.mxu0 0.0
    %953 = vmatprep.subr.mxu0 0.0
    %954 = vmatpush1.msra.mxu0 0.0
    %955 = vmatprep.subr.mxu0 0.0
    %956 = vmatpush1.msra.mxu0 0.0
    %957 = vmatprep.subr.mxu0 0.0
    %958 = vmatpush1.msra.mxu0 0.0
    %959 = vmatprep.subr.mxu0 0.0
    %960 = vmatpush1.msra.mxu0 0.0
    %961 = vmatprep.subr.mxu0 0.0
    %962 = vmatpush1.msra.mxu0 0.0
    %963 = vmatprep.subr.mxu0 0.0
    %964 = vmatpush1.msra.mxu0 0.0
    %965 = vmatprep.subr.mxu0 0.0
    %966 = vmatpush1.msra.mxu0 0.0
    %967 = vmatprep.subr.mxu0 0.0
    %968 = vmatpush1.msra.mxu0 0.0
    %969 = vmatprep.subr.mxu0 0.0
    %970 = vmatpush1.msra.mxu0 0.0
    %971 = vmatprep.subr.mxu0 0.0
    %972 = vmatpush1.msra.mxu0 0.0
    %973 = vmatprep.subr.mxu0 0.0
    %974 = vmatpush1.msra.mxu0 0.0
    %975 = vmatprep.subr.mxu0 0.0
    %976 = vmatpush1.msra.mxu0 0.0
    %977 = vmatprep.subr.mxu0 0.0
    %978 = vmatpush1.msra.mxu0 0.0
    %979 = vmatprep.subr.mxu0 0.0
    %980 = vmatpush1.msra.mxu0 0.0
    %981 = vmatprep.mubr.f32.mxu0 0.0
    %982 = vmatmul.mubr.f32.gmra.mrb[0].mxu0 %v915
    %v983 = vpop.f32.mrb[0].mxu0
    %v984 = vadd.f32 %v491, %v983
    %v985 = vpop.f32.mrb[0].mxu0
    %986 = vdwg.mxu0
    %v987 = vsel %vm115, %v984, -inf
    %v988 = vsel %vm198, %v987, -inf
    %989 = vmax.index.xlane.f32.xlu0 %v988
    %v990 = vpop.xlane.xlu0 %989
    %vm991 = vcmp.eq.s32.totalorder %v91, %v990
    %v992 = vsel %vm991, 1, 0
    %v993 = vcvt.s32.f32 %v992
    %994 = vmatprep.subr.mxu0 0.0
    %995 = vmatpush1.msra.mxu0 %v94
    %996 = vmatprep.subr.mxu0 0.0
    %997 = vmatpush1.msra.mxu0 %v95
    %998 = vmatprep.subr.mxu0 0.0
    %999 = vmatpush1.msra.mxu0 %v96
    %1000 = vmatprep.subr.mxu0 0.0
    %1001 = vmatpush1.msra.mxu0 %v97
    %1002 = vmatprep.subr.mxu0 0.0
    %1003 = vmatpush1.msra.mxu0 0.0
    %1004 = vmatprep.subr.mxu0 0.0
    %1005 = vmatpush1.msra.mxu0 0.0
    %1006 = vmatprep.subr.mxu0 0.0
    %1007 = vmatpush1.msra.mxu0 0.0
    %1008 = vmatprep.subr.mxu0 0.0
    %1009 = vmatpush1.msra.mxu0 0.0
    %1010 = vmatprep.subr.mxu0 0.0
    %1011 = vmatpush1.msra.mxu0 0.0
    %1012 = vmatprep.subr.mxu0 0.0
    %1013 = vmatpush1.msra.mxu0 0.0
    %1014 = vmatprep.subr.mxu0 0.0
    %1015 = vmatpush1.msra.mxu0 0.0
    %1016 = vmatprep.subr.mxu0 0.0
    %1017 = vmatpush1.msra.mxu0 0.0
    %1018 = vmatprep.subr.mxu0 0.0
    %1019 = vmatpush1.msra.mxu0 0.0
    %1020 = vmatprep.subr.mxu0 0.0
    %1021 = vmatpush1.msra.mxu0 0.0
    %1022 = vmatprep.subr.mxu0 0.0
    %1023 = vmatpush1.msra.mxu0 0.0
    %1024 = vmatprep.subr.mxu0 0.0
    %1025 = vmatpush1.msra.mxu0 0.0
    %1026 = vmatprep.subr.mxu0 0.0
    %1027 = vmatpush1.msra.mxu0 0.0
    %1028 = vmatprep.subr.mxu0 0.0
    %1029 = vmatpush1.msra.mxu0 0.0
    %1030 = vmatprep.subr.mxu0 0.0
    %1031 = vmatpush1.msra.mxu0 0.0
    %1032 = vmatprep.subr.mxu0 0.0
    %1033 = vmatpush1.msra.mxu0 0.0
    %1034 = vmatprep.subr.mxu0 0.0
    %1035 = vmatpush1.msra.mxu0 0.0
    %1036 = vmatprep.subr.mxu0 0.0
    %1037 = vmatpush1.msra.mxu0 0.0
    %1038 = vmatprep.subr.mxu0 0.0
    %1039 = vmatpush1.msra.mxu0 0.0
    %1040 = vmatprep.subr.mxu0 0.0
    %1041 = vmatpush1.msra.mxu0 0.0
    %1042 = vmatprep.subr.mxu0 0.0
    %1043 = vmatpush1.msra.mxu0 0.0
    %1044 = vmatprep.subr.mxu0 0.0
    %1045 = vmatpush1.msra.mxu0 0.0
    %1046 = vmatprep.subr.mxu0 0.0
    %1047 = vmatpush1.msra.mxu0 0.0
    %1048 = vmatprep.subr.mxu0 0.0
    %1049 = vmatpush1.msra.mxu0 0.0
    %1050 = vmatprep.subr.mxu0 0.0
    %1051 = vmatpush1.msra.mxu0 0.0
    %1052 = vmatprep.subr.mxu0 0.0
    %1053 = vmatpush1.msra.mxu0 0.0
    %1054 = vmatprep.subr.mxu0 0.0
    %1055 = vmatpush1.msra.mxu0 0.0
    %1056 = vmatprep.subr.mxu0 0.0
    %1057 = vmatpush1.msra.mxu0 0.0
    %1058 = vmatprep.mubr.f32.mxu0 0.0
    %1059 = vmatmul.mubr.f32.gmra.mrb[0].mxu0 %v815
    %v1060 = vpop.f32.mrb[0].mxu0
    %v1061 = vadd.f32 0.0, %v1060
    %v1062 = vpop.f32.mrb[0].mxu0
    %1063 = vdwg.mxu0
    %v1065 = vsel %vm198, %v993, 0
    %1067 = vmatprep.subr.mxu0 0.0
    %1068 = vmatpush1.msra.mxu0 %v92
    %1069 = vmatprep.subr.mxu0 0.0
    %1070 = vmatpush1.msra.mxu0 %v204
    %1071 = vmatprep.subr.mxu0 0.0
    %1072 = vmatpush1.msra.mxu0 0.0
    %1073 = vmatprep.subr.mxu0 0.0
    %1074 = vmatpush1.msra.mxu0 0.0
    %1075 = vmatprep.subr.mxu0 0.0
    %1076 = vmatpush1.msra.mxu0 0.0
    %1077 = vmatprep.subr.mxu0 0.0
    %1078 = vmatpush1.msra.mxu0 0.0
    %1079 = vmatprep.subr.mxu0 0.0
    %1080 = vmatpush1.msra.mxu0 0.0
    %1081 = vmatprep.subr.mxu0 0.0
    %1082 = vmatpush1.msra.mxu0 0.0
    %1083 = vmatprep.subr.mxu0 0.0
    %1084 = vmatpush1.msra.mxu0 0.0
    %1085 = vmatprep.subr.mxu0 0.0
    %1086 = vmatpush1.msra.mxu0 0.0
    %1087 = vmatprep.subr.mxu0 0.0
    %1088 = vmatpush1.msra.mxu0 0.0
    %1089 = vmatprep.subr.mxu0 0.0
    %1090 = vmatpush1.msra.mxu0 0.0
    %1091 = vmatprep.subr.mxu0 0.0
    %1092 = vmatpush1.msra.mxu0 0.0
    %1093 = vmatprep.subr.mxu0 0.0
    %1094 = vmatpush1.msra.mxu0 0.0
    %1095 = vmatprep.subr.mxu0 0.0
    %1096 = vmatpush1.msra.mxu0 0.0
    %1097 = vmatprep.subr.mxu0 0.0
    %1098 = vmatpush1.msra.mxu0 0.0
    %1099 = vmatprep.subr.mxu0 0.0
    %1100 = vmatpush1.msra.mxu0 0.0
    %1101 = vmatprep.subr.mxu0 0.0
    %1102 = vmatpush1.msra.mxu0 0.0
    %1103 = vmatprep.subr.mxu0 0.0
    %1104 = vmatpush1.msra.mxu0 0.0
    %1105 = vmatprep.subr.mxu0 0.0
    %1106 = vmatpush1.msra.mxu0 0.0
    %1107 = vmatprep.subr.mxu0 0.0
    %1108 = vmatpush1.msra.mxu0 0.0
    %1109 = vmatprep.subr.mxu0 0.0
    %1110 = vmatpush1.msra.mxu0 0.0
    %1111 = vmatprep.subr.mxu0 0.0
    %1112 = vmatpush1.msra.mxu0 0.0
    %1113 = vmatprep.subr.mxu0 0.0
    %1114 = vmatpush1.msra.mxu0 0.0
    %1115 = vmatprep.subr.mxu0 0.0
    %1116 = vmatpush1.msra.mxu0 0.0
    %1117 = vmatprep.subr.mxu0 0.0
    %1118 = vmatpush1.msra.mxu0 0.0
    %1119 = vmatprep.subr.mxu0 0.0
    %1120 = vmatpush1.msra.mxu0 0.0
    %1121 = vmatprep.subr.mxu0 0.0
    %1122 = vmatpush1.msra.mxu0 0.0
    %1123 = vmatprep.subr.mxu0 0.0
    %1124 = vmatpush1.msra.mxu0 0.0
    %1125 = vmatprep.subr.mxu0 0.0
    %1126 = vmatpush1.msra.mxu0 0.0
    %1127 = vmatprep.subr.mxu0 0.0
    %1128 = vmatpush1.msra.mxu0 0.0
    %1129 = vmatprep.subr.mxu0 0.0
    %1130 = vmatpush1.msra.mxu0 0.0
    %1131 = vmatprep.mubr.f32.mxu0 0.0
    %1132 = vmatmul.mubr.f32.gmra.mrb[0].mxu0 %v1065
    %v1133 = vpop.f32.mrb[0].mxu0
    %v1134 = vadd.f32 %v1061, %v1133
    %v1135 = vpop.f32.mrb[0].mxu0
    %1136 = vdwg.mxu0
    %v1137 = vxor.u32 %v1134, 2147483648
    %v1138 = vmul.f32 %v1137, 1.442695
    %v1139 = vpow.pop %v1138
    %v1140 = vadd.f32 %v1139, 1.0
    %v1141 = vrcp.pop %v1140
    %v1142 = vmul.f32 1.0, %v1141
    %v1143 = vtanh.pop %v1134
    %v1144 = vmul.f32 %v1142, %v735
    %1146 = vrot.lane.b32.xlu0 %v1143, 64
    %v1147 = vpop.permute.xlu0 %1146
    %v1149 = vmul.f32 %v1142, %v1147
    %1151 = vrot.lane.b32.xlu0 %v1149, 32
    %v1152 = vpop.permute.xlu0 %1151
    %v1154 = vadd.f32 %v1144, %v1152
    %v1155 = vtanh.pop %v1154
    %1157 = vrot.lane.b32.xlu0 %v1155, 64
    %v1158 = vpop.permute.xlu0 %1157
    %v1160 = vmul.f32 %v1142, %v1158
    %1161 = vmatprep.subr.mxu0 0.0
    %1162 = vmatpush1.msra.mxu0 %v107
    %1163 = vmatprep.subr.mxu0 0.0
    %1164 = vmatpush1.msra.mxu0 %v108
    %1165 = vmatprep.subr.mxu0 0.0
    %1166 = vmatpush1.msra.mxu0 %v109
    %1167 = vmatprep.subr.mxu0 0.0
    %1168 = vmatpush1.msra.mxu0 %v110
    %1169 = vmatprep.subr.mxu0 0.0
    %1170 = vmatpush1.msra.mxu0 0.0
    %1171 = vmatprep.subr.mxu0 0.0
    %1172 = vmatpush1.msra.mxu0 0.0
    %1173 = vmatprep.subr.mxu0 0.0
    %1174 = vmatpush1.msra.mxu0 0.0
    %1175 = vmatprep.subr.mxu0 0.0
    %1176 = vmatpush1.msra.mxu0 0.0
    %1177 = vmatprep.subr.mxu0 0.0
    %1178 = vmatpush1.msra.mxu0 0.0
    %1179 = vmatprep.subr.mxu0 0.0
    %1180 = vmatpush1.msra.mxu0 0.0
    %1181 = vmatprep.subr.mxu0 0.0
    %1182 = vmatpush1.msra.mxu0 0.0
    %1183 = vmatprep.subr.mxu0 0.0
    %1184 = vmatpush1.msra.mxu0 0.0
    %1185 = vmatprep.subr.mxu0 0.0
    %1186 = vmatpush1.msra.mxu0 0.0
    %1187 = vmatprep.subr.mxu0 0.0
    %1188 = vmatpush1.msra.mxu0 0.0
    %1189 = vmatprep.subr.mxu0 0.0
    %1190 = vmatpush1.msra.mxu0 0.0
    %1191 = vmatprep.subr.mxu0 0.0
    %1192 = vmatpush1.msra.mxu0 0.0
    %1193 = vmatprep.subr.mxu0 0.0
    %1194 = vmatpush1.msra.mxu0 0.0
    %1195 = vmatprep.subr.mxu0 0.0
    %1196 = vmatpush1.msra.mxu0 0.0
    %1197 = vmatprep.subr.mxu0 0.0
    %1198 = vmatpush1.msra.mxu0 0.0
    %1199 = vmatprep.subr.mxu0 0.0
    %1200 = vmatpush1.msra.mxu0 0.0
    %1201 = vmatprep.subr.mxu0 0.0
    %1202 = vmatpush1.msra.mxu0 0.0
    %1203 = vmatprep.subr.mxu0 0.0
    %1204 = vmatpush1.msra.mxu0 0.0
    %1205 = vmatprep.subr.mxu0 0.0
    %1206 = vmatpush1.msra.mxu0 0.0
    %1207 = vmatprep.subr.mxu0 0.0
    %1208 = vmatpush1.msra.mxu0 0.0
    %1209 = vmatprep.subr.mxu0 0.0
    %1210 = vmatpush1.msra.mxu0 0.0
    %1211 = vmatprep.subr.mxu0 0.0
    %1212 = vmatpush1.msra.mxu0 0.0
    %1213 = vmatprep.subr.mxu0 0.0
    %1214 = vmatpush1.msra.mxu0 0.0
    %1215 = vmatprep.subr.mxu0 0.0
    %1216 = vmatpush1.msra.mxu0 0.0
    %1217 = vmatprep.subr.mxu0 0.0
    %1218 = vmatpush1.msra.mxu0 0.0
    %1219 = vmatprep.subr.mxu0 0.0
    %1220 = vmatpush1.msra.mxu0 0.0
    %1221 = vmatprep.subr.mxu0 0.0
    %1222 = vmatpush1.msra.mxu0 0.0
    %1223 = vmatprep.subr.mxu0 0.0
    %1224 = vmatpush1.msra.mxu0 0.0
    %1225 = vmatprep.mubr.f32.mxu0 0.0
    %1226 = vmatmul.mubr.f32.gmra.mrb[0].mxu0 %v915
    %v1227 = vpop.f32.mrb[0].mxu0
    %v1228 = vadd.f32 0.0, %v1227
    %v1229 = vpop.f32.mrb[0].mxu0
    %1230 = vdwg.mxu0
    %1232 = vrot.lane.b32.xlu0 %v1160, 32
    %v1233 = vpop.permute.xlu0 %1232
    %v1234 = vsel %vm124, %v1233, 0
    %1236 = vmatprep.subr.mxu0 0.0
    %1237 = vmatpush1.msra.mxu0 %v103
    %1238 = vmatprep.subr.mxu0 0.0
    %1239 = vmatpush1.msra.mxu0 %v104
    %1240 = vmatprep.subr.mxu0 0.0
    %1241 = vmatpush1.msra.mxu0 %v105
    %1242 = vmatprep.subr.mxu0 0.0
    %1243 = vmatpush1.msra.mxu0 %v106
    %1244 = vmatprep.subr.mxu0 0.0
    %1245 = vmatpush1.msra.mxu0 0.0
    %1246 = vmatprep.subr.mxu0 0.0
    %1247 = vmatpush1.msra.mxu0 0.0
    %1248 = vmatprep.subr.mxu0 0.0
    %1249 = vmatpush1.msra.mxu0 0.0
    %1250 = vmatprep.subr.mxu0 0.0
    %1251 = vmatpush1.msra.mxu0 0.0
    %1252 = vmatprep.subr.mxu0 0.0
    %1253 = vmatpush1.msra.mxu0 0.0
    %1254 = vmatprep.subr.mxu0 0.0
    %1255 = vmatpush1.msra.mxu0 0.0
    %1256 = vmatprep.subr.mxu0 0.0
    %1257 = vmatpush1.msra.mxu0 0.0
    %1258 = vmatprep.subr.mxu0 0.0
    %1259 = vmatpush1.msra.mxu0 0.0
    %1260 = vmatprep.subr.mxu0 0.0
    %1261 = vmatpush1.msra.mxu0 0.0
    %1262 = vmatprep.subr.mxu0 0.0
    %1263 = vmatpush1.msra.mxu0 0.0
    %1264 = vmatprep.subr.mxu0 0.0
    %1265 = vmatpush1.msra.mxu0 0.0
    %1266 = vmatprep.subr.mxu0 0.0
    %1267 = vmatpush1.msra.mxu0 0.0
    %1268 = vmatprep.subr.mxu0 0.0
    %1269 = vmatpush1.msra.mxu0 0.0
    %1270 = vmatprep.subr.mxu0 0.0
    %1271 = vmatpush1.msra.mxu0 0.0
    %1272 = vmatprep.subr.mxu0 0.0
    %1273 = vmatpush1.msra.mxu0 0.0
    %1274 = vmatprep.subr.mxu0 0.0
    %1275 = vmatpush1.msra.mxu0 0.0
    %1276 = vmatprep.subr.mxu0 0.0
    %1277 = vmatpush1.msra.mxu0 0.0
    %1278 = vmatprep.subr.mxu0 0.0
    %1279 = vmatpush1.msra.mxu0 0.0
    %1280 = vmatprep.subr.mxu0 0.0
    %1281 = vmatpush1.msra.mxu0 0.0
    %1282 = vmatprep.subr.mxu0 0.0
    %1283 = vmatpush1.msra.mxu0 0.0
    %1284 = vmatprep.subr.mxu0 0.0
    %1285 = vmatpush1.msra.mxu0 0.0
    %1286 = vmatprep.subr.mxu0 0.0
    %1287 = vmatpush1.msra.mxu0 0.0
    %1288 = vmatprep.subr.mxu0 0.0
    %1289 = vmatpush1.msra.mxu0 0.0
    %1290 = vmatprep.subr.mxu0 0.0
    %1291 = vmatpush1.msra.mxu0 0.0
    %1292 = vmatprep.subr.mxu0 0.0
    %1293 = vmatpush1.msra.mxu0 0.0
    %1294 = vmatprep.subr.mxu0 0.0
    %1295 = vmatpush1.msra.mxu0 0.0
    %1296 = vmatprep.subr.mxu0 0.0
    %1297 = vmatpush1.msra.mxu0 0.0
    %1298 = vmatprep.subr.mxu0 0.0
    %1299 = vmatpush1.msra.mxu0 0.0
    %1300 = vmatprep.mubr.f32.mxu0 0.0
    %1301 = vmatmul.mubr.f32.gmra.mrb[0].mxu0 %v1234
    %v1302 = vpop.f32.mrb[0].mxu0
    %v1303 = vadd.f32 %v1228, %v1302
    %v1304 = vpop.f32.mrb[0].mxu0
    %1305 = vdwg.mxu0
    %v1306 = vadd.f32 %v1303, %v456
    %v1307 = vxor.u32 %v1306, 2147483648
    %v1308 = vmul.f32 %v1307, 1.442695
    %v1309 = vpow.pop %v1308
    %v1310 = vadd.f32 %v1309, 1.0
    %v1311 = vrcp.pop %v1310
    %v1312 = vmul.f32 1.0, %v1311
    %v1313 = vtanh.pop %v1306
    %v1314 = vmul.f32 %v1312, %v905
    %1316 = vrot.lane.b32.xlu0 %v1313, 64
    %v1317 = vpop.permute.xlu0 %1316
    %v1319 = vmul.f32 %v1312, %v1317
    %1321 = vrot.lane.b32.xlu0 %v1319, 32
    %v1322 = vpop.permute.xlu0 %1321
    %v1324 = vadd.f32 %v1314, %v1322
    %v1325 = vtanh.pop %v1324
    %1327 = vrot.lane.b32.xlu0 %v1325, 64
    %v1328 = vpop.permute.xlu0 %1327
    %v1330 = vmul.f32 %v1312, %v1328
    %1332 = vrot.lane.b32.xlu0 %v1330, 32
    %v1333 = vpop.permute.xlu0 %1332
    %v1334 = vsel %vm124, %v1333, 0
    %1336 = vmatprep.subr.mxu0 0.0
    %1337 = vmatpush1.msra.mxu0 %v98
    %1338 = vmatprep.subr.mxu0 0.0
    %1339 = vmatpush1.msra.mxu0 %v99
    %1340 = vmatprep.subr.mxu0 0.0
    %1341 = vmatpush1.msra.mxu0 %v100
    %1342 = vmatprep.subr.mxu0 0.0
    %1343 = vmatpush1.msra.mxu0 %v101
    %1344 = vmatprep.subr.mxu0 0.0
    %1345 = vmatpush1.msra.mxu0 0.0
    %1346 = vmatprep.subr.mxu0 0.0
    %1347 = vmatpush1.msra.mxu0 0.0
    %1348 = vmatprep.subr.mxu0 0.0
    %1349 = vmatpush1.msra.mxu0 0.0
    %1350 = vmatprep.subr.mxu0 0.0
    %1351 = vmatpush1.msra.mxu0 0.0
    %1352 = vmatprep.subr.mxu0 0.0
    %1353 = vmatpush1.msra.mxu0 0.0
    %1354 = vmatprep.subr.mxu0 0.0
    %1355 = vmatpush1.msra.mxu0 0.0
    %1356 = vmatprep.subr.mxu0 0.0
    %1357 = vmatpush1.msra.mxu0 0.0
    %1358 = vmatprep.subr.mxu0 0.0
    %1359 = vmatpush1.msra.mxu0 0.0
    %1360 = vmatprep.subr.mxu0 0.0
    %1361 = vmatpush1.msra.mxu0 0.0
    %1362 = vmatprep.subr.mxu0 0.0
    %1363 = vmatpush1.msra.mxu0 0.0
    %1364 = vmatprep.subr.mxu0 0.0
    %1365 = vmatpush1.msra.mxu0 0.0
    %1366 = vmatprep.subr.mxu0 0.0
    %1367 = vmatpush1.msra.mxu0 0.0
    %1368 = vmatprep.subr.mxu0 0.0
    %1369 = vmatpush1.msra.mxu0 0.0
    %1370 = vmatprep.subr.mxu0 0.0
    %1371 = vmatpush1.msra.mxu0 0.0
    %1372 = vmatprep.subr.mxu0 0.0
    %1373 = vmatpush1.msra.mxu0 0.0
    %1374 = vmatprep.subr.mxu0 0.0
    %1375 = vmatpush1.msra.mxu0 0.0
    %1376 = vmatprep.subr.mxu0 0.0
    %1377 = vmatpush1.msra.mxu0 0.0
    %1378 = vmatprep.subr.mxu0 0.0
    %1379 = vmatpush1.msra.mxu0 0.0
    %1380 = vmatprep.subr.mxu0 0.0
    %1381 = vmatpush1.msra.mxu0 0.0
    %1382 = vmatprep.subr.mxu0 0.0
    %1383 = vmatpush1.msra.mxu0 0.0
    %1384 = vmatprep.subr.mxu0 0.0
    %1385 = vmatpush1.msra.mxu0 0.0
    %1386 = vmatprep.subr.mxu0 0.0
    %1387 = vmatpush1.msra.mxu0 0.0
    %1388 = vmatprep.subr.mxu0 0.0
    %1389 = vmatpush1.msra.mxu0 0.0
    %1390 = vmatprep.subr.mxu0 0.0
    %1391 = vmatpush1.msra.mxu0 0.0
    %1392 = vmatprep.subr.mxu0 0.0
    %1393 = vmatpush1.msra.mxu0 0.0
    %1394 = vmatprep.subr.mxu0 0.0
    %1395 = vmatpush1.msra.mxu0 0.0
    %1396 = vmatprep.subr.mxu0 0.0
    %1397 = vmatpush1.msra.mxu0 0.0
    %1398 = vmatprep.subr.mxu0 0.0
    %1399 = vmatpush1.msra.mxu0 0.0
    %1400 = vmatprep.mubr.f32.mxu0 0.0
    %1401 = vmatmul.mubr.f32.gmra.mrb[0].mxu0 %v1334
    %v1402 = vpop.f32.mrb[0].mxu0
    %v1403 = vadd.f32 %v491, %v1402
    %v1404 = vpop.f32.mrb[0].mxu0
    %1405 = vdwg.mxu0
    %v1406 = vsel %vm114, %v1403, -inf
    %v1407 = vsel %vm198, %v1406, -inf
    %1408 = vmax.index.xlane.f32.xlu0 %v1407
    %v1409 = vpop.xlane.xlu0 %1408
    %vm1410 = vcmp.eq.s32.totalorder %v91, %v1409
    %v1411 = vsel %vm1410, 1, 0
    %v1412 = vcvt.s32.f32 %v1411
    %1413 = vmatprep.subr.mxu0 0.0
    %1414 = vmatpush1.msra.mxu0 %v94
    %1415 = vmatprep.subr.mxu0 0.0
    %1416 = vmatpush1.msra.mxu0 %v95
    %1417 = vmatprep.subr.mxu0 0.0
    %1418 = vmatpush1.msra.mxu0 %v96
    %1419 = vmatprep.subr.mxu0 0.0
    %1420 = vmatpush1.msra.mxu0 %v97
    %1421 = vmatprep.subr.mxu0 0.0
    %1422 = vmatpush1.msra.mxu0 0.0
    %1423 = vmatprep.subr.mxu0 0.0
    %1424 = vmatpush1.msra.mxu0 0.0
    %1425 = vmatprep.subr.mxu0 0.0
    %1426 = vmatpush1.msra.mxu0 0.0
    %1427 = vmatprep.subr.mxu0 0.0
    %1428 = vmatpush1.msra.mxu0 0.0
    %1429 = vmatprep.subr.mxu0 0.0
    %1430 = vmatpush1.msra.mxu0 0.0
    %1431 = vmatprep.subr.mxu0 0.0
    %1432 = vmatpush1.msra.mxu0 0.0
    %1433 = vmatprep.subr.mxu0 0.0
    %1434 = vmatpush1.msra.mxu0 0.0
    %1435 = vmatprep.subr.mxu0 0.0
    %1436 = vmatpush1.msra.mxu0 0.0
    %1437 = vmatprep.subr.mxu0 0.0
    %1438 = vmatpush1.msra.mxu0 0.0
    %1439 = vmatprep.subr.mxu0 0.0
    %1440 = vmatpush1.msra.mxu0 0.0
    %1441 = vmatprep.subr.mxu0 0.0
    %1442 = vmatpush1.msra.mxu0 0.0
    %1443 = vmatprep.subr.mxu0 0.0
    %1444 = vmatpush1.msra.mxu0 0.0
    %1445 = vmatprep.subr.mxu0 0.0
    %1446 = vmatpush1.msra.mxu0 0.0
    %1447 = vmatprep.subr.mxu0 0.0
    %1448 = vmatpush1.msra.mxu0 0.0
    %1449 = vmatprep.subr.mxu0 0.0
    %1450 = vmatpush1.msra.mxu0 0.0
    %1451 = vmatprep.subr.mxu0 0.0
    %1452 = vmatpush1.msra.mxu0 0.0
    %1453 = vmatprep.subr.mxu0 0.0
    %1454 = vmatpush1.msra.mxu0 0.0
    %1455 = vmatprep.subr.mxu0 0.0
    %1456 = vmatpush1.msra.mxu0 0.0
    %1457 = vmatprep.subr.mxu0 0.0
    %1458 = vmatpush1.msra.mxu0 0.0
    %1459 = vmatprep.subr.mxu0 0.0
    %1460 = vmatpush1.msra.mxu0 0.0
    %1461 = vmatprep.subr.mxu0 0.0
    %1462 = vmatpush1.msra.mxu0 0.0
    %1463 = vmatprep.subr.mxu0 0.0
    %1464 = vmatpush1.msra.mxu0 0.0
    %1465 = vmatprep.subr.mxu0 0.0
    %1466 = vmatpush1.msra.mxu0 0.0
    %1467 = vmatprep.subr.mxu0 0.0
    %1468 = vmatpush1.msra.mxu0 0.0
    %1469 = vmatprep.subr.mxu0 0.0
    %1470 = vmatpush1.msra.mxu0 0.0
    %1471 = vmatprep.subr.mxu0 0.0
    %1472 = vmatpush1.msra.mxu0 0.0
    %1473 = vmatprep.subr.mxu0 0.0
    %1474 = vmatpush1.msra.mxu0 0.0
    %1475 = vmatprep.subr.mxu0 0.0
    %1476 = vmatpush1.msra.mxu0 0.0
    %1477 = vmatprep.mubr.f32.mxu0 0.0
    %1478 = vmatmul.mubr.f32.gmra.mrb[0].mxu0 %v1234
    %v1479 = vpop.f32.mrb[0].mxu0
    %v1480 = vadd.f32 0.0, %v1479
    %v1481 = vpop.f32.mrb[0].mxu0
    %1482 = vdwg.mxu0
    %v1484 = vsel %vm198, %v1412, 0
    %1486 = vmatprep.subr.mxu0 0.0
    %1487 = vmatpush1.msra.mxu0 %v92
    %1488 = vmatprep.subr.mxu0 0.0
    %1489 = vmatpush1.msra.mxu0 %v204
    %1490 = vmatprep.subr.mxu0 0.0
    %1491 = vmatpush1.msra.mxu0 0.0
    %1492 = vmatprep.subr.mxu0 0.0
    %1493 = vmatpush1.msra.mxu0 0.0
    %1494 = vmatprep.subr.mxu0 0.0
    %1495 = vmatpush1.msra.mxu0 0.0
    %1496 = vmatprep.subr.mxu0 0.0
    %1497 = vmatpush1.msra.mxu0 0.0
    %1498 = vmatprep.subr.mxu0 0.0
    %1499 = vmatpush1.msra.mxu0 0.0
    %1500 = vmatprep.subr.mxu0 0.0
    %1501 = vmatpush1.msra.mxu0 0.0
    %1502 = vmatprep.subr.mxu0 0.0
    %1503 = vmatpush1.msra.mxu0 0.0
    %1504 = vmatprep.subr.mxu0 0.0
    %1505 = vmatpush1.msra.mxu0 0.0
    %1506 = vmatprep.subr.mxu0 0.0
    %1507 = vmatpush1.msra.mxu0 0.0
    %1508 = vmatprep.subr.mxu0 0.0
    %1509 = vmatpush1.msra.mxu0 0.0
    %1510 = vmatprep.subr.mxu0 0.0
    %1511 = vmatpush1.msra.mxu0 0.0
    %1512 = vmatprep.subr.mxu0 0.0
    %1513 = vmatpush1.msra.mxu0 0.0
    %1514 = vmatprep.subr.mxu0 0.0
    %1515 = vmatpush1.msra.mxu0 0.0
    %1516 = vmatprep.subr.mxu0 0.0
    %1517 = vmatpush1.msra.mxu0 0.0
    %1518 = vmatprep.subr.mxu0 0.0
    %1519 = vmatpush1.msra.mxu0 0.0
    %1520 = vmatprep.subr.mxu0 0.0
    %1521 = vmatpush1.msra.mxu0 0.0
    %1522 = vmatprep.subr.mxu0 0.0
    %1523 = vmatpush1.msra.mxu0 0.0
    %1524 = vmatprep.subr.mxu0 0.0
    %1525 = vmatpush1.msra.mxu0 0.0
    %1526 = vmatprep.subr.mxu0 0.0
    %1527 = vmatpush1.msra.mxu0 0.0
    %1528 = vmatprep.subr.mxu0 0.0
    %1529 = vmatpush1.msra.mxu0 0.0
    %1530 = vmatprep.subr.mxu0 0.0
    %1531 = vmatpush1.msra.mxu0 0.0
    %1532 = vmatprep.subr.mxu0 0.0
    %1533 = vmatpush1.msra.mxu0 0.0
    %1534 = vmatprep.subr.mxu0 0.0
    %1535 = vmatpush1.msra.mxu0 0.0
    %1536 = vmatprep.subr.mxu0 0.0
    %1537 = vmatpush1.msra.mxu0 0.0
    %1538 = vmatprep.subr.mxu0 0.0
    %1539 = vmatpush1.msra.mxu0 0.0
    %1540 = vmatprep.subr.mxu0 0.0
    %1541 = vmatpush1.msra.mxu0 0.0
    %1542 = vmatprep.subr.mxu0 0.0
    %1543 = vmatpush1.msra.mxu0 0.0
    %1544 = vmatprep.subr.mxu0 0.0
    %1545 = vmatpush1.msra.mxu0 0.0
    %1546 = vmatprep.subr.mxu0 0.0
    %1547 = vmatpush1.msra.mxu0 0.0
    %1548 = vmatprep.subr.mxu0 0.0
    %1549 = vmatpush1.msra.mxu0 0.0
    %1550 = vmatprep.mubr.f32.mxu0 0.0
    %1551 = vmatmul.mubr.f32.gmra.mrb[0].mxu0 %v1484
    %v1552 = vpop.f32.mrb[0].mxu0
    %v1553 = vadd.f32 %v1480, %v1552
    %v1554 = vpop.f32.mrb[0].mxu0
    %1555 = vdwg.mxu0
    %v1556 = vxor.u32 %v1553, 2147483648
    %v1557 = vmul.f32 %v1556, 1.442695
    %v1558 = vpow.pop %v1557
    %v1559 = vadd.f32 %v1558, 1.0
    %v1560 = vrcp.pop %v1559
    %v1561 = vmul.f32 1.0, %v1560
    %v1562 = vtanh.pop %v1553
    %v1563 = vmul.f32 %v1561, %v1154
    %1565 = vrot.lane.b32.xlu0 %v1562, 64
    %v1566 = vpop.permute.xlu0 %1565
    %v1568 = vmul.f32 %v1561, %v1566
    %1570 = vrot.lane.b32.xlu0 %v1568, 32
    %v1571 = vpop.permute.xlu0 %1570
    %v1573 = vadd.f32 %v1563, %v1571
    %v1574 = vtanh.pop %v1573
    %1576 = vrot.lane.b32.xlu0 %v1574, 64
    %v1577 = vpop.permute.xlu0 %1576
    %v1579 = vmul.f32 %v1561, %v1577
    %1580 = vmatprep.subr.mxu0 0.0
    %1581 = vmatpush1.msra.mxu0 %v107
    %1582 = vmatprep.subr.mxu0 0.0
    %1583 = vmatpush1.msra.mxu0 %v108
    %1584 = vmatprep.subr.mxu0 0.0
    %1585 = vmatpush1.msra.mxu0 %v109
    %1586 = vmatprep.subr.mxu0 0.0
    %1587 = vmatpush1.msra.mxu0 %v110
    %1588 = vmatprep.subr.mxu0 0.0
    %1589 = vmatpush1.msra.mxu0 0.0
    %1590 = vmatprep.subr.mxu0 0.0
    %1591 = vmatpush1.msra.mxu0 0.0
    %1592 = vmatprep.subr.mxu0 0.0
    %1593 = vmatpush1.msra.mxu0 0.0
    %1594 = vmatprep.subr.mxu0 0.0
    %1595 = vmatpush1.msra.mxu0 0.0
    %1596 = vmatprep.subr.mxu0 0.0
    %1597 = vmatpush1.msra.mxu0 0.0
    %1598 = vmatprep.subr.mxu0 0.0
    %1599 = vmatpush1.msra.mxu0 0.0
    %1600 = vmatprep.subr.mxu0 0.0
    %1601 = vmatpush1.msra.mxu0 0.0
    %1602 = vmatprep.subr.mxu0 0.0
    %1603 = vmatpush1.msra.mxu0 0.0
    %1604 = vmatprep.subr.mxu0 0.0
    %1605 = vmatpush1.msra.mxu0 0.0
    %1606 = vmatprep.subr.mxu0 0.0
    %1607 = vmatpush1.msra.mxu0 0.0
    %1608 = vmatprep.subr.mxu0 0.0
    %1609 = vmatpush1.msra.mxu0 0.0
    %1610 = vmatprep.subr.mxu0 0.0
    %1611 = vmatpush1.msra.mxu0 0.0
    %1612 = vmatprep.subr.mxu0 0.0
    %1613 = vmatpush1.msra.mxu0 0.0
    %1614 = vmatprep.subr.mxu0 0.0
    %1615 = vmatpush1.msra.mxu0 0.0
    %1616 = vmatprep.subr.mxu0 0.0
    %1617 = vmatpush1.msra.mxu0 0.0
    %1618 = vmatprep.subr.mxu0 0.0
    %1619 = vmatpush1.msra.mxu0 0.0
    %1620 = vmatprep.subr.mxu0 0.0
    %1621 = vmatpush1.msra.mxu0 0.0
    %1622 = vmatprep.subr.mxu0 0.0
    %1623 = vmatpush1.msra.mxu0 0.0
    %1624 = vmatprep.subr.mxu0 0.0
    %1625 = vmatpush1.msra.mxu0 0.0
    %1626 = vmatprep.subr.mxu0 0.0
    %1627 = vmatpush1.msra.mxu0 0.0
    %1628 = vmatprep.subr.mxu0 0.0
    %1629 = vmatpush1.msra.mxu0 0.0
    %1630 = vmatprep.subr.mxu0 0.0
    %1631 = vmatpush1.msra.mxu0 0.0
    %1632 = vmatprep.subr.mxu0 0.0
    %1633 = vmatpush1.msra.mxu0 0.0
    %1634 = vmatprep.subr.mxu0 0.0
    %1635 = vmatpush1.msra.mxu0 0.0
    %1636 = vmatprep.subr.mxu0 0.0
    %1637 = vmatpush1.msra.mxu0 0.0
    %1638 = vmatprep.subr.mxu0 0.0
    %1639 = vmatpush1.msra.mxu0 0.0
    %1640 = vmatprep.subr.mxu0 0.0
    %1641 = vmatpush1.msra.mxu0 0.0
    %1642 = vmatprep.subr.mxu0 0.0
    %1643 = vmatpush1.msra.mxu0 0.0
    %1644 = vmatprep.mubr.f32.mxu0 0.0
    %1645 = vmatmul.mubr.f32.gmra.mrb[0].mxu0 %v1334
    %v1646 = vpop.f32.mrb[0].mxu0
    %v1647 = vadd.f32 0.0, %v1646
    %v1648 = vpop.f32.mrb[0].mxu0
    %1649 = vdwg.mxu0
    %1651 = vrot.lane.b32.xlu0 %v1579, 32
    %v1652 = vpop.permute.xlu0 %1651
    %v1653 = vsel %vm124, %v1652, 0
    %1655 = vmatprep.subr.mxu0 0.0
    %1656 = vmatpush1.msra.mxu0 %v103
    %1657 = vmatprep.subr.mxu0 0.0
    %1658 = vmatpush1.msra.mxu0 %v104
    %1659 = vmatprep.subr.mxu0 0.0
    %1660 = vmatpush1.msra.mxu0 %v105
    %1661 = vmatprep.subr.mxu0 0.0
    %1662 = vmatpush1.msra.mxu0 %v106
    %1663 = vmatprep.subr.mxu0 0.0
    %1664 = vmatpush1.msra.mxu0 0.0
    %1665 = vmatprep.subr.mxu0 0.0
    %1666 = vmatpush1.msra.mxu0 0.0
    %1667 = vmatprep.subr.mxu0 0.0
    %1668 = vmatpush1.msra.mxu0 0.0
    %1669 = vmatprep.subr.mxu0 0.0
    %1670 = vmatpush1.msra.mxu0 0.0
    %1671 = vmatprep.subr.mxu0 0.0
    %1672 = vmatpush1.msra.mxu0 0.0
    %1673 = vmatprep.subr.mxu0 0.0
    %1674 = vmatpush1.msra.mxu0 0.0
    %1675 = vmatprep.subr.mxu0 0.0
    %1676 = vmatpush1.msra.mxu0 0.0
    %1677 = vmatprep.subr.mxu0 0.0
    %1678 = vmatpush1.msra.mxu0 0.0
    %1679 = vmatprep.subr.mxu0 0.0
    %1680 = vmatpush1.msra.mxu0 0.0
    %1681 = vmatprep.subr.mxu0 0.0
    %1682 = vmatpush1.msra.mxu0 0.0
    %1683 = vmatprep.subr.mxu0 0.0
    %1684 = vmatpush1.msra.mxu0 0.0
    %1685 = vmatprep.subr.mxu0 0.0
    %1686 = vmatpush1.msra.mxu0 0.0
    %1687 = vmatprep.subr.mxu0 0.0
    %1688 = vmatpush1.msra.mxu0 0.0
    %1689 = vmatprep.subr.mxu0 0.0
    %1690 = vmatpush1.msra.mxu0 0.0
    %1691 = vmatprep.subr.mxu0 0.0
    %1692 = vmatpush1.msra.mxu0 0.0
    %1693 = vmatprep.subr.mxu0 0.0
    %1694 = vmatpush1.msra.mxu0 0.0
    %1695 = vmatprep.subr.mxu0 0.0
    %1696 = vmatpush1.msra.mxu0 0.0
    %1697 = vmatprep.subr.mxu0 0.0
    %1698 = vmatpush1.msra.mxu0 0.0
    %1699 = vmatprep.subr.mxu0 0.0
    %1700 = vmatpush1.msra.mxu0 0.0
    %1701 = vmatprep.subr.mxu0 0.0
    %1702 = vmatpush1.msra.mxu0 0.0
    %1703 = vmatprep.subr.mxu0 0.0
    %1704 = vmatpush1.msra.mxu0 0.0
    %1705 = vmatprep.subr.mxu0 0.0
    %1706 = vmatpush1.msra.mxu0 0.0
    %1707 = vmatprep.subr.mxu0 0.0
    %1708 = vmatpush1.msra.mxu0 0.0
    %1709 = vmatprep.subr.mxu0 0.0
    %1710 = vmatpush1.msra.mxu0 0.0
    %1711 = vmatprep.subr.mxu0 0.0
    %1712 = vmatpush1.msra.mxu0 0.0
    %1713 = vmatprep.subr.mxu0 0.0
    %1714 = vmatpush1.msra.mxu0 0.0
    %1715 = vmatprep.subr.mxu0 0.0
    %1716 = vmatpush1.msra.mxu0 0.0
    %1717 = vmatprep.subr.mxu0 0.0
    %1718 = vmatpush1.msra.mxu0 0.0
    %1719 = vmatprep.mubr.f32.mxu0 0.0
    %1720 = vmatmul.mubr.f32.gmra.mrb[0].mxu0 %v1653
    %v1721 = vpop.f32.mrb[0].mxu0
    %v1722 = vadd.f32 %v1647, %v1721
    %v1723 = vpop.f32.mrb[0].mxu0
    %1724 = vdwg.mxu0
    %v1725 = vadd.f32 %v1722, %v456
    %v1726 = vxor.u32 %v1725, 2147483648
    %v1727 = vmul.f32 %v1726, 1.442695
    %v1728 = vpow.pop %v1727
    %v1729 = vadd.f32 %v1728, 1.0
    %v1730 = vrcp.pop %v1729
    %v1731 = vmul.f32 1.0, %v1730
    %v1732 = vtanh.pop %v1725
    %v1733 = vmul.f32 %v1731, %v1324
    %1735 = vrot.lane.b32.xlu0 %v1732, 64
    %v1736 = vpop.permute.xlu0 %1735
    %v1738 = vmul.f32 %v1731, %v1736
    %1740 = vrot.lane.b32.xlu0 %v1738, 32
    %v1741 = vpop.permute.xlu0 %1740
    %v1743 = vadd.f32 %v1733, %v1741
    %v1744 = vtanh.pop %v1743
    %1746 = vrot.lane.b32.xlu0 %v1744, 64
    %v1747 = vpop.permute.xlu0 %1746
    %v1749 = vmul.f32 %v1731, %v1747
    %1751 = vrot.lane.b32.xlu0 %v1749, 32
    %v1752 = vpop.permute.xlu0 %1751
    %v1753 = vsel %vm124, %v1752, 0
    %1755 = vmatprep.subr.mxu0 0.0
    %1756 = vmatpush1.msra.mxu0 %v98
    %1757 = vmatprep.subr.mxu0 0.0
    %1758 = vmatpush1.msra.mxu0 %v99
    %1759 = vmatprep.subr.mxu0 0.0
    %1760 = vmatpush1.msra.mxu0 %v100
    %1761 = vmatprep.subr.mxu0 0.0
    %1762 = vmatpush1.msra.mxu0 %v101
    %1763 = vmatprep.subr.mxu0 0.0
    %1764 = vmatpush1.msra.mxu0 0.0
    %1765 = vmatprep.subr.mxu0 0.0
    %1766 = vmatpush1.msra.mxu0 0.0
    %1767 = vmatprep.subr.mxu0 0.0
    %1768 = vmatpush1.msra.mxu0 0.0
    %1769 = vmatprep.subr.mxu0 0.0
    %1770 = vmatpush1.msra.mxu0 0.0
    %1771 = vmatprep.subr.mxu0 0.0
    %1772 = vmatpush1.msra.mxu0 0.0
    %1773 = vmatprep.subr.mxu0 0.0
    %1774 = vmatpush1.msra.mxu0 0.0
    %1775 = vmatprep.subr.mxu0 0.0
    %1776 = vmatpush1.msra.mxu0 0.0
    %1777 = vmatprep.subr.mxu0 0.0
    %1778 = vmatpush1.msra.mxu0 0.0
    %1779 = vmatprep.subr.mxu0 0.0
    %1780 = vmatpush1.msra.mxu0 0.0
    %1781 = vmatprep.subr.mxu0 0.0
    %1782 = vmatpush1.msra.mxu0 0.0
    %1783 = vmatprep.subr.mxu0 0.0
    %1784 = vmatpush1.msra.mxu0 0.0
    %1785 = vmatprep.subr.mxu0 0.0
    %1786 = vmatpush1.msra.mxu0 0.0
    %1787 = vmatprep.subr.mxu0 0.0
    %1788 = vmatpush1.msra.mxu0 0.0
    %1789 = vmatprep.subr.mxu0 0.0
    %1790 = vmatpush1.msra.mxu0 0.0
    %1791 = vmatprep.subr.mxu0 0.0
    %1792 = vmatpush1.msra.mxu0 0.0
    %1793 = vmatprep.subr.mxu0 0.0
    %1794 = vmatpush1.msra.mxu0 0.0
    %1795 = vmatprep.subr.mxu0 0.0
    %1796 = vmatpush1.msra.mxu0 0.0
    %1797 = vmatprep.subr.mxu0 0.0
    %1798 = vmatpush1.msra.mxu0 0.0
    %1799 = vmatprep.subr.mxu0 0.0
    %1800 = vmatpush1.msra.mxu0 0.0
    %1801 = vmatprep.subr.mxu0 0.0
    %1802 = vmatpush1.msra.mxu0 0.0
    %1803 = vmatprep.subr.mxu0 0.0
    %1804 = vmatpush1.msra.mxu0 0.0
    %1805 = vmatprep.subr.mxu0 0.0
    %1806 = vmatpush1.msra.mxu0 0.0
    %1807 = vmatprep.subr.mxu0 0.0
    %1808 = vmatpush1.msra.mxu0 0.0
    %1809 = vmatprep.subr.mxu0 0.0
    %1810 = vmatpush1.msra.mxu0 0.0
    %1811 = vmatprep.subr.mxu0 0.0
    %1812 = vmatpush1.msra.mxu0 0.0
    %1813 = vmatprep.subr.mxu0 0.0
    %1814 = vmatpush1.msra.mxu0 0.0
    %1815 = vmatprep.subr.mxu0 0.0
    %1816 = vmatpush1.msra.mxu0 0.0
    %1817 = vmatprep.subr.mxu0 0.0
    %1818 = vmatpush1.msra.mxu0 0.0
    %1819 = vmatprep.mubr.f32.mxu0 0.0
    %1820 = vmatmul.mubr.f32.gmra.mrb[0].mxu0 %v1753
    %v1821 = vpop.f32.mrb[0].mxu0
    %v1822 = vadd.f32 %v491, %v1821
    %v1823 = vpop.f32.mrb[0].mxu0
    %1824 = vdwg.mxu0
    %v1825 = vsel %vm115, %v1822, -inf
    %v1826 = vsel %vm198, %v1825, -inf
    %1827 = vmax.index.xlane.f32.xlu0 %v1826
    %v1828 = vpop.xlane.xlu0 %1827
    %vm1829 = vcmp.eq.s32.totalorder %v91, %v1828
    %v1830 = vsel %vm1829, 1, 0
    %v1831 = vcvt.s32.f32 %v1830
    %1832 = vmatprep.subr.mxu0 0.0
    %1833 = vmatpush1.msra.mxu0 %v94
    %1834 = vmatprep.subr.mxu0 0.0
    %1835 = vmatpush1.msra.mxu0 %v95
    %1836 = vmatprep.subr.mxu0 0.0
    %1837 = vmatpush1.msra.mxu0 %v96
    %1838 = vmatprep.subr.mxu0 0.0
    %1839 = vmatpush1.msra.mxu0 %v97
    %1840 = vmatprep.subr.mxu0 0.0
    %1841 = vmatpush1.msra.mxu0 0.0
    %1842 = vmatprep.subr.mxu0 0.0
    %1843 = vmatpush1.msra.mxu0 0.0
    %1844 = vmatprep.subr.mxu0 0.0
    %1845 = vmatpush1.msra.mxu0 0.0
    %1846 = vmatprep.subr.mxu0 0.0
    %1847 = vmatpush1.msra.mxu0 0.0
    %1848 = vmatprep.subr.mxu0 0.0
    %1849 = vmatpush1.msra.mxu0 0.0
    %1850 = vmatprep.subr.mxu0 0.0
    %1851 = vmatpush1.msra.mxu0 0.0
    %1852 = vmatprep.subr.mxu0 0.0
    %1853 = vmatpush1.msra.mxu0 0.0
    %1854 = vmatprep.subr.mxu0 0.0
    %1855 = vmatpush1.msra.mxu0 0.0
    %1856 = vmatprep.subr.mxu0 0.0
    %1857 = vmatpush1.msra.mxu0 0.0
    %1858 = vmatprep.subr.mxu0 0.0
    %1859 = vmatpush1.msra.mxu0 0.0
    %1860 = vmatprep.subr.mxu0 0.0
    %1861 = vmatpush1.msra.mxu0 0.0
    %1862 = vmatprep.subr.mxu0 0.0
    %1863 = vmatpush1.msra.mxu0 0.0
    %1864 = vmatprep.subr.mxu0 0.0
    %1865 = vmatpush1.msra.mxu0 0.0
    %1866 = vmatprep.subr.mxu0 0.0
    %1867 = vmatpush1.msra.mxu0 0.0
    %1868 = vmatprep.subr.mxu0 0.0
    %1869 = vmatpush1.msra.mxu0 0.0
    %1870 = vmatprep.subr.mxu0 0.0
    %1871 = vmatpush1.msra.mxu0 0.0
    %1872 = vmatprep.subr.mxu0 0.0
    %1873 = vmatpush1.msra.mxu0 0.0
    %1874 = vmatprep.subr.mxu0 0.0
    %1875 = vmatpush1.msra.mxu0 0.0
    %1876 = vmatprep.subr.mxu0 0.0
    %1877 = vmatpush1.msra.mxu0 0.0
    %1878 = vmatprep.subr.mxu0 0.0
    %1879 = vmatpush1.msra.mxu0 0.0
    %1880 = vmatprep.subr.mxu0 0.0
    %1881 = vmatpush1.msra.mxu0 0.0
    %1882 = vmatprep.subr.mxu0 0.0
    %1883 = vmatpush1.msra.mxu0 0.0
    %1884 = vmatprep.subr.mxu0 0.0
    %1885 = vmatpush1.msra.mxu0 0.0
    %1886 = vmatprep.subr.mxu0 0.0
    %1887 = vmatpush1.msra.mxu0 0.0
    %1888 = vmatprep.subr.mxu0 0.0
    %1889 = vmatpush1.msra.mxu0 0.0
    %1890 = vmatprep.subr.mxu0 0.0
    %1891 = vmatpush1.msra.mxu0 0.0
    %1892 = vmatprep.subr.mxu0 0.0
    %1893 = vmatpush1.msra.mxu0 0.0
    %1894 = vmatprep.subr.mxu0 0.0
    %1895 = vmatpush1.msra.mxu0 0.0
    %1896 = vmatprep.mubr.f32.mxu0 0.0
    %1897 = vmatmul.mubr.f32.gmra.mrb[0].mxu0 %v1653
    %v1898 = vpop.f32.mrb[0].mxu0
    %v1899 = vadd.f32 0.0, %v1898
    %v1900 = vpop.f32.mrb[0].mxu0
    %1901 = vdwg.mxu0
    %v1903 = vsel %vm198, %v1831, 0
    %1905 = vmatprep.subr.mxu0 0.0
    %1906 = vmatpush1.msra.mxu0 %v92
    %1907 = vmatprep.subr.mxu0 0.0
    %1908 = vmatpush1.msra.mxu0 %v204
    %1909 = vmatprep.subr.mxu0 0.0
    %1910 = vmatpush1.msra.mxu0 0.0
    %1911 = vmatprep.subr.mxu0 0.0
    %1912 = vmatpush1.msra.mxu0 0.0
    %1913 = vmatprep.subr.mxu0 0.0
    %1914 = vmatpush1.msra.mxu0 0.0
    %1915 = vmatprep.subr.mxu0 0.0
    %1916 = vmatpush1.msra.mxu0 0.0
    %1917 = vmatprep.subr.mxu0 0.0
    %1918 = vmatpush1.msra.mxu0 0.0
    %1919 = vmatprep.subr.mxu0 0.0
    %1920 = vmatpush1.msra.mxu0 0.0
    %1921 = vmatprep.subr.mxu0 0.0
    %1922 = vmatpush1.msra.mxu0 0.0
    %1923 = vmatprep.subr.mxu0 0.0
    %1924 = vmatpush1.msra.mxu0 0.0
    %1925 = vmatprep.subr.mxu0 0.0
    %1926 = vmatpush1.msra.mxu0 0.0
    %1927 = vmatprep.subr.mxu0 0.0
    %1928 = vmatpush1.msra.mxu0 0.0
    %1929 = vmatprep.subr.mxu0 0.0
    %1930 = vmatpush1.msra.mxu0 0.0
    %1931 = vmatprep.subr.mxu0 0.0
    %1932 = vmatpush1.msra.mxu0 0.0
    %1933 = vmatprep.subr.mxu0 0.0
    %1934 = vmatpush1.msra.mxu0 0.0
    %1935 = vmatprep.subr.mxu0 0.0
    %1936 = vmatpush1.msra.mxu0 0.0
    %1937 = vmatprep.subr.mxu0 0.0
    %1938 = vmatpush1.msra.mxu0 0.0
    %1939 = vmatprep.subr.mxu0 0.0
    %1940 = vmatpush1.msra.mxu0 0.0
    %1941 = vmatprep.subr.mxu0 0.0
    %1942 = vmatpush1.msra.mxu0 0.0
    %1943 = vmatprep.subr.mxu0 0.0
    %1944 = vmatpush1.msra.mxu0 0.0
    %1945 = vmatprep.subr.mxu0 0.0
    %1946 = vmatpush1.msra.mxu0 0.0
    %1947 = vmatprep.subr.mxu0 0.0
    %1948 = vmatpush1.msra.mxu0 0.0
    %1949 = vmatprep.subr.mxu0 0.0
    %1950 = vmatpush1.msra.mxu0 0.0
    %1951 = vmatprep.subr.mxu0 0.0
    %1952 = vmatpush1.msra.mxu0 0.0
    %1953 = vmatprep.subr.mxu0 0.0
    %1954 = vmatpush1.msra.mxu0 0.0
    %1955 = vmatprep.subr.mxu0 0.0
    %1956 = vmatpush1.msra.mxu0 0.0
    %1957 = vmatprep.subr.mxu0 0.0
    %1958 = vmatpush1.msra.mxu0 0.0
    %1959 = vmatprep.subr.mxu0 0.0
    %1960 = vmatpush1.msra.mxu0 0.0
    %1961 = vmatprep.subr.mxu0 0.0
    %1962 = vmatpush1.msra.mxu0 0.0
    %1963 = vmatprep.subr.mxu0 0.0
    %1964 = vmatpush1.msra.mxu0 0.0
    %1965 = vmatprep.subr.mxu0 0.0
    %1966 = vmatpush1.msra.mxu0 0.0
    %1967 = vmatprep.subr.mxu0 0.0
    %1968 = vmatpush1.msra.mxu0 0.0
    %1969 = vmatprep.mubr.f32.mxu0 0.0
    %1970 = vmatmul.mubr.f32.gmra.mrb[0].mxu0 %v1903
    %v1971 = vpop.f32.mrb[0].mxu0
    %v1972 = vadd.f32 %v1899, %v1971
    %v1973 = vpop.f32.mrb[0].mxu0
    %1974 = vdwg.mxu0
    %v1975 = vxor.u32 %v1972, 2147483648
    %v1976 = vmul.f32 %v1975, 1.442695
    %v1977 = vpow.pop %v1976
    %v1978 = vadd.f32 %v1977, 1.0
    %v1979 = vrcp.pop %v1978
    %v1980 = vmul.f32 1.0, %v1979
    %v1981 = vtanh.pop %v1972
    %v1982 = vmul.f32 %v1980, %v1573
    %1984 = vrot.lane.b32.xlu0 %v1981, 64
    %v1985 = vpop.permute.xlu0 %1984
    %v1987 = vmul.f32 %v1980, %v1985
    %1989 = vrot.lane.b32.xlu0 %v1987, 32
    %v1990 = vpop.permute.xlu0 %1989
    %v1992 = vadd.f32 %v1982, %v1990
    %v1993 = vtanh.pop %v1992
    %1995 = vrot.lane.b32.xlu0 %v1993, 64
    %v1996 = vpop.permute.xlu0 %1995
    %v1998 = vmul.f32 %v1980, %v1996
    %1999 = vmatprep.subr.mxu0 0.0
    %2000 = vmatpush1.msra.mxu0 %v107
    %2001 = vmatprep.subr.mxu0 0.0
    %2002 = vmatpush1.msra.mxu0 %v108
    %2003 = vmatprep.subr.mxu0 0.0
    %2004 = vmatpush1.msra.mxu0 %v109
    %2005 = vmatprep.subr.mxu0 0.0
    %2006 = vmatpush1.msra.mxu0 %v110
    %2007 = vmatprep.subr.mxu0 0.0
    %2008 = vmatpush1.msra.mxu0 0.0
    %2009 = vmatprep.subr.mxu0 0.0
    %2010 = vmatpush1.msra.mxu0 0.0
    %2011 = vmatprep.subr.mxu0 0.0
    %2012 = vmatpush1.msra.mxu0 0.0
    %2013 = vmatprep.subr.mxu0 0.0
    %2014 = vmatpush1.msra.mxu0 0.0
    %2015 = vmatprep.subr.mxu0 0.0
    %2016 = vmatpush1.msra.mxu0 0.0
    %2017 = vmatprep.subr.mxu0 0.0
    %2018 = vmatpush1.msra.mxu0 0.0
    %2019 = vmatprep.subr.mxu0 0.0
    %2020 = vmatpush1.msra.mxu0 0.0
    %2021 = vmatprep.subr.mxu0 0.0
    %2022 = vmatpush1.msra.mxu0 0.0
    %2023 = vmatprep.subr.mxu0 0.0
    %2024 = vmatpush1.msra.mxu0 0.0
    %2025 = vmatprep.subr.mxu0 0.0
    %2026 = vmatpush1.msra.mxu0 0.0
    %2027 = vmatprep.subr.mxu0 0.0
    %2028 = vmatpush1.msra.mxu0 0.0
    %2029 = vmatprep.subr.mxu0 0.0
    %2030 = vmatpush1.msra.mxu0 0.0
    %2031 = vmatprep.subr.mxu0 0.0
    %2032 = vmatpush1.msra.mxu0 0.0
    %2033 = vmatprep.subr.mxu0 0.0
    %2034 = vmatpush1.msra.mxu0 0.0
    %2035 = vmatprep.subr.mxu0 0.0
    %2036 = vmatpush1.msra.mxu0 0.0
    %2037 = vmatprep.subr.mxu0 0.0
    %2038 = vmatpush1.msra.mxu0 0.0
    %2039 = vmatprep.subr.mxu0 0.0
    %2040 = vmatpush1.msra.mxu0 0.0
    %2041 = vmatprep.subr.mxu0 0.0
    %2042 = vmatpush1.msra.mxu0 0.0
    %2043 = vmatprep.subr.mxu0 0.0
    %2044 = vmatpush1.msra.mxu0 0.0
    %2045 = vmatprep.subr.mxu0 0.0
    %2046 = vmatpush1.msra.mxu0 0.0
    %2047 = vmatprep.subr.mxu0 0.0
    %2048 = vmatpush1.msra.mxu0 0.0
    %2049 = vmatprep.subr.mxu0 0.0
    %2050 = vmatpush1.msra.mxu0 0.0
    %2051 = vmatprep.subr.mxu0 0.0
    %2052 = vmatpush1.msra.mxu0 0.0
    %2053 = vmatprep.subr.mxu0 0.0
    %2054 = vmatpush1.msra.mxu0 0.0
    %2055 = vmatprep.subr.mxu0 0.0
    %2056 = vmatpush1.msra.mxu0 0.0
    %2057 = vmatprep.subr.mxu0 0.0
    %2058 = vmatpush1.msra.mxu0 0.0
    %2059 = vmatprep.subr.mxu0 0.0
    %2060 = vmatpush1.msra.mxu0 0.0
    %2061 = vmatprep.subr.mxu0 0.0
    %2062 = vmatpush1.msra.mxu0 0.0
    %2063 = vmatprep.mubr.f32.mxu0 0.0
    %2064 = vmatmul.mubr.f32.gmra.mrb[0].mxu0 %v1753
    %v2065 = vpop.f32.mrb[0].mxu0
    %v2066 = vadd.f32 0.0, %v2065
    %v2067 = vpop.f32.mrb[0].mxu0
    %2068 = vdwg.mxu0
    %2070 = vrot.lane.b32.xlu0 %v1998, 32
    %v2071 = vpop.permute.xlu0 %2070
    %v2072 = vsel %vm124, %v2071, 0
    %2074 = vmatprep.subr.mxu0 0.0
    %2075 = vmatpush1.msra.mxu0 %v103
    %2076 = vmatprep.subr.mxu0 0.0
    %2077 = vmatpush1.msra.mxu0 %v104
    %2078 = vmatprep.subr.mxu0 0.0
    %2079 = vmatpush1.msra.mxu0 %v105
    %2080 = vmatprep.subr.mxu0 0.0
    %2081 = vmatpush1.msra.mxu0 %v106
    %2082 = vmatprep.subr.mxu0 0.0
    %2083 = vmatpush1.msra.mxu0 0.0
    %2084 = vmatprep.subr.mxu0 0.0
    %2085 = vmatpush1.msra.mxu0 0.0
    %2086 = vmatprep.subr.mxu0 0.0
    %2087 = vmatpush1.msra.mxu0 0.0
    %2088 = vmatprep.subr.mxu0 0.0
    %2089 = vmatpush1.msra.mxu0 0.0
    %2090 = vmatprep.subr.mxu0 0.0
    %2091 = vmatpush1.msra.mxu0 0.0
    %2092 = vmatprep.subr.mxu0 0.0
    %2093 = vmatpush1.msra.mxu0 0.0
    %2094 = vmatprep.subr.mxu0 0.0
    %2095 = vmatpush1.msra.mxu0 0.0
    %2096 = vmatprep.subr.mxu0 0.0
    %2097 = vmatpush1.msra.mxu0 0.0
    %2098 = vmatprep.subr.mxu0 0.0
    %2099 = vmatpush1.msra.mxu0 0.0
    %2100 = vmatprep.subr.mxu0 0.0
    %2101 = vmatpush1.msra.mxu0 0.0
    %2102 = vmatprep.subr.mxu0 0.0
    %2103 = vmatpush1.msra.mxu0 0.0
    %2104 = vmatprep.subr.mxu0 0.0
    %2105 = vmatpush1.msra.mxu0 0.0
    %2106 = vmatprep.subr.mxu0 0.0
    %2107 = vmatpush1.msra.mxu0 0.0
    %2108 = vmatprep.subr.mxu0 0.0
    %2109 = vmatpush1.msra.mxu0 0.0
    %2110 = vmatprep.subr.mxu0 0.0
    %2111 = vmatpush1.msra.mxu0 0.0
    %2112 = vmatprep.subr.mxu0 0.0
    %2113 = vmatpush1.msra.mxu0 0.0
    %2114 = vmatprep.subr.mxu0 0.0
    %2115 = vmatpush1.msra.mxu0 0.0
    %2116 = vmatprep.subr.mxu0 0.0
    %2117 = vmatpush1.msra.mxu0 0.0
    %2118 = vmatprep.subr.mxu0 0.0
    %2119 = vmatpush1.msra.mxu0 0.0
    %2120 = vmatprep.subr.mxu0 0.0
    %2121 = vmatpush1.msra.mxu0 0.0
    %2122 = vmatprep.subr.mxu0 0.0
    %2123 = vmatpush1.msra.mxu0 0.0
    %2124 = vmatprep.subr.mxu0 0.0
    %2125 = vmatpush1.msra.mxu0 0.0
    %2126 = vmatprep.subr.mxu0 0.0
    %2127 = vmatpush1.msra.mxu0 0.0
    %2128 = vmatprep.subr.mxu0 0.0
    %2129 = vmatpush1.msra.mxu0 0.0
    %2130 = vmatprep.subr.mxu0 0.0
    %2131 = vmatpush1.msra.mxu0 0.0
    %2132 = vmatprep.subr.mxu0 0.0
    %2133 = vmatpush1.msra.mxu0 0.0
    %2134 = vmatprep.subr.mxu0 0.0
    %2135 = vmatpush1.msra.mxu0 0.0
    %2136 = vmatprep.subr.mxu0 0.0
    %2137 = vmatpush1.msra.mxu0 0.0
    %2138 = vmatprep.mubr.f32.mxu0 0.0
    %2139 = vmatmul.mubr.f32.gmra.mrb[0].mxu0 %v2072
    %v2140 = vpop.f32.mrb[0].mxu0
    %v2141 = vadd.f32 %v2066, %v2140
    %v2142 = vpop.f32.mrb[0].mxu0
    %2143 = vdwg.mxu0
    %v2144 = vadd.f32 %v2141, %v456
    %v2145 = vxor.u32 %v2144, 2147483648
    %v2146 = vmul.f32 %v2145, 1.442695
    %v2147 = vpow.pop %v2146
    %v2148 = vadd.f32 %v2147, 1.0
    %v2149 = vrcp.pop %v2148
    %v2150 = vmul.f32 1.0, %v2149
    %v2151 = vtanh.pop %v2144
    %v2152 = vmul.f32 %v2150, %v1743
    %2154 = vrot.lane.b32.xlu0 %v2151, 64
    %v2155 = vpop.permute.xlu0 %2154
    %v2157 = vmul.f32 %v2150, %v2155
    %2159 = vrot.lane.b32.xlu0 %v2157, 32
    %v2160 = vpop.permute.xlu0 %2159
    %v2162 = vadd.f32 %v2152, %v2160
    %v2163 = vtanh.pop %v2162
    %2165 = vrot.lane.b32.xlu0 %v2163, 64
    %v2166 = vpop.permute.xlu0 %2165
    %v2168 = vmul.f32 %v2150, %v2166
    %2170 = vrot.lane.b32.xlu0 %v2168, 32
    %v2171 = vpop.permute.xlu0 %2170
    %v2172 = vsel %vm124, %v2171, 0
    %2174 = vmatprep.subr.mxu0 0.0
    %2175 = vmatpush1.msra.mxu0 %v98
    %2176 = vmatprep.subr.mxu0 0.0
    %2177 = vmatpush1.msra.mxu0 %v99
    %2178 = vmatprep.subr.mxu0 0.0
    %2179 = vmatpush1.msra.mxu0 %v100
    %2180 = vmatprep.subr.mxu0 0.0
    %2181 = vmatpush1.msra.mxu0 %v101
    %2182 = vmatprep.subr.mxu0 0.0
    %2183 = vmatpush1.msra.mxu0 0.0
    %2184 = vmatprep.subr.mxu0 0.0
    %2185 = vmatpush1.msra.mxu0 0.0
    %2186 = vmatprep.subr.mxu0 0.0
    %2187 = vmatpush1.msra.mxu0 0.0
    %2188 = vmatprep.subr.mxu0 0.0
    %2189 = vmatpush1.msra.mxu0 0.0
    %2190 = vmatprep.subr.mxu0 0.0
    %2191 = vmatpush1.msra.mxu0 0.0
    %2192 = vmatprep.subr.mxu0 0.0
    %2193 = vmatpush1.msra.mxu0 0.0
    %2194 = vmatprep.subr.mxu0 0.0
    %2195 = vmatpush1.msra.mxu0 0.0
    %2196 = vmatprep.subr.mxu0 0.0
    %2197 = vmatpush1.msra.mxu0 0.0
    %2198 = vmatprep.subr.mxu0 0.0
    %2199 = vmatpush1.msra.mxu0 0.0
    %2200 = vmatprep.subr.mxu0 0.0
    %2201 = vmatpush1.msra.mxu0 0.0
    %2202 = vmatprep.subr.mxu0 0.0
    %2203 = vmatpush1.msra.mxu0 0.0
    %2204 = vmatprep.subr.mxu0 0.0
    %2205 = vmatpush1.msra.mxu0 0.0
    %2206 = vmatprep.subr.mxu0 0.0
    %2207 = vmatpush1.msra.mxu0 0.0
    %2208 = vmatprep.subr.mxu0 0.0
    %2209 = vmatpush1.msra.mxu0 0.0
    %2210 = vmatprep.subr.mxu0 0.0
    %2211 = vmatpush1.msra.mxu0 0.0
    %2212 = vmatprep.subr.mxu0 0.0
    %2213 = vmatpush1.msra.mxu0 0.0
    %2214 = vmatprep.subr.mxu0 0.0
    %2215 = vmatpush1.msra.mxu0 0.0
    %2216 = vmatprep.subr.mxu0 0.0
    %2217 = vmatpush1.msra.mxu0 0.0
    %2218 = vmatprep.subr.mxu0 0.0
    %2219 = vmatpush1.msra.mxu0 0.0
    %2220 = vmatprep.subr.mxu0 0.0
    %2221 = vmatpush1.msra.mxu0 0.0
    %2222 = vmatprep.subr.mxu0 0.0
    %2223 = vmatpush1.msra.mxu0 0.0
    %2224 = vmatprep.subr.mxu0 0.0
    %2225 = vmatpush1.msra.mxu0 0.0
    %2226 = vmatprep.subr.mxu0 0.0
    %2227 = vmatpush1.msra.mxu0 0.0
    %2228 = vmatprep.subr.mxu0 0.0
    %2229 = vmatpush1.msra.mxu0 0.0
    %2230 = vmatprep.subr.mxu0 0.0
    %2231 = vmatpush1.msra.mxu0 0.0
    %2232 = vmatprep.subr.mxu0 0.0
    %2233 = vmatpush1.msra.mxu0 0.0
    %2234 = vmatprep.subr.mxu0 0.0
    %2235 = vmatpush1.msra.mxu0 0.0
    %2236 = vmatprep.subr.mxu0 0.0
    %2237 = vmatpush1.msra.mxu0 0.0
    %2238 = vmatprep.mubr.f32.mxu0 0.0
    %2239 = vmatmul.mubr.f32.gmra.mrb[0].mxu0 %v2172
    %v2240 = vpop.f32.mrb[0].mxu0
    %v2241 = vadd.f32 %v491, %v2240
    %v2242 = vpop.f32.mrb[0].mxu0
    %2243 = vdwg.mxu0
    %v2244 = vsel %vm117, %v2241, -inf
    %v2245 = vsel %vm198, %v2244, -inf
    %2246 = vmax.index.xlane.f32.xlu0 %v2245
    %v2247 = vpop.xlane.xlu0 %2246
    %vm2248 = vcmp.eq.s32.totalorder %v91, %v2247
    %v2249 = vsel %vm2248, 1, 0
    %v2250 = vcvt.s32.f32 %v2249
    %2251 = vmatprep.subr.mxu0 0.0
    %2252 = vmatpush1.msra.mxu0 %v94
    %2253 = vmatprep.subr.mxu0 0.0
    %2254 = vmatpush1.msra.mxu0 %v95
    %2255 = vmatprep.subr.mxu0 0.0
    %2256 = vmatpush1.msra.mxu0 %v96
    %2257 = vmatprep.subr.mxu0 0.0
    %2258 = vmatpush1.msra.mxu0 %v97
    %2259 = vmatprep.subr.mxu0 0.0
    %2260 = vmatpush1.msra.mxu0 0.0
    %2261 = vmatprep.subr.mxu0 0.0
    %2262 = vmatpush1.msra.mxu0 0.0
    %2263 = vmatprep.subr.mxu0 0.0
    %2264 = vmatpush1.msra.mxu0 0.0
    %2265 = vmatprep.subr.mxu0 0.0
    %2266 = vmatpush1.msra.mxu0 0.0
    %2267 = vmatprep.subr.mxu0 0.0
    %2268 = vmatpush1.msra.mxu0 0.0
    %2269 = vmatprep.subr.mxu0 0.0
    %2270 = vmatpush1.msra.mxu0 0.0
    %2271 = vmatprep.subr.mxu0 0.0
    %2272 = vmatpush1.msra.mxu0 0.0
    %2273 = vmatprep.subr.mxu0 0.0
    %2274 = vmatpush1.msra.mxu0 0.0
    %2275 = vmatprep.subr.mxu0 0.0
    %2276 = vmatpush1.msra.mxu0 0.0
    %2277 = vmatprep.subr.mxu0 0.0
    %2278 = vmatpush1.msra.mxu0 0.0
    %2279 = vmatprep.subr.mxu0 0.0
    %2280 = vmatpush1.msra.mxu0 0.0
    %2281 = vmatprep.subr.mxu0 0.0
    %2282 = vmatpush1.msra.mxu0 0.0
    %2283 = vmatprep.subr.mxu0 0.0
    %2284 = vmatpush1.msra.mxu0 0.0
    %2285 = vmatprep.subr.mxu0 0.0
    %2286 = vmatpush1.msra.mxu0 0.0
    %2287 = vmatprep.subr.mxu0 0.0
    %2288 = vmatpush1.msra.mxu0 0.0
    %2289 = vmatprep.subr.mxu0 0.0
    %2290 = vmatpush1.msra.mxu0 0.0
    %2291 = vmatprep.subr.mxu0 0.0
    %2292 = vmatpush1.msra.mxu0 0.0
    %2293 = vmatprep.subr.mxu0 0.0
    %2294 = vmatpush1.msra.mxu0 0.0
    %2295 = vmatprep.subr.mxu0 0.0
    %2296 = vmatpush1.msra.mxu0 0.0
    %2297 = vmatprep.subr.mxu0 0.0
    %2298 = vmatpush1.msra.mxu0 0.0
    %2299 = vmatprep.subr.mxu0 0.0
    %2300 = vmatpush1.msra.mxu0 0.0
    %2301 = vmatprep.subr.mxu0 0.0
    %2302 = vmatpush1.msra.mxu0 0.0
    %2303 = vmatprep.subr.mxu0 0.0
    %2304 = vmatpush1.msra.mxu0 0.0
    %2305 = vmatprep.subr.mxu0 0.0
    %2306 = vmatpush1.msra.mxu0 0.0
    %2307 = vmatprep.subr.mxu0 0.0
    %2308 = vmatpush1.msra.mxu0 0.0
    %2309 = vmatprep.subr.mxu0 0.0
    %2310 = vmatpush1.msra.mxu0 0.0
    %2311 = vmatprep.subr.mxu0 0.0
    %2312 = vmatpush1.msra.mxu0 0.0
    %2313 = vmatprep.subr.mxu0 0.0
    %2314 = vmatpush1.msra.mxu0 0.0
    %2315 = vmatprep.mubr.f32.mxu0 0.0
    %2316 = vmatmul.mubr.f32.gmra.mrb[0].mxu0 %v2072
    %v2317 = vpop.f32.mrb[0].mxu0
    %v2318 = vadd.f32 0.0, %v2317
    %v2319 = vpop.f32.mrb[0].mxu0
    %2320 = vdwg.mxu0
    %v2322 = vsel %vm198, %v2250, 0
    %2324 = vmatprep.subr.mxu0 0.0
    %2325 = vmatpush1.msra.mxu0 %v92
    %2326 = vmatprep.subr.mxu0 0.0
    %2327 = vmatpush1.msra.mxu0 %v204
    %2328 = vmatprep.subr.mxu0 0.0
    %2329 = vmatpush1.msra.mxu0 0.0
    %2330 = vmatprep.subr.mxu0 0.0
    %2331 = vmatpush1.msra.mxu0 0.0
    %2332 = vmatprep.subr.mxu0 0.0
    %2333 = vmatpush1.msra.mxu0 0.0
    %2334 = vmatprep.subr.mxu0 0.0
    %2335 = vmatpush1.msra.mxu0 0.0
    %2336 = vmatprep.subr.mxu0 0.0
    %2337 = vmatpush1.msra.mxu0 0.0
    %2338 = vmatprep.subr.mxu0 0.0
    %2339 = vmatpush1.msra.mxu0 0.0
    %2340 = vmatprep.subr.mxu0 0.0
    %2341 = vmatpush1.msra.mxu0 0.0
    %2342 = vmatprep.subr.mxu0 0.0
    %2343 = vmatpush1.msra.mxu0 0.0
    %2344 = vmatprep.subr.mxu0 0.0
    %2345 = vmatpush1.msra.mxu0 0.0
    %2346 = vmatprep.subr.mxu0 0.0
    %2347 = vmatpush1.msra.mxu0 0.0
    %2348 = vmatprep.subr.mxu0 0.0
    %2349 = vmatpush1.msra.mxu0 0.0
    %2350 = vmatprep.subr.mxu0 0.0
    %2351 = vmatpush1.msra.mxu0 0.0
    %2352 = vmatprep.subr.mxu0 0.0
    %2353 = vmatpush1.msra.mxu0 0.0
    %2354 = vmatprep.subr.mxu0 0.0
    %2355 = vmatpush1.msra.mxu0 0.0
    %2356 = vmatprep.subr.mxu0 0.0
    %2357 = vmatpush1.msra.mxu0 0.0
    %2358 = vmatprep.subr.mxu0 0.0
    %2359 = vmatpush1.msra.mxu0 0.0
    %2360 = vmatprep.subr.mxu0 0.0
    %2361 = vmatpush1.msra.mxu0 0.0
    %2362 = vmatprep.subr.mxu0 0.0
    %2363 = vmatpush1.msra.mxu0 0.0
    %2364 = vmatprep.subr.mxu0 0.0
    %2365 = vmatpush1.msra.mxu0 0.0
    %2366 = vmatprep.subr.mxu0 0.0
    %2367 = vmatpush1.msra.mxu0 0.0
    %2368 = vmatprep.subr.mxu0 0.0
    %2369 = vmatpush1.msra.mxu0 0.0
    %2370 = vmatprep.subr.mxu0 0.0
    %2371 = vmatpush1.msra.mxu0 0.0
    %2372 = vmatprep.subr.mxu0 0.0
    %2373 = vmatpush1.msra.mxu0 0.0
    %2374 = vmatprep.subr.mxu0 0.0
    %2375 = vmatpush1.msra.mxu0 0.0
    %2376 = vmatprep.subr.mxu0 0.0
    %2377 = vmatpush1.msra.mxu0 0.0
    %2378 = vmatprep.subr.mxu0 0.0
    %2379 = vmatpush1.msra.mxu0 0.0
    %2380 = vmatprep.subr.mxu0 0.0
    %2381 = vmatpush1.msra.mxu0 0.0
    %2382 = vmatprep.subr.mxu0 0.0
    %2383 = vmatpush1.msra.mxu0 0.0
    %2384 = vmatprep.subr.mxu0 0.0
    %2385 = vmatpush1.msra.mxu0 0.0
    %2386 = vmatprep.subr.mxu0 0.0
    %2387 = vmatpush1.msra.mxu0 0.0
    %2388 = vmatprep.mubr.f32.mxu0 0.0
    %2389 = vmatmul.mubr.f32.gmra.mrb[0].mxu0 %v2322
    %v2390 = vpop.f32.mrb[0].mxu0
    %v2391 = vadd.f32 %v2318, %v2390
    %v2392 = vpop.f32.mrb[0].mxu0
    %2393 = vdwg.mxu0
    %v2394 = vxor.u32 %v2391, 2147483648
    %v2395 = vmul.f32 %v2394, 1.442695
    %v2396 = vpow.pop %v2395
    %v2397 = vadd.f32 %v2396, 1.0
    %v2398 = vrcp.pop %v2397
    %v2399 = vmul.f32 1.0, %v2398
    %v2400 = vtanh.pop %v2391
    %v2401 = vmul.f32 %v2399, %v1992
    %2403 = vrot.lane.b32.xlu0 %v2400, 64
    %v2404 = vpop.permute.xlu0 %2403
    %v2406 = vmul.f32 %v2399, %v2404
    %2408 = vrot.lane.b32.xlu0 %v2406, 32
    %v2409 = vpop.permute.xlu0 %2408
    %v2411 = vadd.f32 %v2401, %v2409
    %v2412 = vtanh.pop %v2411
    %2414 = vrot.lane.b32.xlu0 %v2412, 64
    %v2415 = vpop.permute.xlu0 %2414
    %v2417 = vmul.f32 %v2399, %v2415
    %2418 = vmatprep.subr.mxu0 0.0
    %2419 = vmatpush1.msra.mxu0 %v107
    %2420 = vmatprep.subr.mxu0 0.0
    %2421 = vmatpush1.msra.mxu0 %v108
    %2422 = vmatprep.subr.mxu0 0.0
    %2423 = vmatpush1.msra.mxu0 %v109
    %2424 = vmatprep.subr.mxu0 0.0
    %2425 = vmatpush1.msra.mxu0 %v110
    %2426 = vmatprep.subr.mxu0 0.0
    %2427 = vmatpush1.msra.mxu0 0.0
    %2428 = vmatprep.subr.mxu0 0.0
    %2429 = vmatpush1.msra.mxu0 0.0
    %2430 = vmatprep.subr.mxu0 0.0
    %2431 = vmatpush1.msra.mxu0 0.0
    %2432 = vmatprep.subr.mxu0 0.0
    %2433 = vmatpush1.msra.mxu0 0.0
    %2434 = vmatprep.subr.mxu0 0.0
    %2435 = vmatpush1.msra.mxu0 0.0
    %2436 = vmatprep.subr.mxu0 0.0
    %2437 = vmatpush1.msra.mxu0 0.0
    %2438 = vmatprep.subr.mxu0 0.0
    %2439 = vmatpush1.msra.mxu0 0.0
    %2440 = vmatprep.subr.mxu0 0.0
    %2441 = vmatpush1.msra.mxu0 0.0
    %2442 = vmatprep.subr.mxu0 0.0
    %2443 = vmatpush1.msra.mxu0 0.0
    %2444 = vmatprep.subr.mxu0 0.0
    %2445 = vmatpush1.msra.mxu0 0.0
    %2446 = vmatprep.subr.mxu0 0.0
    %2447 = vmatpush1.msra.mxu0 0.0
    %2448 = vmatprep.subr.mxu0 0.0
    %2449 = vmatpush1.msra.mxu0 0.0
    %2450 = vmatprep.subr.mxu0 0.0
    %2451 = vmatpush1.msra.mxu0 0.0
    %2452 = vmatprep.subr.mxu0 0.0
    %2453 = vmatpush1.msra.mxu0 0.0
    %2454 = vmatprep.subr.mxu0 0.0
    %2455 = vmatpush1.msra.mxu0 0.0
    %2456 = vmatprep.subr.mxu0 0.0
    %2457 = vmatpush1.msra.mxu0 0.0
    %2458 = vmatprep.subr.mxu0 0.0
    %2459 = vmatpush1.msra.mxu0 0.0
    %2460 = vmatprep.subr.mxu0 0.0
    %2461 = vmatpush1.msra.mxu0 0.0
    %2462 = vmatprep.subr.mxu0 0.0
    %2463 = vmatpush1.msra.mxu0 0.0
    %2464 = vmatprep.subr.mxu0 0.0
    %2465 = vmatpush1.msra.mxu0 0.0
    %2466 = vmatprep.subr.mxu0 0.0
    %2467 = vmatpush1.msra.mxu0 0.0
    %2468 = vmatprep.subr.mxu0 0.0
    %2469 = vmatpush1.msra.mxu0 0.0
    %2470 = vmatprep.subr.mxu0 0.0
    %2471 = vmatpush1.msra.mxu0 0.0
    %2472 = vmatprep.subr.mxu0 0.0
    %2473 = vmatpush1.msra.mxu0 0.0
    %2474 = vmatprep.subr.mxu0 0.0
    %2475 = vmatpush1.msra.mxu0 0.0
    %2476 = vmatprep.subr.mxu0 0.0
    %2477 = vmatpush1.msra.mxu0 0.0
    %2478 = vmatprep.subr.mxu0 0.0
    %2479 = vmatpush1.msra.mxu0 0.0
    %2480 = vmatprep.subr.mxu0 0.0
    %2481 = vmatpush1.msra.mxu0 0.0
    %2482 = vmatprep.mubr.f32.mxu0 0.0
    %2483 = vmatmul.mubr.f32.gmra.mrb[0].mxu0 %v2172
    %v2484 = vpop.f32.mrb[0].mxu0
    %v2485 = vadd.f32 0.0, %v2484
    %v2486 = vpop.f32.mrb[0].mxu0
    %2487 = vdwg.mxu0
    %2489 = vrot.lane.b32.xlu0 %v2417, 32
    %v2490 = vpop.permute.xlu0 %2489
    %v2491 = vsel %vm124, %v2490, 0
    %2493 = vmatprep.subr.mxu0 0.0
    %2494 = vmatpush1.msra.mxu0 %v103
    %2495 = vmatprep.subr.mxu0 0.0
    %2496 = vmatpush1.msra.mxu0 %v104
    %2497 = vmatprep.subr.mxu0 0.0
    %2498 = vmatpush1.msra.mxu0 %v105
    %2499 = vmatprep.subr.mxu0 0.0
    %2500 = vmatpush1.msra.mxu0 %v106
    %2501 = vmatprep.subr.mxu0 0.0
    %2502 = vmatpush1.msra.mxu0 0.0
    %2503 = vmatprep.subr.mxu0 0.0
    %2504 = vmatpush1.msra.mxu0 0.0
    %2505 = vmatprep.subr.mxu0 0.0
    %2506 = vmatpush1.msra.mxu0 0.0
    %2507 = vmatprep.subr.mxu0 0.0
    %2508 = vmatpush1.msra.mxu0 0.0
    %2509 = vmatprep.subr.mxu0 0.0
    %2510 = vmatpush1.msra.mxu0 0.0
    %2511 = vmatprep.subr.mxu0 0.0
    %2512 = vmatpush1.msra.mxu0 0.0
    %2513 = vmatprep.subr.mxu0 0.0
    %2514 = vmatpush1.msra.mxu0 0.0
    %2515 = vmatprep.subr.mxu0 0.0
    %2516 = vmatpush1.msra.mxu0 0.0
    %2517 = vmatprep.subr.mxu0 0.0
    %2518 = vmatpush1.msra.mxu0 0.0
    %2519 = vmatprep.subr.mxu0 0.0
    %2520 = vmatpush1.msra.mxu0 0.0
    %2521 = vmatprep.subr.mxu0 0.0
    %2522 = vmatpush1.msra.mxu0 0.0
    %2523 = vmatprep.subr.mxu0 0.0
    %2524 = vmatpush1.msra.mxu0 0.0
    %2525 = vmatprep.subr.mxu0 0.0
    %2526 = vmatpush1.msra.mxu0 0.0
    %2527 = vmatprep.subr.mxu0 0.0
    %2528 = vmatpush1.msra.mxu0 0.0
    %2529 = vmatprep.subr.mxu0 0.0
    %2530 = vmatpush1.msra.mxu0 0.0
    %2531 = vmatprep.subr.mxu0 0.0
    %2532 = vmatpush1.msra.mxu0 0.0
    %2533 = vmatprep.subr.mxu0 0.0
    %2534 = vmatpush1.msra.mxu0 0.0
    %2535 = vmatprep.subr.mxu0 0.0
    %2536 = vmatpush1.msra.mxu0 0.0
    %2537 = vmatprep.subr.mxu0 0.0
    %2538 = vmatpush1.msra.mxu0 0.0
    %2539 = vmatprep.subr.mxu0 0.0
    %2540 = vmatpush1.msra.mxu0 0.0
    %2541 = vmatprep.subr.mxu0 0.0
    %2542 = vmatpush1.msra.mxu0 0.0
    %2543 = vmatprep.subr.mxu0 0.0
    %2544 = vmatpush1.msra.mxu0 0.0
    %2545 = vmatprep.subr.mxu0 0.0
    %2546 = vmatpush1.msra.mxu0 0.0
    %2547 = vmatprep.subr.mxu0 0.0
    %2548 = vmatpush1.msra.mxu0 0.0
    %2549 = vmatprep.subr.mxu0 0.0
    %2550 = vmatpush1.msra.mxu0 0.0
    %2551 = vmatprep.subr.mxu0 0.0
    %2552 = vmatpush1.msra.mxu0 0.0
    %2553 = vmatprep.subr.mxu0 0.0
    %2554 = vmatpush1.msra.mxu0 0.0
    %2555 = vmatprep.subr.mxu0 0.0
    %2556 = vmatpush1.msra.mxu0 0.0
    %2557 = vmatprep.mubr.f32.mxu0 0.0
    %2558 = vmatmul.mubr.f32.gmra.mrb[0].mxu0 %v2491
    %v2559 = vpop.f32.mrb[0].mxu0
    %v2560 = vadd.f32 %v2485, %v2559
    %v2561 = vpop.f32.mrb[0].mxu0
    %2562 = vdwg.mxu0
    %v2563 = vadd.f32 %v2560, %v456
    %v2564 = vxor.u32 %v2563, 2147483648
    %v2565 = vmul.f32 %v2564, 1.442695
    %v2566 = vpow.pop %v2565
    %v2567 = vadd.f32 %v2566, 1.0
    %v2568 = vrcp.pop %v2567
    %v2569 = vmul.f32 1.0, %v2568
    %v2570 = vtanh.pop %v2563
    %v2571 = vmul.f32 %v2569, %v2162
    %2573 = vrot.lane.b32.xlu0 %v2570, 64
    %v2574 = vpop.permute.xlu0 %2573
    %v2576 = vmul.f32 %v2569, %v2574
    %2578 = vrot.lane.b32.xlu0 %v2576, 32
    %v2579 = vpop.permute.xlu0 %2578
    %v2581 = vadd.f32 %v2571, %v2579
    %v2582 = vtanh.pop %v2581
    %2584 = vrot.lane.b32.xlu0 %v2582, 64
    %v2585 = vpop.permute.xlu0 %2584
    %v2587 = vmul.f32 %v2569, %v2585
    %2589 = vrot.lane.b32.xlu0 %v2587, 32
    %v2590 = vpop.permute.xlu0 %2589
    %v2591 = vsel %vm124, %v2590, 0
    %2593 = vmatprep.subr.mxu0 0.0
    %2594 = vmatpush1.msra.mxu0 %v98
    %2595 = vmatprep.subr.mxu0 0.0
    %2596 = vmatpush1.msra.mxu0 %v99
    %2597 = vmatprep.subr.mxu0 0.0
    %2598 = vmatpush1.msra.mxu0 %v100
    %2599 = vmatprep.subr.mxu0 0.0
    %2600 = vmatpush1.msra.mxu0 %v101
    %2601 = vmatprep.subr.mxu0 0.0
    %2602 = vmatpush1.msra.mxu0 0.0
    %2603 = vmatprep.subr.mxu0 0.0
    %2604 = vmatpush1.msra.mxu0 0.0
    %2605 = vmatprep.subr.mxu0 0.0
    %2606 = vmatpush1.msra.mxu0 0.0
    %2607 = vmatprep.subr.mxu0 0.0
    %2608 = vmatpush1.msra.mxu0 0.0
    %2609 = vmatprep.subr.mxu0 0.0
    %2610 = vmatpush1.msra.mxu0 0.0
    %2611 = vmatprep.subr.mxu0 0.0
    %2612 = vmatpush1.msra.mxu0 0.0
    %2613 = vmatprep.subr.mxu0 0.0
    %2614 = vmatpush1.msra.mxu0 0.0
    %2615 = vmatprep.subr.mxu0 0.0
    %2616 = vmatpush1.msra.mxu0 0.0
    %2617 = vmatprep.subr.mxu0 0.0
    %2618 = vmatpush1.msra.mxu0 0.0
    %2619 = vmatprep.subr.mxu0 0.0
    %2620 = vmatpush1.msra.mxu0 0.0
    %2621 = vmatprep.subr.mxu0 0.0
    %2622 = vmatpush1.msra.mxu0 0.0
    %2623 = vmatprep.subr.mxu0 0.0
    %2624 = vmatpush1.msra.mxu0 0.0
    %2625 = vmatprep.subr.mxu0 0.0
    %2626 = vmatpush1.msra.mxu0 0.0
    %2627 = vmatprep.subr.mxu0 0.0
    %2628 = vmatpush1.msra.mxu0 0.0
    %2629 = vmatprep.subr.mxu0 0.0
    %2630 = vmatpush1.msra.mxu0 0.0
    %2631 = vmatprep.subr.mxu0 0.0
    %2632 = vmatpush1.msra.mxu0 0.0
    %2633 = vmatprep.subr.mxu0 0.0
    %2634 = vmatpush1.msra.mxu0 0.0
    %2635 = vmatprep.subr.mxu0 0.0
    %2636 = vmatpush1.msra.mxu0 0.0
    %2637 = vmatprep.subr.mxu0 0.0
    %2638 = vmatpush1.msra.mxu0 0.0
    %2639 = vmatprep.subr.mxu0 0.0
    %2640 = vmatpush1.msra.mxu0 0.0
    %2641 = vmatprep.subr.mxu0 0.0
    %2642 = vmatpush1.msra.mxu0 0.0
    %2643 = vmatprep.subr.mxu0 0.0
    %2644 = vmatpush1.msra.mxu0 0.0
    %2645 = vmatprep.subr.mxu0 0.0
    %2646 = vmatpush1.msra.mxu0 0.0
    %2647 = vmatprep.subr.mxu0 0.0
    %2648 = vmatpush1.msra.mxu0 0.0
    %2649 = vmatprep.subr.mxu0 0.0
    %2650 = vmatpush1.msra.mxu0 0.0
    %2651 = vmatprep.subr.mxu0 0.0
    %2652 = vmatpush1.msra.mxu0 0.0
    %2653 = vmatprep.subr.mxu0 0.0
    %2654 = vmatpush1.msra.mxu0 0.0
    %2655 = vmatprep.subr.mxu0 0.0
    %2656 = vmatpush1.msra.mxu0 0.0
    %2657 = vmatprep.mubr.f32.mxu0 0.0
    %2658 = vmatmul.mubr.f32.gmra.mrb[0].mxu0 %v2591
    %v2659 = vpop.f32.mrb[0].mxu0
    %v2660 = vadd.f32 %v491, %v2659
    %v2661 = vpop.f32.mrb[0].mxu0
    %2662 = vdwg.mxu0
    %v2663 = vsel %vm115, %v2660, -inf
    %v2664 = vsel %vm198, %v2663, -inf
    %2665 = vmax.index.xlane.f32.xlu0 %v2664
    %v2666 = vpop.xlane.xlu0 %2665
    %vm2667 = vcmp.eq.s32.totalorder %v91, %v2666
    %v2668 = vsel %vm2667, 1, 0
    %v2669 = vcvt.s32.f32 %v2668
    %2670 = vmatprep.subr.mxu0 0.0
    %2671 = vmatpush1.msra.mxu0 %v94
    %2672 = vmatprep.subr.mxu0 0.0
    %2673 = vmatpush1.msra.mxu0 %v95
    %2674 = vmatprep.subr.mxu0 0.0
    %2675 = vmatpush1.msra.mxu0 %v96
    %2676 = vmatprep.subr.mxu0 0.0
    %2677 = vmatpush1.msra.mxu0 %v97
    %2678 = vmatprep.subr.mxu0 0.0
    %2679 = vmatpush1.msra.mxu0 0.0
    %2680 = vmatprep.subr.mxu0 0.0
    %2681 = vmatpush1.msra.mxu0 0.0
    %2682 = vmatprep.subr.mxu0 0.0
    %2683 = vmatpush1.msra.mxu0 0.0
    %2684 = vmatprep.subr.mxu0 0.0
    %2685 = vmatpush1.msra.mxu0 0.0
    %2686 = vmatprep.subr.mxu0 0.0
    %2687 = vmatpush1.msra.mxu0 0.0
    %2688 = vmatprep.subr.mxu0 0.0
    %2689 = vmatpush1.msra.mxu0 0.0
    %2690 = vmatprep.subr.mxu0 0.0
    %2691 = vmatpush1.msra.mxu0 0.0
    %2692 = vmatprep.subr.mxu0 0.0
    %2693 = vmatpush1.msra.mxu0 0.0
    %2694 = vmatprep.subr.mxu0 0.0
    %2695 = vmatpush1.msra.mxu0 0.0
    %2696 = vmatprep.subr.mxu0 0.0
    %2697 = vmatpush1.msra.mxu0 0.0
    %2698 = vmatprep.subr.mxu0 0.0
    %2699 = vmatpush1.msra.mxu0 0.0
    %2700 = vmatprep.subr.mxu0 0.0
    %2701 = vmatpush1.msra.mxu0 0.0
    %2702 = vmatprep.subr.mxu0 0.0
    %2703 = vmatpush1.msra.mxu0 0.0
    %2704 = vmatprep.subr.mxu0 0.0
    %2705 = vmatpush1.msra.mxu0 0.0
    %2706 = vmatprep.subr.mxu0 0.0
    %2707 = vmatpush1.msra.mxu0 0.0
    %2708 = vmatprep.subr.mxu0 0.0
    %2709 = vmatpush1.msra.mxu0 0.0
    %2710 = vmatprep.subr.mxu0 0.0
    %2711 = vmatpush1.msra.mxu0 0.0
    %2712 = vmatprep.subr.mxu0 0.0
    %2713 = vmatpush1.msra.mxu0 0.0
    %2714 = vmatprep.subr.mxu0 0.0
    %2715 = vmatpush1.msra.mxu0 0.0
    %2716 = vmatprep.subr.mxu0 0.0
    %2717 = vmatpush1.msra.mxu0 0.0
    %2718 = vmatprep.subr.mxu0 0.0
    %2719 = vmatpush1.msra.mxu0 0.0
    %2720 = vmatprep.subr.mxu0 0.0
    %2721 = vmatpush1.msra.mxu0 0.0
    %2722 = vmatprep.subr.mxu0 0.0
    %2723 = vmatpush1.msra.mxu0 0.0
    %2724 = vmatprep.subr.mxu0 0.0
    %2725 = vmatpush1.msra.mxu0 0.0
    %2726 = vmatprep.subr.mxu0 0.0
    %2727 = vmatpush1.msra.mxu0 0.0
    %2728 = vmatprep.subr.mxu0 0.0
    %2729 = vmatpush1.msra.mxu0 0.0
    %2730 = vmatprep.subr.mxu0 0.0
    %2731 = vmatpush1.msra.mxu0 0.0
    %2732 = vmatprep.subr.mxu0 0.0
    %2733 = vmatpush1.msra.mxu0 0.0
    %2734 = vmatprep.mubr.f32.mxu0 0.0
    %2735 = vmatmul.mubr.f32.gmra.mrb[0].mxu0 %v2491
    %v2736 = vpop.f32.mrb[0].mxu0
    %v2737 = vadd.f32 0.0, %v2736
    %v2738 = vpop.f32.mrb[0].mxu0
    %2739 = vdwg.mxu0
    %v2741 = vsel %vm198, %v2669, 0
    %2743 = vmatprep.subr.mxu0 0.0
    %2744 = vmatpush1.msra.mxu0 %v92
    %2745 = vmatprep.subr.mxu0 0.0
    %2746 = vmatpush1.msra.mxu0 %v204
    %2747 = vmatprep.subr.mxu0 0.0
    %2748 = vmatpush1.msra.mxu0 0.0
    %2749 = vmatprep.subr.mxu0 0.0
    %2750 = vmatpush1.msra.mxu0 0.0
    %2751 = vmatprep.subr.mxu0 0.0
    %2752 = vmatpush1.msra.mxu0 0.0
    %2753 = vmatprep.subr.mxu0 0.0
    %2754 = vmatpush1.msra.mxu0 0.0
    %2755 = vmatprep.subr.mxu0 0.0
    %2756 = vmatpush1.msra.mxu0 0.0
    %2757 = vmatprep.subr.mxu0 0.0
    %2758 = vmatpush1.msra.mxu0 0.0
    %2759 = vmatprep.subr.mxu0 0.0
    %2760 = vmatpush1.msra.mxu0 0.0
    %2761 = vmatprep.subr.mxu0 0.0
    %2762 = vmatpush1.msra.mxu0 0.0
    %2763 = vmatprep.subr.mxu0 0.0
    %2764 = vmatpush1.msra.mxu0 0.0
    %2765 = vmatprep.subr.mxu0 0.0
    %2766 = vmatpush1.msra.mxu0 0.0
    %2767 = vmatprep.subr.mxu0 0.0
    %2768 = vmatpush1.msra.mxu0 0.0
    %2769 = vmatprep.subr.mxu0 0.0
    %2770 = vmatpush1.msra.mxu0 0.0
    %2771 = vmatprep.subr.mxu0 0.0
    %2772 = vmatpush1.msra.mxu0 0.0
    %2773 = vmatprep.subr.mxu0 0.0
    %2774 = vmatpush1.msra.mxu0 0.0
    %2775 = vmatprep.subr.mxu0 0.0
    %2776 = vmatpush1.msra.mxu0 0.0
    %2777 = vmatprep.subr.mxu0 0.0
    %2778 = vmatpush1.msra.mxu0 0.0
    %2779 = vmatprep.subr.mxu0 0.0
    %2780 = vmatpush1.msra.mxu0 0.0
    %2781 = vmatprep.subr.mxu0 0.0
    %2782 = vmatpush1.msra.mxu0 0.0
    %2783 = vmatprep.subr.mxu0 0.0
    %2784 = vmatpush1.msra.mxu0 0.0
    %2785 = vmatprep.subr.mxu0 0.0
    %2786 = vmatpush1.msra.mxu0 0.0
    %2787 = vmatprep.subr.mxu0 0.0
    %2788 = vmatpush1.msra.mxu0 0.0
    %2789 = vmatprep.subr.mxu0 0.0
    %2790 = vmatpush1.msra.mxu0 0.0
    %2791 = vmatprep.subr.mxu0 0.0
    %2792 = vmatpush1.msra.mxu0 0.0
    %2793 = vmatprep.subr.mxu0 0.0
    %2794 = vmatpush1.msra.mxu0 0.0
    %2795 = vmatprep.subr.mxu0 0.0
    %2796 = vmatpush1.msra.mxu0 0.0
    %2797 = vmatprep.subr.mxu0 0.0
    %2798 = vmatpush1.msra.mxu0 0.0
    %2799 = vmatprep.subr.mxu0 0.0
    %2800 = vmatpush1.msra.mxu0 0.0
    %2801 = vmatprep.subr.mxu0 0.0
    %2802 = vmatpush1.msra.mxu0 0.0
    %2803 = vmatprep.subr.mxu0 0.0
    %2804 = vmatpush1.msra.mxu0 0.0
    %2805 = vmatprep.subr.mxu0 0.0
    %2806 = vmatpush1.msra.mxu0 0.0
    %2807 = vmatprep.mubr.f32.mxu0 0.0
    %2808 = vmatmul.mubr.f32.gmra.mrb[0].mxu0 %v2741
    %v2809 = vpop.f32.mrb[0].mxu0
    %v2810 = vadd.f32 %v2737, %v2809
    %v2811 = vpop.f32.mrb[0].mxu0
    %2812 = vdwg.mxu0
    %v2813 = vxor.u32 %v2810, 2147483648
    %v2814 = vmul.f32 %v2813, 1.442695
    %v2815 = vpow.pop %v2814
    %v2816 = vadd.f32 %v2815, 1.0
    %v2817 = vrcp.pop %v2816
    %v2818 = vmul.f32 1.0, %v2817
    %v2819 = vtanh.pop %v2810
    %v2820 = vmul.f32 %v2818, %v2411
    %2822 = vrot.lane.b32.xlu0 %v2819, 64
    %v2823 = vpop.permute.xlu0 %2822
    %v2825 = vmul.f32 %v2818, %v2823
    %2827 = vrot.lane.b32.xlu0 %v2825, 32
    %v2828 = vpop.permute.xlu0 %2827
    %v2830 = vadd.f32 %v2820, %v2828
    %v2831 = vtanh.pop %v2830
    %2833 = vrot.lane.b32.xlu0 %v2831, 64
    %v2834 = vpop.permute.xlu0 %2833
    %v2836 = vmul.f32 %v2818, %v2834
    %2837 = vmatprep.subr.mxu0 0.0
    %2838 = vmatpush1.msra.mxu0 %v107
    %2839 = vmatprep.subr.mxu0 0.0
    %2840 = vmatpush1.msra.mxu0 %v108
    %2841 = vmatprep.subr.mxu0 0.0
    %2842 = vmatpush1.msra.mxu0 %v109
    %2843 = vmatprep.subr.mxu0 0.0
    %2844 = vmatpush1.msra.mxu0 %v110
    %2845 = vmatprep.subr.mxu0 0.0
    %2846 = vmatpush1.msra.mxu0 0.0
    %2847 = vmatprep.subr.mxu0 0.0
    %2848 = vmatpush1.msra.mxu0 0.0
    %2849 = vmatprep.subr.mxu0 0.0
    %2850 = vmatpush1.msra.mxu0 0.0
    %2851 = vmatprep.subr.mxu0 0.0
    %2852 = vmatpush1.msra.mxu0 0.0
    %2853 = vmatprep.subr.mxu0 0.0
    %2854 = vmatpush1.msra.mxu0 0.0
    %2855 = vmatprep.subr.mxu0 0.0
    %2856 = vmatpush1.msra.mxu0 0.0
    %2857 = vmatprep.subr.mxu0 0.0
    %2858 = vmatpush1.msra.mxu0 0.0
    %2859 = vmatprep.subr.mxu0 0.0
    %2860 = vmatpush1.msra.mxu0 0.0
    %2861 = vmatprep.subr.mxu0 0.0
    %2862 = vmatpush1.msra.mxu0 0.0
    %2863 = vmatprep.subr.mxu0 0.0
    %2864 = vmatpush1.msra.mxu0 0.0
    %2865 = vmatprep.subr.mxu0 0.0
    %2866 = vmatpush1.msra.mxu0 0.0
    %2867 = vmatprep.subr.mxu0 0.0
    %2868 = vmatpush1.msra.mxu0 0.0
    %2869 = vmatprep.subr.mxu0 0.0
    %2870 = vmatpush1.msra.mxu0 0.0
    %2871 = vmatprep.subr.mxu0 0.0
    %2872 = vmatpush1.msra.mxu0 0.0
    %2873 = vmatprep.subr.mxu0 0.0
    %2874 = vmatpush1.msra.mxu0 0.0
    %2875 = vmatprep.subr.mxu0 0.0
    %2876 = vmatpush1.msra.mxu0 0.0
    %2877 = vmatprep.subr.mxu0 0.0
    %2878 = vmatpush1.msra.mxu0 0.0
    %2879 = vmatprep.subr.mxu0 0.0
    %2880 = vmatpush1.msra.mxu0 0.0
    %2881 = vmatprep.subr.mxu0 0.0
    %2882 = vmatpush1.msra.mxu0 0.0
    %2883 = vmatprep.subr.mxu0 0.0
    %2884 = vmatpush1.msra.mxu0 0.0
    %2885 = vmatprep.subr.mxu0 0.0
    %2886 = vmatpush1.msra.mxu0 0.0
    %2887 = vmatprep.subr.mxu0 0.0
    %2888 = vmatpush1.msra.mxu0 0.0
    %2889 = vmatprep.subr.mxu0 0.0
    %2890 = vmatpush1.msra.mxu0 0.0
    %2891 = vmatprep.subr.mxu0 0.0
    %2892 = vmatpush1.msra.mxu0 0.0
    %2893 = vmatprep.subr.mxu0 0.0
    %2894 = vmatpush1.msra.mxu0 0.0
    %2895 = vmatprep.subr.mxu0 0.0
    %2896 = vmatpush1.msra.mxu0 0.0
    %2897 = vmatprep.subr.mxu0 0.0
    %2898 = vmatpush1.msra.mxu0 0.0
    %2899 = vmatprep.subr.mxu0 0.0
    %2900 = vmatpush1.msra.mxu0 0.0
    %2901 = vmatprep.mubr.f32.mxu0 0.0
    %2902 = vmatmul.mubr.f32.gmra.mrb[0].mxu0 %v2591
    %v2903 = vpop.f32.mrb[0].mxu0
    %v2904 = vadd.f32 0.0, %v2903
    %v2905 = vpop.f32.mrb[0].mxu0
    %2906 = vdwg.mxu0
    %2908 = vrot.lane.b32.xlu0 %v2836, 32
    %v2909 = vpop.permute.xlu0 %2908
    %v2910 = vsel %vm124, %v2909, 0
    %2912 = vmatprep.subr.mxu0 0.0
    %2913 = vmatpush1.msra.mxu0 %v103
    %2914 = vmatprep.subr.mxu0 0.0
    %2915 = vmatpush1.msra.mxu0 %v104
    %2916 = vmatprep.subr.mxu0 0.0
    %2917 = vmatpush1.msra.mxu0 %v105
    %2918 = vmatprep.subr.mxu0 0.0
    %2919 = vmatpush1.msra.mxu0 %v106
    %2920 = vmatprep.subr.mxu0 0.0
    %2921 = vmatpush1.msra.mxu0 0.0
    %2922 = vmatprep.subr.mxu0 0.0
    %2923 = vmatpush1.msra.mxu0 0.0
    %2924 = vmatprep.subr.mxu0 0.0
    %2925 = vmatpush1.msra.mxu0 0.0
    %2926 = vmatprep.subr.mxu0 0.0
    %2927 = vmatpush1.msra.mxu0 0.0
    %2928 = vmatprep.subr.mxu0 0.0
    %2929 = vmatpush1.msra.mxu0 0.0
    %2930 = vmatprep.subr.mxu0 0.0
    %2931 = vmatpush1.msra.mxu0 0.0
    %2932 = vmatprep.subr.mxu0 0.0
    %2933 = vmatpush1.msra.mxu0 0.0
    %2934 = vmatprep.subr.mxu0 0.0
    %2935 = vmatpush1.msra.mxu0 0.0
    %2936 = vmatprep.subr.mxu0 0.0
    %2937 = vmatpush1.msra.mxu0 0.0
    %2938 = vmatprep.subr.mxu0 0.0
    %2939 = vmatpush1.msra.mxu0 0.0
    %2940 = vmatprep.subr.mxu0 0.0
    %2941 = vmatpush1.msra.mxu0 0.0
    %2942 = vmatprep.subr.mxu0 0.0
    %2943 = vmatpush1.msra.mxu0 0.0
    %2944 = vmatprep.subr.mxu0 0.0
    %2945 = vmatpush1.msra.mxu0 0.0
    %2946 = vmatprep.subr.mxu0 0.0
    %2947 = vmatpush1.msra.mxu0 0.0
    %2948 = vmatprep.subr.mxu0 0.0
    %2949 = vmatpush1.msra.mxu0 0.0
    %2950 = vmatprep.subr.mxu0 0.0
    %2951 = vmatpush1.msra.mxu0 0.0
    %2952 = vmatprep.subr.mxu0 0.0
    %2953 = vmatpush1.msra.mxu0 0.0
    %2954 = vmatprep.subr.mxu0 0.0
    %2955 = vmatpush1.msra.mxu0 0.0
    %2956 = vmatprep.subr.mxu0 0.0
    %2957 = vmatpush1.msra.mxu0 0.0
    %2958 = vmatprep.subr.mxu0 0.0
    %2959 = vmatpush1.msra.mxu0 0.0
    %2960 = vmatprep.subr.mxu0 0.0
    %2961 = vmatpush1.msra.mxu0 0.0
    %2962 = vmatprep.subr.mxu0 0.0
    %2963 = vmatpush1.msra.mxu0 0.0
    %2964 = vmatprep.subr.mxu0 0.0
    %2965 = vmatpush1.msra.mxu0 0.0
    %2966 = vmatprep.subr.mxu0 0.0
    %2967 = vmatpush1.msra.mxu0 0.0
    %2968 = vmatprep.subr.mxu0 0.0
    %2969 = vmatpush1.msra.mxu0 0.0
    %2970 = vmatprep.subr.mxu0 0.0
    %2971 = vmatpush1.msra.mxu0 0.0
    %2972 = vmatprep.subr.mxu0 0.0
    %2973 = vmatpush1.msra.mxu0 0.0
    %2974 = vmatprep.subr.mxu0 0.0
    %2975 = vmatpush1.msra.mxu0 0.0
    %2976 = vmatprep.mubr.f32.mxu0 0.0
    %2977 = vmatmul.mubr.f32.gmra.mrb[0].mxu0 %v2910
    %v2978 = vpop.f32.mrb[0].mxu0
    %v2979 = vadd.f32 %v2904, %v2978
    %v2980 = vpop.f32.mrb[0].mxu0
    %2981 = vdwg.mxu0
    %v2982 = vadd.f32 %v2979, %v456
    %v2983 = vxor.u32 %v2982, 2147483648
    %v2984 = vmul.f32 %v2983, 1.442695
    %v2985 = vpow.pop %v2984
    %v2986 = vadd.f32 %v2985, 1.0
    %v2987 = vrcp.pop %v2986
    %v2988 = vmul.f32 1.0, %v2987
    %v2989 = vtanh.pop %v2982
    %v2990 = vmul.f32 %v2988, %v2581
    %2992 = vrot.lane.b32.xlu0 %v2989, 64
    %v2993 = vpop.permute.xlu0 %2992
    %v2995 = vmul.f32 %v2988, %v2993
    %2997 = vrot.lane.b32.xlu0 %v2995, 32
    %v2998 = vpop.permute.xlu0 %2997
    %v3000 = vadd.f32 %v2990, %v2998
    %v3001 = vtanh.pop %v3000
    %3003 = vrot.lane.b32.xlu0 %v3001, 64
    %v3004 = vpop.permute.xlu0 %3003
    %v3006 = vmul.f32 %v2988, %v3004
    %3008 = vrot.lane.b32.xlu0 %v3006, 32
    %v3009 = vpop.permute.xlu0 %3008
    %v3010 = vsel %vm124, %v3009, 0
    %3012 = vmatprep.subr.mxu0 0.0
    %3013 = vmatpush1.msra.mxu0 %v98
    %3014 = vmatprep.subr.mxu0 0.0
    %3015 = vmatpush1.msra.mxu0 %v99
    %3016 = vmatprep.subr.mxu0 0.0
    %3017 = vmatpush1.msra.mxu0 %v100
    %3018 = vmatprep.subr.mxu0 0.0
    %3019 = vmatpush1.msra.mxu0 %v101
    %3020 = vmatprep.subr.mxu0 0.0
    %3021 = vmatpush1.msra.mxu0 0.0
    %3022 = vmatprep.subr.mxu0 0.0
    %3023 = vmatpush1.msra.mxu0 0.0
    %3024 = vmatprep.subr.mxu0 0.0
    %3025 = vmatpush1.msra.mxu0 0.0
    %3026 = vmatprep.subr.mxu0 0.0
    %3027 = vmatpush1.msra.mxu0 0.0
    %3028 = vmatprep.subr.mxu0 0.0
    %3029 = vmatpush1.msra.mxu0 0.0
    %3030 = vmatprep.subr.mxu0 0.0
    %3031 = vmatpush1.msra.mxu0 0.0
    %3032 = vmatprep.subr.mxu0 0.0
    %3033 = vmatpush1.msra.mxu0 0.0
    %3034 = vmatprep.subr.mxu0 0.0
    %3035 = vmatpush1.msra.mxu0 0.0
    %3036 = vmatprep.subr.mxu0 0.0
    %3037 = vmatpush1.msra.mxu0 0.0
    %3038 = vmatprep.subr.mxu0 0.0
    %3039 = vmatpush1.msra.mxu0 0.0
    %3040 = vmatprep.subr.mxu0 0.0
    %3041 = vmatpush1.msra.mxu0 0.0
    %3042 = vmatprep.subr.mxu0 0.0
    %3043 = vmatpush1.msra.mxu0 0.0
    %3044 = vmatprep.subr.mxu0 0.0
    %3045 = vmatpush1.msra.mxu0 0.0
    %3046 = vmatprep.subr.mxu0 0.0
    %3047 = vmatpush1.msra.mxu0 0.0
    %3048 = vmatprep.subr.mxu0 0.0
    %3049 = vmatpush1.msra.mxu0 0.0
    %3050 = vmatprep.subr.mxu0 0.0
    %3051 = vmatpush1.msra.mxu0 0.0
    %3052 = vmatprep.subr.mxu0 0.0
    %3053 = vmatpush1.msra.mxu0 0.0
    %3054 = vmatprep.subr.mxu0 0.0
    %3055 = vmatpush1.msra.mxu0 0.0
    %3056 = vmatprep.subr.mxu0 0.0
    %3057 = vmatpush1.msra.mxu0 0.0
    %3058 = vmatprep.subr.mxu0 0.0
    %3059 = vmatpush1.msra.mxu0 0.0
    %3060 = vmatprep.subr.mxu0 0.0
    %3061 = vmatpush1.msra.mxu0 0.0
    %3062 = vmatprep.subr.mxu0 0.0
    %3063 = vmatpush1.msra.mxu0 0.0
    %3064 = vmatprep.subr.mxu0 0.0
    %3065 = vmatpush1.msra.mxu0 0.0
    %3066 = vmatprep.subr.mxu0 0.0
    %3067 = vmatpush1.msra.mxu0 0.0
    %3068 = vmatprep.subr.mxu0 0.0
    %3069 = vmatpush1.msra.mxu0 0.0
    %3070 = vmatprep.subr.mxu0 0.0
    %3071 = vmatpush1.msra.mxu0 0.0
    %3072 = vmatprep.subr.mxu0 0.0
    %3073 = vmatpush1.msra.mxu0 0.0
    %3074 = vmatprep.subr.mxu0 0.0
    %3075 = vmatpush1.msra.mxu0 0.0
    %3076 = vmatprep.mubr.f32.mxu0 0.0
    %3077 = vmatmul.mubr.f32.gmra.mrb[0].mxu0 %v3010
    %v3078 = vpop.f32.mrb[0].mxu0
    %v3079 = vadd.f32 %v491, %v3078
    %v3080 = vpop.f32.mrb[0].mxu0
    %3081 = vdwg.mxu0
    %v3082 = vsel %vm117, %v3079, -inf
    %v3083 = vsel %vm198, %v3082, -inf
    %3084 = vmax.index.xlane.f32.xlu0 %v3083
    %v3085 = vpop.xlane.xlu0 %3084
    %vm3086 = vcmp.eq.s32.totalorder %v91, %v3085
    %v3087 = vsel %vm3086, 1, 0
    %v3088 = vcvt.s32.f32 %v3087
    %3089 = vmatprep.subr.mxu0 0.0
    %3090 = vmatpush1.msra.mxu0 %v94
    %3091 = vmatprep.subr.mxu0 0.0
    %3092 = vmatpush1.msra.mxu0 %v95
    %3093 = vmatprep.subr.mxu0 0.0
    %3094 = vmatpush1.msra.mxu0 %v96
    %3095 = vmatprep.subr.mxu0 0.0
    %3096 = vmatpush1.msra.mxu0 %v97
    %3097 = vmatprep.subr.mxu0 0.0
    %3098 = vmatpush1.msra.mxu0 0.0
    %3099 = vmatprep.subr.mxu0 0.0
    %3100 = vmatpush1.msra.mxu0 0.0
    %3101 = vmatprep.subr.mxu0 0.0
    %3102 = vmatpush1.msra.mxu0 0.0
    %3103 = vmatprep.subr.mxu0 0.0
    %3104 = vmatpush1.msra.mxu0 0.0
    %3105 = vmatprep.subr.mxu0 0.0
    %3106 = vmatpush1.msra.mxu0 0.0
    %3107 = vmatprep.subr.mxu0 0.0
    %3108 = vmatpush1.msra.mxu0 0.0
    %3109 = vmatprep.subr.mxu0 0.0
    %3110 = vmatpush1.msra.mxu0 0.0
    %3111 = vmatprep.subr.mxu0 0.0
    %3112 = vmatpush1.msra.mxu0 0.0
    %3113 = vmatprep.subr.mxu0 0.0
    %3114 = vmatpush1.msra.mxu0 0.0
    %3115 = vmatprep.subr.mxu0 0.0
    %3116 = vmatpush1.msra.mxu0 0.0
    %3117 = vmatprep.subr.mxu0 0.0
    %3118 = vmatpush1.msra.mxu0 0.0
    %3119 = vmatprep.subr.mxu0 0.0
    %3120 = vmatpush1.msra.mxu0 0.0
    %3121 = vmatprep.subr.mxu0 0.0
    %3122 = vmatpush1.msra.mxu0 0.0
    %3123 = vmatprep.subr.mxu0 0.0
    %3124 = vmatpush1.msra.mxu0 0.0
    %3125 = vmatprep.subr.mxu0 0.0
    %3126 = vmatpush1.msra.mxu0 0.0
    %3127 = vmatprep.subr.mxu0 0.0
    %3128 = vmatpush1.msra.mxu0 0.0
    %3129 = vmatprep.subr.mxu0 0.0
    %3130 = vmatpush1.msra.mxu0 0.0
    %3131 = vmatprep.subr.mxu0 0.0
    %3132 = vmatpush1.msra.mxu0 0.0
    %3133 = vmatprep.subr.mxu0 0.0
    %3134 = vmatpush1.msra.mxu0 0.0
    %3135 = vmatprep.subr.mxu0 0.0
    %3136 = vmatpush1.msra.mxu0 0.0
    %3137 = vmatprep.subr.mxu0 0.0
    %3138 = vmatpush1.msra.mxu0 0.0
    %3139 = vmatprep.subr.mxu0 0.0
    %3140 = vmatpush1.msra.mxu0 0.0
    %3141 = vmatprep.subr.mxu0 0.0
    %3142 = vmatpush1.msra.mxu0 0.0
    %3143 = vmatprep.subr.mxu0 0.0
    %3144 = vmatpush1.msra.mxu0 0.0
    %3145 = vmatprep.subr.mxu0 0.0
    %3146 = vmatpush1.msra.mxu0 0.0
    %3147 = vmatprep.subr.mxu0 0.0
    %3148 = vmatpush1.msra.mxu0 0.0
    %3149 = vmatprep.subr.mxu0 0.0
    %3150 = vmatpush1.msra.mxu0 0.0
    %3151 = vmatprep.subr.mxu0 0.0
    %3152 = vmatpush1.msra.mxu0 0.0
    %3153 = vmatprep.mubr.f32.mxu0 0.0
    %3154 = vmatmul.mubr.f32.gmra.mrb[0].mxu0 %v2910
    %v3155 = vpop.f32.mrb[0].mxu0
    %v3156 = vadd.f32 0.0, %v3155
    %v3157 = vpop.f32.mrb[0].mxu0
    %3158 = vdwg.mxu0
    %v3160 = vsel %vm198, %v3088, 0
    %3162 = vmatprep.subr.mxu0 0.0
    %3163 = vmatpush1.msra.mxu0 %v92
    %3164 = vmatprep.subr.mxu0 0.0
    %3165 = vmatpush1.msra.mxu0 %v204
    %3166 = vmatprep.subr.mxu0 0.0
    %3167 = vmatpush1.msra.mxu0 0.0
    %3168 = vmatprep.subr.mxu0 0.0
    %3169 = vmatpush1.msra.mxu0 0.0
    %3170 = vmatprep.subr.mxu0 0.0
    %3171 = vmatpush1.msra.mxu0 0.0
    %3172 = vmatprep.subr.mxu0 0.0
    %3173 = vmatpush1.msra.mxu0 0.0
    %3174 = vmatprep.subr.mxu0 0.0
    %3175 = vmatpush1.msra.mxu0 0.0
    %3176 = vmatprep.subr.mxu0 0.0
    %3177 = vmatpush1.msra.mxu0 0.0
    %3178 = vmatprep.subr.mxu0 0.0
    %3179 = vmatpush1.msra.mxu0 0.0
    %3180 = vmatprep.subr.mxu0 0.0
    %3181 = vmatpush1.msra.mxu0 0.0
    %3182 = vmatprep.subr.mxu0 0.0
    %3183 = vmatpush1.msra.mxu0 0.0
    %3184 = vmatprep.subr.mxu0 0.0
    %3185 = vmatpush1.msra.mxu0 0.0
    %3186 = vmatprep.subr.mxu0 0.0
    %3187 = vmatpush1.msra.mxu0 0.0
    %3188 = vmatprep.subr.mxu0 0.0
    %3189 = vmatpush1.msra.mxu0 0.0
    %3190 = vmatprep.subr.mxu0 0.0
    %3191 = vmatpush1.msra.mxu0 0.0
    %3192 = vmatprep.subr.mxu0 0.0
    %3193 = vmatpush1.msra.mxu0 0.0
    %3194 = vmatprep.subr.mxu0 0.0
    %3195 = vmatpush1.msra.mxu0 0.0
    %3196 = vmatprep.subr.mxu0 0.0
    %3197 = vmatpush1.msra.mxu0 0.0
    %3198 = vmatprep.subr.mxu0 0.0
    %3199 = vmatpush1.msra.mxu0 0.0
    %3200 = vmatprep.subr.mxu0 0.0
    %3201 = vmatpush1.msra.mxu0 0.0
    %3202 = vmatprep.subr.mxu0 0.0
    %3203 = vmatpush1.msra.mxu0 0.0
    %3204 = vmatprep.subr.mxu0 0.0
    %3205 = vmatpush1.msra.mxu0 0.0
    %3206 = vmatprep.subr.mxu0 0.0
    %3207 = vmatpush1.msra.mxu0 0.0
    %3208 = vmatprep.subr.mxu0 0.0
    %3209 = vmatpush1.msra.mxu0 0.0
    %3210 = vmatprep.subr.mxu0 0.0
    %3211 = vmatpush1.msra.mxu0 0.0
    %3212 = vmatprep.subr.mxu0 0.0
    %3213 = vmatpush1.msra.mxu0 0.0
    %3214 = vmatprep.subr.mxu0 0.0
    %3215 = vmatpush1.msra.mxu0 0.0
    %3216 = vmatprep.subr.mxu0 0.0
    %3217 = vmatpush1.msra.mxu0 0.0
    %3218 = vmatprep.subr.mxu0 0.0
    %3219 = vmatpush1.msra.mxu0 0.0
    %3220 = vmatprep.subr.mxu0 0.0
    %3221 = vmatpush1.msra.mxu0 0.0
    %3222 = vmatprep.subr.mxu0 0.0
    %3223 = vmatpush1.msra.mxu0 0.0
    %3224 = vmatprep.subr.mxu0 0.0
    %3225 = vmatpush1.msra.mxu0 0.0
    %3226 = vmatprep.mubr.f32.mxu0 0.0
    %3227 = vmatmul.mubr.f32.gmra.mrb[0].mxu0 %v3160
    %v3228 = vpop.f32.mrb[0].mxu0
    %v3229 = vadd.f32 %v3156, %v3228
    %v3230 = vpop.f32.mrb[0].mxu0
    %3231 = vdwg.mxu0
    %v3232 = vxor.u32 %v3229, 2147483648
    %v3233 = vmul.f32 %v3232, 1.442695
    %v3234 = vpow.pop %v3233
    %v3235 = vadd.f32 %v3234, 1.0
    %v3236 = vrcp.pop %v3235
    %v3237 = vmul.f32 1.0, %v3236
    %v3238 = vtanh.pop %v3229
    %v3239 = vmul.f32 %v3237, %v2830
    %3241 = vrot.lane.b32.xlu0 %v3238, 64
    %v3242 = vpop.permute.xlu0 %3241
    %v3244 = vmul.f32 %v3237, %v3242
    %3246 = vrot.lane.b32.xlu0 %v3244, 32
    %v3247 = vpop.permute.xlu0 %3246
    %v3249 = vadd.f32 %v3239, %v3247
    %v3250 = vtanh.pop %v3249
    %3252 = vrot.lane.b32.xlu0 %v3250, 64
    %v3253 = vpop.permute.xlu0 %3252
    %v3255 = vmul.f32 %v3237, %v3253
    %3256 = vmatprep.subr.mxu0 0.0
    %3257 = vmatpush1.msra.mxu0 %v107
    %3258 = vmatprep.subr.mxu0 0.0
    %3259 = vmatpush1.msra.mxu0 %v108
    %3260 = vmatprep.subr.mxu0 0.0
    %3261 = vmatpush1.msra.mxu0 %v109
    %3262 = vmatprep.subr.mxu0 0.0
    %3263 = vmatpush1.msra.mxu0 %v110
    %3264 = vmatprep.subr.mxu0 0.0
    %3265 = vmatpush1.msra.mxu0 0.0
    %3266 = vmatprep.subr.mxu0 0.0
    %3267 = vmatpush1.msra.mxu0 0.0
    %3268 = vmatprep.subr.mxu0 0.0
    %3269 = vmatpush1.msra.mxu0 0.0
    %3270 = vmatprep.subr.mxu0 0.0
    %3271 = vmatpush1.msra.mxu0 0.0
    %3272 = vmatprep.subr.mxu0 0.0
    %3273 = vmatpush1.msra.mxu0 0.0
    %3274 = vmatprep.subr.mxu0 0.0
    %3275 = vmatpush1.msra.mxu0 0.0
    %3276 = vmatprep.subr.mxu0 0.0
    %3277 = vmatpush1.msra.mxu0 0.0
    %3278 = vmatprep.subr.mxu0 0.0
    %3279 = vmatpush1.msra.mxu0 0.0
    %3280 = vmatprep.subr.mxu0 0.0
    %3281 = vmatpush1.msra.mxu0 0.0
    %3282 = vmatprep.subr.mxu0 0.0
    %3283 = vmatpush1.msra.mxu0 0.0
    %3284 = vmatprep.subr.mxu0 0.0
    %3285 = vmatpush1.msra.mxu0 0.0
    %3286 = vmatprep.subr.mxu0 0.0
    %3287 = vmatpush1.msra.mxu0 0.0
    %3288 = vmatprep.subr.mxu0 0.0
    %3289 = vmatpush1.msra.mxu0 0.0
    %3290 = vmatprep.subr.mxu0 0.0
    %3291 = vmatpush1.msra.mxu0 0.0
    %3292 = vmatprep.subr.mxu0 0.0
    %3293 = vmatpush1.msra.mxu0 0.0
    %3294 = vmatprep.subr.mxu0 0.0
    %3295 = vmatpush1.msra.mxu0 0.0
    %3296 = vmatprep.subr.mxu0 0.0
    %3297 = vmatpush1.msra.mxu0 0.0
    %3298 = vmatprep.subr.mxu0 0.0
    %3299 = vmatpush1.msra.mxu0 0.0
    %3300 = vmatprep.subr.mxu0 0.0
    %3301 = vmatpush1.msra.mxu0 0.0
    %3302 = vmatprep.subr.mxu0 0.0
    %3303 = vmatpush1.msra.mxu0 0.0
    %3304 = vmatprep.subr.mxu0 0.0
    %3305 = vmatpush1.msra.mxu0 0.0
    %3306 = vmatprep.subr.mxu0 0.0
    %3307 = vmatpush1.msra.mxu0 0.0
    %3308 = vmatprep.subr.mxu0 0.0
    %3309 = vmatpush1.msra.mxu0 0.0
    %3310 = vmatprep.subr.mxu0 0.0
    %3311 = vmatpush1.msra.mxu0 0.0
    %3312 = vmatprep.subr.mxu0 0.0
    %3313 = vmatpush1.msra.mxu0 0.0
    %3314 = vmatprep.subr.mxu0 0.0
    %3315 = vmatpush1.msra.mxu0 0.0
    %3316 = vmatprep.subr.mxu0 0.0
    %3317 = vmatpush1.msra.mxu0 0.0
    %3318 = vmatprep.subr.mxu0 0.0
    %3319 = vmatpush1.msra.mxu0 0.0
    %3320 = vmatprep.mubr.f32.mxu0 0.0
    %3321 = vmatmul.mubr.f32.gmra.mrb[0].mxu0 %v3010
    %v3322 = vpop.f32.mrb[0].mxu0
    %v3323 = vadd.f32 0.0, %v3322
    %v3324 = vpop.f32.mrb[0].mxu0
    %3325 = vdwg.mxu0
    %3327 = vrot.lane.b32.xlu0 %v3255, 32
    %v3328 = vpop.permute.xlu0 %3327
    %v3329 = vsel %vm124, %v3328, 0
    %3331 = vmatprep.subr.mxu0 0.0
    %3332 = vmatpush1.msra.mxu0 %v103
    %3333 = vmatprep.subr.mxu0 0.0
    %3334 = vmatpush1.msra.mxu0 %v104
    %3335 = vmatprep.subr.mxu0 0.0
    %3336 = vmatpush1.msra.mxu0 %v105
    %3337 = vmatprep.subr.mxu0 0.0
    %3338 = vmatpush1.msra.mxu0 %v106
    %3339 = vmatprep.subr.mxu0 0.0
    %3340 = vmatpush1.msra.mxu0 0.0
    %3341 = vmatprep.subr.mxu0 0.0
    %3342 = vmatpush1.msra.mxu0 0.0
    %3343 = vmatprep.subr.mxu0 0.0
    %3344 = vmatpush1.msra.mxu0 0.0
    %3345 = vmatprep.subr.mxu0 0.0
    %3346 = vmatpush1.msra.mxu0 0.0
    %3347 = vmatprep.subr.mxu0 0.0
    %3348 = vmatpush1.msra.mxu0 0.0
    %3349 = vmatprep.subr.mxu0 0.0
    %3350 = vmatpush1.msra.mxu0 0.0
    %3351 = vmatprep.subr.mxu0 0.0
    %3352 = vmatpush1.msra.mxu0 0.0
    %3353 = vmatprep.subr.mxu0 0.0
    %3354 = vmatpush1.msra.mxu0 0.0
    %3355 = vmatprep.subr.mxu0 0.0
    %3356 = vmatpush1.msra.mxu0 0.0
    %3357 = vmatprep.subr.mxu0 0.0
    %3358 = vmatpush1.msra.mxu0 0.0
    %3359 = vmatprep.subr.mxu0 0.0
    %3360 = vmatpush1.msra.mxu0 0.0
    %3361 = vmatprep.subr.mxu0 0.0
    %3362 = vmatpush1.msra.mxu0 0.0
    %3363 = vmatprep.subr.mxu0 0.0
    %3364 = vmatpush1.msra.mxu0 0.0
    %3365 = vmatprep.subr.mxu0 0.0
    %3366 = vmatpush1.msra.mxu0 0.0
    %3367 = vmatprep.subr.mxu0 0.0
    %3368 = vmatpush1.msra.mxu0 0.0
    %3369 = vmatprep.subr.mxu0 0.0
    %3370 = vmatpush1.msra.mxu0 0.0
    %3371 = vmatprep.subr.mxu0 0.0
    %3372 = vmatpush1.msra.mxu0 0.0
    %3373 = vmatprep.subr.mxu0 0.0
    %3374 = vmatpush1.msra.mxu0 0.0
    %3375 = vmatprep.subr.mxu0 0.0
    %3376 = vmatpush1.msra.mxu0 0.0
    %3377 = vmatprep.subr.mxu0 0.0
    %3378 = vmatpush1.msra.mxu0 0.0
    %3379 = vmatprep.subr.mxu0 0.0
    %3380 = vmatpush1.msra.mxu0 0.0
    %3381 = vmatprep.subr.mxu0 0.0
    %3382 = vmatpush1.msra.mxu0 0.0
    %3383 = vmatprep.subr.mxu0 0.0
    %3384 = vmatpush1.msra.mxu0 0.0
    %3385 = vmatprep.subr.mxu0 0.0
    %3386 = vmatpush1.msra.mxu0 0.0
    %3387 = vmatprep.subr.mxu0 0.0
    %3388 = vmatpush1.msra.mxu0 0.0
    %3389 = vmatprep.subr.mxu0 0.0
    %3390 = vmatpush1.msra.mxu0 0.0
    %3391 = vmatprep.subr.mxu0 0.0
    %3392 = vmatpush1.msra.mxu0 0.0
    %3393 = vmatprep.subr.mxu0 0.0
    %3394 = vmatpush1.msra.mxu0 0.0
    %3395 = vmatprep.mubr.f32.mxu0 0.0
    %3396 = vmatmul.mubr.f32.gmra.mrb[0].mxu0 %v3329
    %v3397 = vpop.f32.mrb[0].mxu0
    %v3398 = vadd.f32 %v3323, %v3397
    %v3399 = vpop.f32.mrb[0].mxu0
    %3400 = vdwg.mxu0
    %v3401 = vadd.f32 %v3398, %v456
    %v3402 = vxor.u32 %v3401, 2147483648
    %v3403 = vmul.f32 %v3402, 1.442695
    %v3404 = vpow.pop %v3403
    %v3405 = vadd.f32 %v3404, 1.0
    %v3406 = vrcp.pop %v3405
    %v3407 = vmul.f32 1.0, %v3406
    %v3408 = vtanh.pop %v3401
    %v3409 = vmul.f32 %v3407, %v3000
    %3411 = vrot.lane.b32.xlu0 %v3408, 64
    %v3412 = vpop.permute.xlu0 %3411
    %v3414 = vmul.f32 %v3407, %v3412
    %3416 = vrot.lane.b32.xlu0 %v3414, 32
    %v3417 = vpop.permute.xlu0 %3416
    %v3419 = vadd.f32 %v3409, %v3417
    %v3420 = vtanh.pop %v3419
    %3422 = vrot.lane.b32.xlu0 %v3420, 64
    %v3423 = vpop.permute.xlu0 %3422
    %v3425 = vmul.f32 %v3407, %v3423
    %3427 = vrot.lane.b32.xlu0 %v3425, 32
    %v3428 = vpop.permute.xlu0 %3427
    %v3429 = vsel %vm124, %v3428, 0
    %3431 = vmatprep.subr.mxu0 0.0
    %3432 = vmatpush1.msra.mxu0 %v98
    %3433 = vmatprep.subr.mxu0 0.0
    %3434 = vmatpush1.msra.mxu0 %v99
    %3435 = vmatprep.subr.mxu0 0.0
    %3436 = vmatpush1.msra.mxu0 %v100
    %3437 = vmatprep.subr.mxu0 0.0
    %3438 = vmatpush1.msra.mxu0 %v101
    %3439 = vmatprep.subr.mxu0 0.0
    %3440 = vmatpush1.msra.mxu0 0.0
    %3441 = vmatprep.subr.mxu0 0.0
    %3442 = vmatpush1.msra.mxu0 0.0
    %3443 = vmatprep.subr.mxu0 0.0
    %3444 = vmatpush1.msra.mxu0 0.0
    %3445 = vmatprep.subr.mxu0 0.0
    %3446 = vmatpush1.msra.mxu0 0.0
    %3447 = vmatprep.subr.mxu0 0.0
    %3448 = vmatpush1.msra.mxu0 0.0
    %3449 = vmatprep.subr.mxu0 0.0
    %3450 = vmatpush1.msra.mxu0 0.0
    %3451 = vmatprep.subr.mxu0 0.0
    %3452 = vmatpush1.msra.mxu0 0.0
    %3453 = vmatprep.subr.mxu0 0.0
    %3454 = vmatpush1.msra.mxu0 0.0
    %3455 = vmatprep.subr.mxu0 0.0
    %3456 = vmatpush1.msra.mxu0 0.0
    %3457 = vmatprep.subr.mxu0 0.0
    %3458 = vmatpush1.msra.mxu0 0.0
    %3459 = vmatprep.subr.mxu0 0.0
    %3460 = vmatpush1.msra.mxu0 0.0
    %3461 = vmatprep.subr.mxu0 0.0
    %3462 = vmatpush1.msra.mxu0 0.0
    %3463 = vmatprep.subr.mxu0 0.0
    %3464 = vmatpush1.msra.mxu0 0.0
    %3465 = vmatprep.subr.mxu0 0.0
    %3466 = vmatpush1.msra.mxu0 0.0
    %3467 = vmatprep.subr.mxu0 0.0
    %3468 = vmatpush1.msra.mxu0 0.0
    %3469 = vmatprep.subr.mxu0 0.0
    %3470 = vmatpush1.msra.mxu0 0.0
    %3471 = vmatprep.subr.mxu0 0.0
    %3472 = vmatpush1.msra.mxu0 0.0
    %3473 = vmatprep.subr.mxu0 0.0
    %3474 = vmatpush1.msra.mxu0 0.0
    %3475 = vmatprep.subr.mxu0 0.0
    %3476 = vmatpush1.msra.mxu0 0.0
    %3477 = vmatprep.subr.mxu0 0.0
    %3478 = vmatpush1.msra.mxu0 0.0
    %3479 = vmatprep.subr.mxu0 0.0
    %3480 = vmatpush1.msra.mxu0 0.0
    %3481 = vmatprep.subr.mxu0 0.0
    %3482 = vmatpush1.msra.mxu0 0.0
    %3483 = vmatprep.subr.mxu0 0.0
    %3484 = vmatpush1.msra.mxu0 0.0
    %3485 = vmatprep.subr.mxu0 0.0
    %3486 = vmatpush1.msra.mxu0 0.0
    %3487 = vmatprep.subr.mxu0 0.0
    %3488 = vmatpush1.msra.mxu0 0.0
    %3489 = vmatprep.subr.mxu0 0.0
    %3490 = vmatpush1.msra.mxu0 0.0
    %3491 = vmatprep.subr.mxu0 0.0
    %3492 = vmatpush1.msra.mxu0 0.0
    %3493 = vmatprep.subr.mxu0 0.0
    %3494 = vmatpush1.msra.mxu0 0.0
    %3495 = vmatprep.mubr.f32.mxu0 0.0
    %3496 = vmatmul.mubr.f32.gmra.mrb[0].mxu0 %v3429
    %v3497 = vpop.f32.mrb[0].mxu0
    %v3498 = vadd.f32 %v491, %v3497
    %v3499 = vpop.f32.mrb[0].mxu0
    %3500 = vdwg.mxu0
    %v3501 = vsel %vm115, %v3498, -inf
    %v3502 = vsel %vm198, %v3501, -inf
    %3503 = vmax.index.xlane.f32.xlu0 %v3502
    %v3504 = vpop.xlane.xlu0 %3503
    %vm3505 = vcmask 7168
    %v3506 = vsel %vm3505, %v571, %v990
    %vm3507 = vcmask 15360
    %v3508 = vsel %vm3507, %v3506, %v1409
    %vm3509 = vcmask 23552
    %v3510 = vsel %vm3509, %v3508, %v1828
    %vm3511 = vcmask 31744
    %v3512 = vsel %vm3511, %v3510, %v2247
    %vm3513 = vcmask 39936
    %v3514 = vsel %vm3513, %v3512, %v2666
    %vm3515 = vcmask 48128
    %v3516 = vsel %vm3515, %v3514, %v3085
    %vm3517 = vcmask 56320
    %v3518 = vsel %vm3517, %v3516, %v3504
    %vm3519 = vcmask 64512
    %3520 = vst.msk [vmem:[#allocation8] sm:$0xff] %vm3519, %v3518
    %v3521 = vsel %vm198, %v3498, -inf
    %3522 = vmax.xlane.f32.xlu0 %v3521
    %v3523 = vpop.xlane.xlu0 %3522
    %v3524 = vsub.f32 %v3498, %v3523
    %v3525 = vmul.f32 %v3524, 1.442695
    %v3526 = vpow.pop %v3525
    %v3527 = vsel %vm198, %v3526, 0.0
    %3528 = vadd.xlane.f32.xlu0 %v3527
    %v3529 = vpop.xlane.xlu0 %3528
    %v3530 = vlog2.pop %v3529
    %v3531 = vmul.f32 %v3530, 0.6931472
    %v3532 = vadd.f32 %v3523, %v3531
    %v3533 = vsub.f32 %v3498, %v3532
    %3534 = vst.msk [vmem:[#allocation9] sm:$0xff] %vm198, %v3533
    %3536 = vst.msk [vmem:[#allocation11] sm:$0xff] %vm124, %v3328
    %3538 = vrot.lane.b32.xlu0 %v3249, 96
    %v3539 = vpop.permute.xlu0 %3538
    %3541 = vst.msk [vmem:[#allocation12] sm:$0xff] %vm124, %v3539
    %s3543 = scalar_lea.vmem [#allocation11], 8
    %3544 = vst.msk [vmem:[%s3543] sm:$0xff] %vm124, %v3428
    %3546 = vrot.lane.b32.xlu0 %v3419, 96
    %v3547 = vpop.permute.xlu0 %3546
    %s3549 = scalar_lea.vmem [#allocation12], 8
    %3550 = vst.msk [vmem:[%s3549] sm:$0xff] %vm124, %v3547
    // Predicated region
    $region54: #{tpu_custom_call.1} parent=1 // pred_check
      _
    $region55: #{tpu_custom_call.1} parent=1 // pred_check_branch
      %3552 = sbr.rel (0) target = $region57
    $region56: #{tpu_custom_call.1} parent=1 // pred_region
      %s3554 = ssub.s32 128, 128
      %3555 = vsyncadd [#allocation4], %s3554
      %s3557 = sshll.u32 [#allocation8], 4
      %s3558 = int_to_ptr.vmem [resolvable:$true] %s3557
      %3560 = dma.vmem_to_hbm [thread:$0]  %s3558, 128, %s10, [#allocation4]
    $region57: #{tpu_custom_call.1} parent=1 // pred_fallthru
      _
    // Predicated region
    $region58: #{tpu_custom_call.1} parent=1 // pred_check
      _
    $region59: #{tpu_custom_call.1} parent=1 // pred_check_branch
      %3562 = sbr.rel (0) target = $region61
    $region60: #{tpu_custom_call.1} parent=1 // pred_region
      %s3564 = ssub.s32 128, 128
      %3565 = vsyncadd [#allocation10], %s3564
      %s3567 = sshll.u32 [#allocation9], 4
      %s3568 = int_to_ptr.vmem [resolvable:$true] %s3567
      %3570 = dma.vmem_to_hbm [thread:$0]  %s3568, 128, %s11, [#allocation10]
    $region61: #{tpu_custom_call.1} parent=1 // pred_fallthru
      _
    // Predicated region
    $region62: #{tpu_custom_call.1} parent=1 // pred_check
      _
    $region63: #{tpu_custom_call.1} parent=1 // pred_check_branch
      %3572 = sbr.rel (0) target = $region65
    $region64: #{tpu_custom_call.1} parent=1 // pred_region
      %s3574 = ssub.s32 256, 256
      %3575 = vsyncadd [#allocation10], %s3574
      %s3576 = sshll.u32 [#allocation11], 4
      %s3577 = int_to_ptr.vmem [resolvable:$true] %s3576
      %3582 = dma.vmem_to_hbm [thread:$0]  %s3577, 256, %s12, [#allocation10], 128, 128, 8
    $region65: #{tpu_custom_call.1} parent=1 // pred_fallthru
      _
    // Predicated region
    $region66: #{tpu_custom_call.1} parent=1 // pred_check
      _
    $region67: #{tpu_custom_call.1} parent=1 // pred_check_branch
      %3584 = sbr.rel (0) target = $region69
    $region68: #{tpu_custom_call.1} parent=1 // pred_region
      %s3586 = ssub.s32 256, 256
      %3587 = vsyncadd [#allocation13], %s3586
      %s3588 = sshll.u32 [#allocation12], 4
      %s3589 = int_to_ptr.vmem [resolvable:$true] %s3588
      %3594 = dma.vmem_to_hbm [thread:$0]  %s3589, 256, %s13, [#allocation13], 128, 128, 8
    $region69: #{tpu_custom_call.1} parent=1 // pred_fallthru
      _
    // Predicated region
    $region70: #{tpu_custom_call.1} parent=1 // pred_check
      _
    $region71: #{tpu_custom_call.1} parent=1 // pred_check_branch
      %3596 = sbr.rel (0) target = $region73
    $region72: #{tpu_custom_call.1} parent=1 // pred_region
      %3597 = dma.done [#allocation4], 128
    $region73: #{tpu_custom_call.1} parent=1 // pred_fallthru
      _
    // Predicated region
    $region74: #{tpu_custom_call.1} parent=1 // pred_check
      _
    $region75: #{tpu_custom_call.1} parent=1 // pred_check_branch
      %3599 = sbr.rel (0) target = $region77
    $region76: #{tpu_custom_call.1} parent=1 // pred_region
      %3600 = dma.done [#allocation10], 128
    $region77: #{tpu_custom_call.1} parent=1 // pred_fallthru
      _
    // Predicated region
    $region78: #{tpu_custom_call.1} parent=1 // pred_check
      _
    $region79: #{tpu_custom_call.1} parent=1 // pred_check_branch
      %3602 = sbr.rel (0) target = $region81
    $region80: #{tpu_custom_call.1} parent=1 // pred_region
      %3603 = dma.done [#allocation10], 256
    $region81: #{tpu_custom_call.1} parent=1 // pred_fallthru
      _
    // Predicated region
    $region82: #{tpu_custom_call.1} parent=1 // pred_check
      _
    $region83: #{tpu_custom_call.1} parent=1 // pred_check_branch
      %3605 = sbr.rel (0) target = $region85
    $region84: #{tpu_custom_call.1} parent=1 // pred_region
      %3606 = dma.done [#allocation13], 256
    $region85: #{tpu_custom_call.1} parent=1 // pred_fallthru
      _
    %3607 = vsyncpa [#allocation3], 1
    %3608 = vsyncpa [#allocation6], 1
    %3609 = vsyncpa [#allocation4], 1
    %3610 = vsyncpa [#allocation10], 1
    %3611 = vsyncpa [#allocation13], 1

</llo_original>
